<compile_context>
chip_gen: v6e
topology: v6e:2x2x1
jax: 0.10.0
libtpu: 0.0.40
codegen_flags: <defaults>
</compile_context>

<pallas_src>
import functools

import jax
import jax.numpy as jnp
from jax import lax
from jax.experimental import pallas as pl
from jax.experimental.pallas import tpu as pltpu


def _round_up(x, m):
    return (x + m - 1) // m * m


# ------------------------------ Pallas kernel ------------------------------ #

def _basic_block_kernel(x_ref, w1_ref, w2_ref, o_ref, slab_ref, mid_ref, *,
                        dhw, cin, cout, plane_pad, margin):
    D, H, W = dhw
    Dp, Hp, Wp = D + 2, H + 2, W + 2
    plane = Hp * Wp                       # real (unpadded) plane size
    Lpad = Dp * plane_pad                 # flat padded volume, multiple of 128
    Lw = Lpad + 2 * plane_pad             # wide slab width (covers all 3 kd taps)
    Kc = 9 * cin                          # data rows of the im2col slab
    Kr = slab_ref.shape[0]                # Kc + ones-row + zero padding rows

    # (kh, kw) lane shifts; j = kh*3 + kw matches the weight column grouping.
    row_shifts = [(kh - 1) * Wp + (kw - 1) for kh in range(3) for kw in range(3)]

    # ---- constant slab rows: one "ones" row feeds the folded BN bias column,
    #      remaining padding rows are zero.  Tiny store, redone every grid step
    #      so correctness does not depend on how the parallel batch axis is
    #      split across TensorCores (v7x megacore).
    row_id = lax.broadcasted_iota(jnp.int32, (Kr - Kc, Lw), 0)
    slab_ref[Kc:, :] = jnp.where(row_id == 0, 1.0, 0.0).astype(slab_ref.dtype)

    # ---- zero only the two lane-margin strips of the conv1 output buffer
    #      (interior is fully overwritten each step; margins never feed
    #      interior results, this just keeps them deterministic).
    mid_ref[:, :margin] = jnp.zeros((cout, margin), mid_ref.dtype)
    mid_ref[:, margin + Lpad:] = jnp.zeros((cout, margin), mid_ref.dtype)

    # ---- interior mask over the flat padded index space, built in-kernel
    #      (no DMA'd mask).  Divisions done in f32 with a +0.5 guard, exact for
    #      these integer ranges.
    pos = lax.broadcasted_iota(jnp.int32, (1, Lpad), 1)
    posf = pos.astype(jnp.float32) + 0.5
    dpi = jnp.floor(posf * float(1.0 / plane_pad)).astype(jnp.int32)
    rem = pos - dpi * plane_pad
    remf = rem.astype(jnp.float32) + 0.5
    hpi = jnp.floor(remf * float(1.0 / Wp)).astype(jnp.int32)
    wpi = rem - hpi * Wp
    interior = ((dpi >= 1) & (dpi <= D) & (rem < plane) &
                (hpi >= 1) & (hpi <= H) & (wpi >= 1) & (wpi <= W))

    def fill_slab(read_slice):
        # 9 lane rotations total (one per (kh, kw)); the 3 kd taps reuse them
        # through 128-aligned column offsets inside conv().
        for j, r in enumerate(row_shifts):
            start = margin - plane_pad + r            # static python int
            slab_ref[j * cin:(j + 1) * cin, :] = read_slice(start)

    def conv(w_ref):
        # 3 fused matmuls, K = 9*Cin (+ bias/pad rows); single accumulation
        # chain per output tile (maps onto MRB in-place accumulate on v7x).
        acc = jnp.zeros((cout, Lpad), jnp.float32)
        for kd in range(3):
            off = kd * plane_pad                      # multiple of 128 -> aligned
            acc = acc + jnp.dot(w_ref[kd], slab_ref[:, off:off + Lpad],
                                preferred_element_type=jnp.float32)
        return acc

    # ---- conv1 (+folded BN1 scale & bias) -> ReLU -> halo mask -> mid (VMEM) -
    fill_slab(lambda s: x_ref[0, :, s:s + Lw])
    acc1 = conv(w1_ref)
    out1 = jnp.where(interior, jnp.maximum(acc1, 0.0), 0.0)
    mid_ref[:, margin:margin + Lpad] = out1.astype(mid_ref.dtype)

    # ---- conv2 (+folded BN2 scale & bias) -> +residual -> ReLU -> bf16 out ---
    fill_slab(lambda s: mid_ref[:, s:s + Lw])
    acc2 = conv(w2_ref)
    residual = x_ref[0, :, margin:margin + Lpad].astype(jnp.float32)
    out2 = jnp.where(interior, jnp.maximum(acc2 + residual, 0.0), 0.0)
    o_ref[0] = out2.astype(o_ref.dtype)


# ------------------------------- JAX wrapper -------------------------------- #

def _fold_bn(gamma, beta, mean, var, eps=1e-5):
    scale = gamma / jnp.sqrt(var + eps)
    bias = beta - mean * scale
    return scale, bias


def _fold_conv_weight(w_oidhw, scale, bias, kr):
    """(Cout, Cin, 3,3,3) * bn_scale -> (3, Cout, Kr) bf16.

    Wg[kd, co, (kh*3+kw)*Cin + ci] = w[co, ci, kd, kh, kw] * scale[co]; the
    column Kc = 9*Cin of the kd==0 group carries the folded BN bias (matched by
    a constant "ones" row in the in-VMEM im2col slab); remaining columns are 0.
    """
    cout, cin = w_oidhw.shape[0], w_oidhw.shape[1]
    kc = 9 * cin
    w = w_oidhw * scale[:, None, None, None, None]
    wg = jnp.transpose(w, (2, 3, 4, 1, 0)).reshape(3, kc, cout)   # (kd, khkwci, co)
    wg = jnp.transpose(wg, (0, 2, 1))                             # (kd, co, khkwci)
    out = jnp.zeros((3, cout, kr), w.dtype)
    out = out.at[:, :, :kc].set(wg)
    out = out.at[0, :, kc].set(bias)
    return out.astype(jnp.bfloat16)


def basic_block_forward(x_ncdhw, params, eps=1e-5):
    """BasicBlock forward (inference): in_ch == out_ch, stride=1, no downsample.

    Returns bf16 NCDHW output (kernel writes bf16 to halve HBM writeback)."""
    N, C, D, H, W = x_ncdhw.shape
    Cout = params["conv1_w"].shape[0]
    assert Cout == C and params["conv1_w"].shape[1] == C, \
        "identity residual requires in_ch == out_ch"

    Dp, Hp, Wp = D + 2, H + 2, W + 2
    plane = Hp * Wp
    plane_pad = _round_up(plane, 128)        # lane-aligned depth-plane stride
    Lpad = Dp * plane_pad                    # flat padded volume (multiple of 128)
    margin = _round_up(plane_pad + Wp + 1, 128)
    Ltot = Lpad + 2 * margin
    Kc = 9 * C
    Kr = _round_up(Kc + 1, 8)                # + ones-row for bias, pad to x8

    # -- fold inference BN into conv weights / bias column --------------------
    s1, b1 = _fold_bn(params["bn1_g"], params["bn1_b"],
                      params["bn1_m"], params["bn1_v"], eps)
    s2, b2 = _fold_bn(params["bn2_g"], params["bn2_b"],
                      params["bn2_m"], params["bn2_v"], eps)
    w1 = _fold_conv_weight(params["conv1_w"], s1, b1, Kr)   # (3, Cout, Kr) bf16
    w2 = _fold_conv_weight(params["conv2_w"], s2, b2, Kr)   # (3, Cout, Kr) bf16

    # -- input: NCDHW -> zero-padded, 128-aligned-plane-stride flat bf16 slab --
    xp = jnp.pad(x_ncdhw, ((0, 0), (0, 0), (1, 1), (1, 1), (1, 1)))
    xp = xp.reshape(N, C, Dp, plane)
    xp = jnp.pad(xp, ((0, 0), (0, 0), (0, 0), (0, plane_pad - plane)))
    x_flat = xp.reshape(N, C, Lpad)
    x_flat = jnp.pad(x_flat, ((0, 0), (0, 0), (margin, margin)))
    x_flat = x_flat.astype(jnp.bfloat16)                    # (N, C, Ltot)

    kernel = functools.partial(_basic_block_kernel, dhw=(D, H, W), cin=C,
                               cout=Cout, plane_pad=plane_pad, margin=margin)

    flops = int(N * 2 * 3 * 2 * Cout * Kr * Lpad)
    bytes_accessed = int(x_flat.size * 2 + (w1.size + w2.size) * 2
                         + N * Cout * Lpad * 2)

    out_flat = pl.pallas_call(
        kernel,
        out_shape=jax.ShapeDtypeStruct((N, Cout, Lpad), jnp.bfloat16),
        grid_spec=pltpu.PrefetchScalarGridSpec(
            num_scalar_prefetch=0,
            grid=(N,),
            in_specs=[
                pl.BlockSpec((1, C, Ltot), lambda n: (n, 0, 0)),     # input slab
                pl.BlockSpec((3, Cout, Kr), lambda n: (0, 0, 0)),    # folded w1
                pl.BlockSpec((3, Cout, Kr), lambda n: (0, 0, 0)),    # folded w2
            ],
            out_specs=pl.BlockSpec((1, Cout, Lpad), lambda n: (n, 0, 0)),
            scratch_shapes=[
                pltpu.VMEM((Kr, Lpad + 2 * plane_pad), jnp.bfloat16),  # im2col slab
                pltpu.VMEM((Cout, Ltot), jnp.bfloat16),                # conv1 output
            ],
        ),
        compiler_params=pltpu.CompilerParams(
            dimension_semantics=("parallel",),
            vmem_limit_bytes=48 * 1024 * 1024),
        cost_estimate=pl.CostEstimate(flops=flops, transcendentals=0,
                                      bytes_accessed=bytes_accessed),
    )(x_flat, w1, w2)

    # padded-flat bf16 slab -> NCDHW interior (channels-first, no transposes)
    out = out_flat.reshape(N, Cout, Dp, plane_pad)[:, :, 1:1 + D, :plane]
    out = out.reshape(N, Cout, D, Hp, Wp)[:, :, :, 1:1 + H, 1:1 + W]
    return out


# ------------------------------ references --------------------------------- #

def _conv3d(x, w):
    return lax.conv_general_dilated(
        x, w, window_strides=(1, 1, 1), padding=((1, 1),) * 3,
        dimension_numbers=("NCDHW", "OIDHW", "NCDHW"),
        preferred_element_type=jnp.float32)


def _reference_forward_f32(x, params, eps=1e-5):
    def bn(y, g, b, m, v):
        sh = (1, -1, 1, 1, 1)
        return (y - m.reshape(sh)) / jnp.sqrt(v.reshape(sh) + eps) \
            * g.reshape(sh) + b.reshape(sh)

    out = _conv3d(x, params["conv1_w"])
    out = bn(out, params["bn1_g"], params["bn1_b"], params["bn1_m"], params["bn1_v"])
    out = jnp.maximum(out, 0.0)
    out = _conv3d(out, params["conv2_w"])
    out = bn(out, params["bn2_g"], params["bn2_b"], params["bn2_m"], params["bn2_v"])
    out = out + x
    return jnp.maximum(out, 0.0)


def _reference_forward_bf16(x, params, eps=1e-5):
    """Same numerics as the kernel: bf16 tensors/bias, f32 accum, BN folded."""
    s1 = params["bn1_g"] / jnp.sqrt(params["bn1_v"] + eps)
    b1 = (params["bn1_b"] - params["bn1_m"] * s1).astype(jnp.bfloat16).astype(jnp.float32)
    s2 = params["bn2_g"] / jnp.sqrt(params["bn2_v"] + eps)
    b2 = (params["bn2_b"] - params["bn2_m"] * s2).astype(jnp.bfloat16).astype(jnp.float32)
    w1 = (params["conv1_w"] * s1[:, None, None, None, None]).astype(jnp.bfloat16)
    w2 = (params["conv2_w"] * s2[:, None, None, None, None]).astype(jnp.bfloat16)
    sh = (1, -1, 1, 1, 1)

    xb = x.astype(jnp.bfloat16)
    out = _conv3d(xb, w1) + b1.reshape(sh)
    out = jnp.maximum(out, 0.0).astype(jnp.bfloat16)
    out = _conv3d(out, w2) + b2.reshape(sh)
    out = out + xb.astype(jnp.float32)
    return jnp.maximum(out, 0.0)


# ---------------------------------- main ------------------------------------ #

if __name__ == "__main__":
    key = jax.random.PRNGKey(0)
    N, C, D, H, W = 2, 8, 8, 8, 8     # in_ch == out_ch (downsample=None), stride=1
    Cout = C

    ks = jax.random.split(key, 11)
    x = jax.random.normal(ks[0], (N, C, D, H, W), jnp.float32)
    params = {
        "conv1_w": jax.random.normal(ks[1], (Cout, C, 3, 3, 3), jnp.float32) * 0.1,
        "conv2_w": jax.random.normal(ks[2], (Cout, Cout, 3, 3, 3), jnp.float32) * 0.1,
        "bn1_g": jax.random.uniform(ks[3], (Cout,), jnp.float32, 0.5, 1.5),
        "bn1_b": jax.random.normal(ks[4], (Cout,), jnp.float32) * 0.1,
        "bn1_m": jax.random.normal(ks[5], (Cout,), jnp.float32) * 0.1,
        "bn1_v": jax.random.uniform(ks[6], (Cout,), jnp.float32, 0.5, 1.5),
        "bn2_g": jax.random.uniform(ks[7], (Cout,), jnp.float32, 0.5, 1.5),
        "bn2_b": jax.random.normal(ks[8], (Cout,), jnp.float32) * 0.1,
        "bn2_m": jax.random.normal(ks[9], (Cout,), jnp.float32) * 0.1,
        "bn2_v": jax.random.uniform(ks[10], (Cout,), jnp.float32, 0.5, 1.5),
    }

    out = jax.block_until_ready(jax.jit(basic_block_forward)(x, params))
    assert out.shape == (N, Cout, D, H, W)
    out_f32 = out.astype(jnp.float32)

    ref_bf16 = jax.block_until_ready(_reference_forward_bf16(x, params))
    ref_f32 = jax.block_until_ready(_reference_forward_f32(x, params))

    # tight check vs a reference with identical bf16/f32-accum numerics
    assert jnp.allclose(out_f32, ref_bf16, atol=3e-2, rtol=3e-2), \
        "mismatch vs bf16 reference"
    # loose sanity check vs the pure-f32 PyTorch-equivalent semantics
    assert jnp.allclose(out_f32, ref_f32, atol=1e-1, rtol=1e-1), \
        "mismatch vs f32 reference"

    print("KERNEL_OK")
</pallas_src>

<mosaic_0001>
module attributes {stable_mosaic.version = 11 : i64} {
  func.func @_basic_block_kernel(%arg0: i32, %arg1: memref<1x8x1792xbf16, #tpu.memory_space<vmem>>, %arg2: memref<3x8x80xbf16, #tpu.memory_space<vmem>>, %arg3: memref<3x8x80xbf16, #tpu.memory_space<vmem>>, %arg4: memref<1x8x1280xbf16, #tpu.memory_space<vmem>>, %arg5: memref<80x1536xbf16, #tpu.memory_space<vmem>>, %arg6: memref<8x1792xbf16, #tpu.memory_space<vmem>>) attributes {dimension_semantics = [#tpu.dimension_semantics<parallel>], iteration_bounds = array<i64: 2>, scalar_prefetch = 0 : i64, scratch_operands = 2 : i64, tpu.core_type = #tpu.core_type<tc>, window_params = [{transform_indices = @transform_0, window_bounds = array<i64: 1, 8, 1792>}, {pipeline_mode = #tpu.pipeline_mode<synchronous>, transform_indices = @transform_1, window_bounds = array<i64: 3, 8, 80>}, {pipeline_mode = #tpu.pipeline_mode<synchronous>, transform_indices = @transform_2, window_bounds = array<i64: 3, 8, 80>}, {transform_indices = @transform_3, window_bounds = array<i64: 1, 8, 1280>}]} {
    %0 = tpu.iota {dimensions = array<i32: 0>} : vector<8x1536xi32>
    %c0_i32 = arith.constant 0 : i32
    %1 = vector.broadcast %c0_i32 : i32 to vector<8x1536xi32>
    %2 = arith.cmpi eq, %0, %1 : vector<8x1536xi32>
    %cst = arith.constant 1.000000e+00 : f32
    %cst_0 = arith.constant 0.000000e+00 : f32
    %3 = vector.broadcast %cst : f32 to vector<8x1536xf32>
    %4 = vector.broadcast %cst_0 : f32 to vector<8x1536xf32>
    %5 = arith.select %2, %3, %4 : vector<8x1536xi1>, vector<8x1536xf32>
    %6 = arith.truncf %5 : vector<8x1536xf32> to vector<8x1536xbf16>
    %c72 = arith.constant 72 : index
    %c0 = arith.constant 0 : index
    %7 = vector.load %arg5[%c72, %c0] : memref<80x1536xbf16, #tpu.memory_space<vmem>>, vector<8x1536xbf16>
    tpu.vector_store %arg5[%c72, %c0], %6 {strides = array<i32>} : memref<80x1536xbf16, #tpu.memory_space<vmem>>, vector<8x1536xbf16>,
    %cst_1 = arith.constant 0.000000e+00 : bf16
    %8 = vector.broadcast %cst_1 : bf16 to vector<8x256xbf16>
    %c0_2 = arith.constant 0 : index
    %c0_3 = arith.constant 0 : index
    %9 = vector.load %arg6[%c0_2, %c0_3] : memref<8x1792xbf16, #tpu.memory_space<vmem>>, vector<8x256xbf16>
    tpu.vector_store %arg6[%c0_2, %c0_3], %8 {strides = array<i32>} : memref<8x1792xbf16, #tpu.memory_space<vmem>>, vector<8x256xbf16>,
    %cst_4 = arith.constant 0.000000e+00 : bf16
    %10 = vector.broadcast %cst_4 : bf16 to vector<8x256xbf16>
    %c0_5 = arith.constant 0 : index
    %c1536 = arith.constant 1536 : index
    %11 = vector.load %arg6[%c0_5, %c1536] : memref<8x1792xbf16, #tpu.memory_space<vmem>>, vector<8x256xbf16>
    tpu.vector_store %arg6[%c0_5, %c1536], %10 {strides = array<i32>} : memref<8x1792xbf16, #tpu.memory_space<vmem>>, vector<8x256xbf16>,
    %12 = tpu.iota {dimensions = array<i32: 1>} : vector<1x1280xi32>
    %13 = arith.sitofp %12 : vector<1x1280xi32> to vector<1x1280xf32>
    %cst_6 = arith.constant 5.000000e-01 : f32
    %14 = vector.broadcast %cst_6 : f32 to vector<1x1280xf32>
    %15 = arith.addf %13, %14 : vector<1x1280xf32>
    %cst_7 = arith.constant 7.812500e-03 : f32
    %16 = vector.broadcast %cst_7 : f32 to vector<1x1280xf32>
    %17 = arith.mulf %15, %16 : vector<1x1280xf32>
    %18 = math.floor %17 : vector<1x1280xf32>
    %19 = arith.fptosi %18 : vector<1x1280xf32> to vector<1x1280xi32>
    %c128_i32 = arith.constant 128 : i32
    %20 = vector.broadcast %c128_i32 : i32 to vector<1x1280xi32>
    %21 = arith.muli %19, %20 : vector<1x1280xi32>
    %22 = arith.subi %12, %21 : vector<1x1280xi32>
    %23 = arith.sitofp %22 : vector<1x1280xi32> to vector<1x1280xf32>
    %cst_8 = arith.constant 5.000000e-01 : f32
    %24 = vector.broadcast %cst_8 : f32 to vector<1x1280xf32>
    %25 = arith.addf %23, %24 : vector<1x1280xf32>
    %cst_9 = arith.constant 1.000000e-01 : f32
    %26 = vector.broadcast %cst_9 : f32 to vector<1x1280xf32>
    %27 = arith.mulf %25, %26 : vector<1x1280xf32>
    %28 = math.floor %27 : vector<1x1280xf32>
    %29 = arith.fptosi %28 : vector<1x1280xf32> to vector<1x1280xi32>
    %c10_i32 = arith.constant 10 : i32
    %30 = vector.broadcast %c10_i32 : i32 to vector<1x1280xi32>
    %31 = arith.muli %29, %30 : vector<1x1280xi32>
    %32 = arith.subi %22, %31 : vector<1x1280xi32>
    %c1_i32 = arith.constant 1 : i32
    %33 = vector.broadcast %c1_i32 : i32 to vector<1x1280xi32>
    %34 = arith.cmpi sge, %19, %33 : vector<1x1280xi32>
    %c8_i32 = arith.constant 8 : i32
    %35 = vector.broadcast %c8_i32 : i32 to vector<1x1280xi32>
    %36 = arith.cmpi sle, %19, %35 : vector<1x1280xi32>
    %37 = arith.andi %34, %36 : vector<1x1280xi1>
    %c100_i32 = arith.constant 100 : i32
    %38 = vector.broadcast %c100_i32 : i32 to vector<1x1280xi32>
    %39 = arith.cmpi slt, %22, %38 : vector<1x1280xi32>
    %40 = arith.andi %37, %39 : vector<1x1280xi1>
    %c1_i32_10 = arith.constant 1 : i32
    %41 = vector.broadcast %c1_i32_10 : i32 to vector<1x1280xi32>
    %42 = arith.cmpi sge, %29, %41 : vector<1x1280xi32>
    %43 = arith.andi %40, %42 : vector<1x1280xi1>
    %c8_i32_11 = arith.constant 8 : i32
    %44 = vector.broadcast %c8_i32_11 : i32 to vector<1x1280xi32>
    %45 = arith.cmpi sle, %29, %44 : vector<1x1280xi32>
    %46 = arith.andi %43, %45 : vector<1x1280xi1>
    %c1_i32_12 = arith.constant 1 : i32
    %47 = vector.broadcast %c1_i32_12 : i32 to vector<1x1280xi32>
    %48 = arith.cmpi sge, %32, %47 : vector<1x1280xi32>
    %49 = arith.andi %46, %48 : vector<1x1280xi1>
    %c8_i32_13 = arith.constant 8 : i32
    %50 = vector.broadcast %c8_i32_13 : i32 to vector<1x1280xi32>
    %51 = arith.cmpi sle, %32, %50 : vector<1x1280xi32>
    %52 = arith.andi %49, %51 : vector<1x1280xi1>
    %c0_14 = arith.constant 0 : index
    %c0_15 = arith.constant 0 : index
    %c117 = arith.constant 117 : index
    %53 = vector.load %arg1[%c0_14, %c0_15, %c117] : memref<1x8x1792xbf16, #tpu.memory_space<vmem>>, vector<1x8x1536xbf16>
    %54 = vector.shape_cast %53 : vector<1x8x1536xbf16> to vector<8x1536xbf16>
    %c0_16 = arith.constant 0 : index
    %c0_17 = arith.constant 0 : index
    %55 = vector.load %arg5[%c0_16, %c0_17] : memref<80x1536xbf16, #tpu.memory_space<vmem>>, vector<8x1536xbf16>
    tpu.vector_store %arg5[%c0_16, %c0_17], %54 {strides = array<i32>} : memref<80x1536xbf16, #tpu.memory_space<vmem>>, vector<8x1536xbf16>,
    %c0_18 = arith.constant 0 : index
    %c0_19 = arith.constant 0 : index
    %c118 = arith.constant 118 : index
    %56 = vector.load %arg1[%c0_18, %c0_19, %c118] : memref<1x8x1792xbf16, #tpu.memory_space<vmem>>, vector<1x8x1536xbf16>
    %57 = vector.shape_cast %56 : vector<1x8x1536xbf16> to vector<8x1536xbf16>
    %c8 = arith.constant 8 : index
    %c0_20 = arith.constant 0 : index
    %58 = vector.load %arg5[%c8, %c0_20] : memref<80x1536xbf16, #tpu.memory_space<vmem>>, vector<8x1536xbf16>
    tpu.vector_store %arg5[%c8, %c0_20], %57 {strides = array<i32>} : memref<80x1536xbf16, #tpu.memory_space<vmem>>, vector<8x1536xbf16>,
    %c0_21 = arith.constant 0 : index
    %c0_22 = arith.constant 0 : index
    %c119 = arith.constant 119 : index
    %59 = vector.load %arg1[%c0_21, %c0_22, %c119] : memref<1x8x1792xbf16, #tpu.memory_space<vmem>>, vector<1x8x1536xbf16>
    %60 = vector.shape_cast %59 : vector<1x8x1536xbf16> to vector<8x1536xbf16>
    %c16 = arith.constant 16 : index
    %c0_23 = arith.constant 0 : index
    %61 = vector.load %arg5[%c16, %c0_23] : memref<80x1536xbf16, #tpu.memory_space<vmem>>, vector<8x1536xbf16>
    tpu.vector_store %arg5[%c16, %c0_23], %60 {strides = array<i32>} : memref<80x1536xbf16, #tpu.memory_space<vmem>>, vector<8x1536xbf16>,
    %c0_24 = arith.constant 0 : index
    %c0_25 = arith.constant 0 : index
    %c127 = arith.constant 127 : index
    %62 = vector.load %arg1[%c0_24, %c0_25, %c127] : memref<1x8x1792xbf16, #tpu.memory_space<vmem>>, vector<1x8x1536xbf16>
    %63 = vector.shape_cast %62 : vector<1x8x1536xbf16> to vector<8x1536xbf16>
    %c24 = arith.constant 24 : index
    %c0_26 = arith.constant 0 : index
    %64 = vector.load %arg5[%c24, %c0_26] : memref<80x1536xbf16, #tpu.memory_space<vmem>>, vector<8x1536xbf16>
    tpu.vector_store %arg5[%c24, %c0_26], %63 {strides = array<i32>} : memref<80x1536xbf16, #tpu.memory_space<vmem>>, vector<8x1536xbf16>,
    %c0_27 = arith.constant 0 : index
    %c0_28 = arith.constant 0 : index
    %c128 = arith.constant 128 : index
    %65 = vector.load %arg1[%c0_27, %c0_28, %c128] : memref<1x8x1792xbf16, #tpu.memory_space<vmem>>, vector<1x8x1536xbf16>
    %66 = vector.shape_cast %65 : vector<1x8x1536xbf16> to vector<8x1536xbf16>
    %c32 = arith.constant 32 : index
    %c0_29 = arith.constant 0 : index
    %67 = vector.load %arg5[%c32, %c0_29] : memref<80x1536xbf16, #tpu.memory_space<vmem>>, vector<8x1536xbf16>
    tpu.vector_store %arg5[%c32, %c0_29], %66 {strides = array<i32>} : memref<80x1536xbf16, #tpu.memory_space<vmem>>, vector<8x1536xbf16>,
    %c0_30 = arith.constant 0 : index
    %c0_31 = arith.constant 0 : index
    %c129 = arith.constant 129 : index
    %68 = vector.load %arg1[%c0_30, %c0_31, %c129] : memref<1x8x1792xbf16, #tpu.memory_space<vmem>>, vector<1x8x1536xbf16>
    %69 = vector.shape_cast %68 : vector<1x8x1536xbf16> to vector<8x1536xbf16>
    %c40 = arith.constant 40 : index
    %c0_32 = arith.constant 0 : index
    %70 = vector.load %arg5[%c40, %c0_32] : memref<80x1536xbf16, #tpu.memory_space<vmem>>, vector<8x1536xbf16>
    tpu.vector_store %arg5[%c40, %c0_32], %69 {strides = array<i32>} : memref<80x1536xbf16, #tpu.memory_space<vmem>>, vector<8x1536xbf16>,
    %c0_33 = arith.constant 0 : index
    %c0_34 = arith.constant 0 : index
    %c137 = arith.constant 137 : index
    %71 = vector.load %arg1[%c0_33, %c0_34, %c137] : memref<1x8x1792xbf16, #tpu.memory_space<vmem>>, vector<1x8x1536xbf16>
    %72 = vector.shape_cast %71 : vector<1x8x1536xbf16> to vector<8x1536xbf16>
    %c48 = arith.constant 48 : index
    %c0_35 = arith.constant 0 : index
    %73 = vector.load %arg5[%c48, %c0_35] : memref<80x1536xbf16, #tpu.memory_space<vmem>>, vector<8x1536xbf16>
    tpu.vector_store %arg5[%c48, %c0_35], %72 {strides = array<i32>} : memref<80x1536xbf16, #tpu.memory_space<vmem>>, vector<8x1536xbf16>,
    %c0_36 = arith.constant 0 : index
    %c0_37 = arith.constant 0 : index
    %c138 = arith.constant 138 : index
    %74 = vector.load %arg1[%c0_36, %c0_37, %c138] : memref<1x8x1792xbf16, #tpu.memory_space<vmem>>, vector<1x8x1536xbf16>
    %75 = vector.shape_cast %74 : vector<1x8x1536xbf16> to vector<8x1536xbf16>
    %c56 = arith.constant 56 : index
    %c0_38 = arith.constant 0 : index
    %76 = vector.load %arg5[%c56, %c0_38] : memref<80x1536xbf16, #tpu.memory_space<vmem>>, vector<8x1536xbf16>
    tpu.vector_store %arg5[%c56, %c0_38], %75 {strides = array<i32>} : memref<80x1536xbf16, #tpu.memory_space<vmem>>, vector<8x1536xbf16>,
    %c0_39 = arith.constant 0 : index
    %c0_40 = arith.constant 0 : index
    %c139 = arith.constant 139 : index
    %77 = vector.load %arg1[%c0_39, %c0_40, %c139] : memref<1x8x1792xbf16, #tpu.memory_space<vmem>>, vector<1x8x1536xbf16>
    %78 = vector.shape_cast %77 : vector<1x8x1536xbf16> to vector<8x1536xbf16>
    %c64 = arith.constant 64 : index
    %c0_41 = arith.constant 0 : index
    %79 = vector.load %arg5[%c64, %c0_41] : memref<80x1536xbf16, #tpu.memory_space<vmem>>, vector<8x1536xbf16>
    tpu.vector_store %arg5[%c64, %c0_41], %78 {strides = array<i32>} : memref<80x1536xbf16, #tpu.memory_space<vmem>>, vector<8x1536xbf16>,
    %cst_42 = arith.constant 0.000000e+00 : f32
    %80 = vector.broadcast %cst_42 : f32 to vector<8x1280xf32>
    %c0_43 = arith.constant 0 : index
    %c0_44 = arith.constant 0 : index
    %c0_45 = arith.constant 0 : index
    %81 = vector.load %arg2[%c0_43, %c0_44, %c0_45] : memref<3x8x80xbf16, #tpu.memory_space<vmem>>, vector<1x8x80xbf16>
    %82 = vector.shape_cast %81 : vector<1x8x80xbf16> to vector<8x80xbf16>
    %c0_46 = arith.constant 0 : index
    %c0_47 = arith.constant 0 : index
    %83 = vector.load %arg5[%c0_46, %c0_47] : memref<80x1536xbf16, #tpu.memory_space<vmem>>, vector<80x1280xbf16>
    %cst_48 = arith.constant dense<0.000000e+00> : vector<8x1280xf32>
    %84 = tpu.matmul %82, %83, %cst_48 {dimension_numbers = #tpu.dot_dimension_numbers<[1], [0], [0], [1], [0, 0, 1, 1], [], []>} : vector<8x80xbf16>, vector<80x1280xbf16>, vector<8x1280xf32> -> vector<8x1280xf32>
    %85 = arith.addf %80, %84 : vector<8x1280xf32>
    %c1 = arith.constant 1 : index
    %c0_49 = arith.constant 0 : index
    %c0_50 = arith.constant 0 : index
    %86 = vector.load %arg2[%c1, %c0_49, %c0_50] : memref<3x8x80xbf16, #tpu.memory_space<vmem>>, vector<1x8x80xbf16>
    %87 = vector.shape_cast %86 : vector<1x8x80xbf16> to vector<8x80xbf16>
    %c0_51 = arith.constant 0 : index
    %c128_52 = arith.constant 128 : index
    %88 = vector.load %arg5[%c0_51, %c128_52] : memref<80x1536xbf16, #tpu.memory_space<vmem>>, vector<80x1280xbf16>
    %cst_53 = arith.constant dense<0.000000e+00> : vector<8x1280xf32>
    %89 = tpu.matmul %87, %88, %cst_53 {dimension_numbers = #tpu.dot_dimension_numbers<[1], [0], [0], [1], [0, 0, 1, 1], [], []>} : vector<8x80xbf16>, vector<80x1280xbf16>, vector<8x1280xf32> -> vector<8x1280xf32>
    %90 = arith.addf %85, %89 : vector<8x1280xf32>
    %c2 = arith.constant 2 : index
    %c0_54 = arith.constant 0 : index
    %c0_55 = arith.constant 0 : index
    %91 = vector.load %arg2[%c2, %c0_54, %c0_55] : memref<3x8x80xbf16, #tpu.memory_space<vmem>>, vector<1x8x80xbf16>
    %92 = vector.shape_cast %91 : vector<1x8x80xbf16> to vector<8x80xbf16>
    %c0_56 = arith.constant 0 : index
    %c256 = arith.constant 256 : index
    %93 = vector.load %arg5[%c0_56, %c256] : memref<80x1536xbf16, #tpu.memory_space<vmem>>, vector<80x1280xbf16>
    %cst_57 = arith.constant dense<0.000000e+00> : vector<8x1280xf32>
    %94 = tpu.matmul %92, %93, %cst_57 {dimension_numbers = #tpu.dot_dimension_numbers<[1], [0], [0], [1], [0, 0, 1, 1], [], []>} : vector<8x80xbf16>, vector<80x1280xbf16>, vector<8x1280xf32> -> vector<8x1280xf32>
    %95 = arith.addf %90, %94 : vector<8x1280xf32>
    %cst_58 = arith.constant 0.000000e+00 : f32
    %96 = vector.broadcast %cst_58 : f32 to vector<8x1280xf32>
    %97 = arith.maximumf %95, %96 : vector<8x1280xf32>
    %cst_59 = arith.constant 0.000000e+00 : f32
    %98 = vector.shape_cast %52 : vector<1x1280xi1> to vector<1x1280xi1>
    %99 = vector.broadcast %98 : vector<1x1280xi1> to vector<8x1280xi1>
    %100 = vector.broadcast %cst_59 : f32 to vector<8x1280xf32>
    %101 = arith.select %99, %97, %100 : vector<8x1280xi1>, vector<8x1280xf32>
    %102 = arith.truncf %101 : vector<8x1280xf32> to vector<8x1280xbf16>
    %c0_60 = arith.constant 0 : index
    %c256_61 = arith.constant 256 : index
    %103 = vector.load %arg6[%c0_60, %c256_61] : memref<8x1792xbf16, #tpu.memory_space<vmem>>, vector<8x1280xbf16>
    tpu.vector_store %arg6[%c0_60, %c256_61], %102 {strides = array<i32>} : memref<8x1792xbf16, #tpu.memory_space<vmem>>, vector<8x1280xbf16>,
    %c0_62 = arith.constant 0 : index
    %c117_63 = arith.constant 117 : index
    %104 = vector.load %arg6[%c0_62, %c117_63] : memref<8x1792xbf16, #tpu.memory_space<vmem>>, vector<8x1536xbf16>
    %c0_64 = arith.constant 0 : index
    %c0_65 = arith.constant 0 : index
    %105 = vector.load %arg5[%c0_64, %c0_65] : memref<80x1536xbf16, #tpu.memory_space<vmem>>, vector<8x1536xbf16>
    tpu.vector_store %arg5[%c0_64, %c0_65], %104 {strides = array<i32>} : memref<80x1536xbf16, #tpu.memory_space<vmem>>, vector<8x1536xbf16>,
    %c0_66 = arith.constant 0 : index
    %c118_67 = arith.constant 118 : index
    %106 = vector.load %arg6[%c0_66, %c118_67] : memref<8x1792xbf16, #tpu.memory_space<vmem>>, vector<8x1536xbf16>
    %c8_68 = arith.constant 8 : index
    %c0_69 = arith.constant 0 : index
    %107 = vector.load %arg5[%c8_68, %c0_69] : memref<80x1536xbf16, #tpu.memory_space<vmem>>, vector<8x1536xbf16>
    tpu.vector_store %arg5[%c8_68, %c0_69], %106 {strides = array<i32>} : memref<80x1536xbf16, #tpu.memory_space<vmem>>, vector<8x1536xbf16>,
    %c0_70 = arith.constant 0 : index
    %c119_71 = arith.constant 119 : index
    %108 = vector.load %arg6[%c0_70, %c119_71] : memref<8x1792xbf16, #tpu.memory_space<vmem>>, vector<8x1536xbf16>
    %c16_72 = arith.constant 16 : index
    %c0_73 = arith.constant 0 : index
    %109 = vector.load %arg5[%c16_72, %c0_73] : memref<80x1536xbf16, #tpu.memory_space<vmem>>, vector<8x1536xbf16>
    tpu.vector_store %arg5[%c16_72, %c0_73], %108 {strides = array<i32>} : memref<80x1536xbf16, #tpu.memory_space<vmem>>, vector<8x1536xbf16>,
    %c0_74 = arith.constant 0 : index
    %c127_75 = arith.constant 127 : index
    %110 = vector.load %arg6[%c0_74, %c127_75] : memref<8x1792xbf16, #tpu.memory_space<vmem>>, vector<8x1536xbf16>
    %c24_76 = arith.constant 24 : index
    %c0_77 = arith.constant 0 : index
    %111 = vector.load %arg5[%c24_76, %c0_77] : memref<80x1536xbf16, #tpu.memory_space<vmem>>, vector<8x1536xbf16>
    tpu.vector_store %arg5[%c24_76, %c0_77], %110 {strides = array<i32>} : memref<80x1536xbf16, #tpu.memory_space<vmem>>, vector<8x1536xbf16>,
    %c0_78 = arith.constant 0 : index
    %c128_79 = arith.constant 128 : index
    %112 = vector.load %arg6[%c0_78, %c128_79] : memref<8x1792xbf16, #tpu.memory_space<vmem>>, vector<8x1536xbf16>
    %c32_80 = arith.constant 32 : index
    %c0_81 = arith.constant 0 : index
    %113 = vector.load %arg5[%c32_80, %c0_81] : memref<80x1536xbf16, #tpu.memory_space<vmem>>, vector<8x1536xbf16>
    tpu.vector_store %arg5[%c32_80, %c0_81], %112 {strides = array<i32>} : memref<80x1536xbf16, #tpu.memory_space<vmem>>, vector<8x1536xbf16>,
    %c0_82 = arith.constant 0 : index
    %c129_83 = arith.constant 129 : index
    %114 = vector.load %arg6[%c0_82, %c129_83] : memref<8x1792xbf16, #tpu.memory_space<vmem>>, vector<8x1536xbf16>
    %c40_84 = arith.constant 40 : index
    %c0_85 = arith.constant 0 : index
    %115 = vector.load %arg5[%c40_84, %c0_85] : memref<80x1536xbf16, #tpu.memory_space<vmem>>, vector<8x1536xbf16>
    tpu.vector_store %arg5[%c40_84, %c0_85], %114 {strides = array<i32>} : memref<80x1536xbf16, #tpu.memory_space<vmem>>, vector<8x1536xbf16>,
    %c0_86 = arith.constant 0 : index
    %c137_87 = arith.constant 137 : index
    %116 = vector.load %arg6[%c0_86, %c137_87] : memref<8x1792xbf16, #tpu.memory_space<vmem>>, vector<8x1536xbf16>
    %c48_88 = arith.constant 48 : index
    %c0_89 = arith.constant 0 : index
    %117 = vector.load %arg5[%c48_88, %c0_89] : memref<80x1536xbf16, #tpu.memory_space<vmem>>, vector<8x1536xbf16>
    tpu.vector_store %arg5[%c48_88, %c0_89], %116 {strides = array<i32>} : memref<80x1536xbf16, #tpu.memory_space<vmem>>, vector<8x1536xbf16>,
    %c0_90 = arith.constant 0 : index
    %c138_91 = arith.constant 138 : index
    %118 = vector.load %arg6[%c0_90, %c138_91] : memref<8x1792xbf16, #tpu.memory_space<vmem>>, vector<8x1536xbf16>
    %c56_92 = arith.constant 56 : index
    %c0_93 = arith.constant 0 : index
    %119 = vector.load %arg5[%c56_92, %c0_93] : memref<80x1536xbf16, #tpu.memory_space<vmem>>, vector<8x1536xbf16>
    tpu.vector_store %arg5[%c56_92, %c0_93], %118 {strides = array<i32>} : memref<80x1536xbf16, #tpu.memory_space<vmem>>, vector<8x1536xbf16>,
    %c0_94 = arith.constant 0 : index
    %c139_95 = arith.constant 139 : index
    %120 = vector.load %arg6[%c0_94, %c139_95] : memref<8x1792xbf16, #tpu.memory_space<vmem>>, vector<8x1536xbf16>
    %c64_96 = arith.constant 64 : index
    %c0_97 = arith.constant 0 : index
    %121 = vector.load %arg5[%c64_96, %c0_97] : memref<80x1536xbf16, #tpu.memory_space<vmem>>, vector<8x1536xbf16>
    tpu.vector_store %arg5[%c64_96, %c0_97], %120 {strides = array<i32>} : memref<80x1536xbf16, #tpu.memory_space<vmem>>, vector<8x1536xbf16>,
    %cst_98 = arith.constant 0.000000e+00 : f32
    %122 = vector.broadcast %cst_98 : f32 to vector<8x1280xf32>
    %c0_99 = arith.constant 0 : index
    %c0_100 = arith.constant 0 : index
    %c0_101 = arith.constant 0 : index
    %123 = vector.load %arg3[%c0_99, %c0_100, %c0_101] : memref<3x8x80xbf16, #tpu.memory_space<vmem>>, vector<1x8x80xbf16>
    %124 = vector.shape_cast %123 : vector<1x8x80xbf16> to vector<8x80xbf16>
    %c0_102 = arith.constant 0 : index
    %c0_103 = arith.constant 0 : index
    %125 = vector.load %arg5[%c0_102, %c0_103] : memref<80x1536xbf16, #tpu.memory_space<vmem>>, vector<80x1280xbf16>
    %cst_104 = arith.constant dense<0.000000e+00> : vector<8x1280xf32>
    %126 = tpu.matmul %124, %125, %cst_104 {dimension_numbers = #tpu.dot_dimension_numbers<[1], [0], [0], [1], [0, 0, 1, 1], [], []>} : vector<8x80xbf16>, vector<80x1280xbf16>, vector<8x1280xf32> -> vector<8x1280xf32>
    %127 = arith.addf %122, %126 : vector<8x1280xf32>
    %c1_105 = arith.constant 1 : index
    %c0_106 = arith.constant 0 : index
    %c0_107 = arith.constant 0 : index
    %128 = vector.load %arg3[%c1_105, %c0_106, %c0_107] : memref<3x8x80xbf16, #tpu.memory_space<vmem>>, vector<1x8x80xbf16>
    %129 = vector.shape_cast %128 : vector<1x8x80xbf16> to vector<8x80xbf16>
    %c0_108 = arith.constant 0 : index
    %c128_109 = arith.constant 128 : index
    %130 = vector.load %arg5[%c0_108, %c128_109] : memref<80x1536xbf16, #tpu.memory_space<vmem>>, vector<80x1280xbf16>
    %cst_110 = arith.constant dense<0.000000e+00> : vector<8x1280xf32>
    %131 = tpu.matmul %129, %130, %cst_110 {dimension_numbers = #tpu.dot_dimension_numbers<[1], [0], [0], [1], [0, 0, 1, 1], [], []>} : vector<8x80xbf16>, vector<80x1280xbf16>, vector<8x1280xf32> -> vector<8x1280xf32>
    %132 = arith.addf %127, %131 : vector<8x1280xf32>
    %c2_111 = arith.constant 2 : index
    %c0_112 = arith.constant 0 : index
    %c0_113 = arith.constant 0 : index
    %133 = vector.load %arg3[%c2_111, %c0_112, %c0_113] : memref<3x8x80xbf16, #tpu.memory_space<vmem>>, vector<1x8x80xbf16>
    %134 = vector.shape_cast %133 : vector<1x8x80xbf16> to vector<8x80xbf16>
    %c0_114 = arith.constant 0 : index
    %c256_115 = arith.constant 256 : index
    %135 = vector.load %arg5[%c0_114, %c256_115] : memref<80x1536xbf16, #tpu.memory_space<vmem>>, vector<80x1280xbf16>
    %cst_116 = arith.constant dense<0.000000e+00> : vector<8x1280xf32>
    %136 = tpu.matmul %134, %135, %cst_116 {dimension_numbers = #tpu.dot_dimension_numbers<[1], [0], [0], [1], [0, 0, 1, 1], [], []>} : vector<8x80xbf16>, vector<80x1280xbf16>, vector<8x1280xf32> -> vector<8x1280xf32>
    %137 = arith.addf %132, %136 : vector<8x1280xf32>
    %c0_117 = arith.constant 0 : index
    %c0_118 = arith.constant 0 : index
    %c256_119 = arith.constant 256 : index
    %138 = vector.load %arg1[%c0_117, %c0_118, %c256_119] : memref<1x8x1792xbf16, #tpu.memory_space<vmem>>, vector<1x8x1280xbf16>
    %139 = vector.shape_cast %138 : vector<1x8x1280xbf16> to vector<8x1280xbf16>
    %140 = arith.extf %139 : vector<8x1280xbf16> to vector<8x1280xf32>
    %141 = arith.addf %137, %140 : vector<8x1280xf32>
    %cst_120 = arith.constant 0.000000e+00 : f32
    %142 = vector.broadcast %cst_120 : f32 to vector<8x1280xf32>
    %143 = arith.maximumf %141, %142 : vector<8x1280xf32>
    %cst_121 = arith.constant 0.000000e+00 : f32
    %144 = vector.shape_cast %52 : vector<1x1280xi1> to vector<1x1280xi1>
    %145 = vector.broadcast %144 : vector<1x1280xi1> to vector<8x1280xi1>
    %146 = vector.broadcast %cst_121 : f32 to vector<8x1280xf32>
    %147 = arith.select %145, %143, %146 : vector<8x1280xi1>, vector<8x1280xf32>
    %148 = arith.truncf %147 : vector<8x1280xf32> to vector<8x1280xbf16>
    %c0_122 = arith.constant 0 : index
    %c0_123 = arith.constant 0 : index
    %c0_124 = arith.constant 0 : index
    %149 = vector.load %arg4[%c0_122, %c0_123, %c0_124] : memref<1x8x1280xbf16, #tpu.memory_space<vmem>>, vector<1x8x1280xbf16>
    %150 = vector.shape_cast %149 : vector<1x8x1280xbf16> to vector<8x1280xbf16>
    %151 = vector.shape_cast %148 : vector<8x1280xbf16> to vector<1x8x1280xbf16>
    tpu.vector_store %arg4[%c0_122, %c0_123, %c0_124], %151 {strides = array<i32>} : memref<1x8x1280xbf16, #tpu.memory_space<vmem>>, vector<1x8x1280xbf16>,
    return
  }
  func.func @transform_0(%arg0: i32) -> (i32, i32, i32) {
    %c0_i32 = arith.constant 0 : i32
    %c0_i32_0 = arith.constant 0 : i32
    %c0_i32_1 = arith.constant 0 : i32
    return %arg0, %c0_i32, %c0_i32_0 : i32, i32, i32
  }
  func.func @transform_1(%arg0: i32) -> (i32, i32, i32) {
    %c0_i32 = arith.constant 0 : i32
    %c0_i32_0 = arith.constant 0 : i32
    %c0_i32_1 = arith.constant 0 : i32
    %c0_i32_2 = arith.constant 0 : i32
    return %c0_i32, %c0_i32_0, %c0_i32_1 : i32, i32, i32
  }
  func.func @transform_2(%arg0: i32) -> (i32, i32, i32) {
    %c0_i32 = arith.constant 0 : i32
    %c0_i32_0 = arith.constant 0 : i32
    %c0_i32_1 = arith.constant 0 : i32
    %c0_i32_2 = arith.constant 0 : i32
    return %c0_i32, %c0_i32_0, %c0_i32_1 : i32, i32, i32
  }
  func.func @transform_3(%arg0: i32) -> (i32, i32, i32) {
    %c0_i32 = arith.constant 0 : i32
    %c0_i32_0 = arith.constant 0 : i32
    %c0_i32_1 = arith.constant 0 : i32
    return %arg0, %c0_i32, %c0_i32_0 : i32, i32, i32
  }
}

</mosaic_0001>

<llo_original>
// kernel: basic_block_forward.1
$region0: #{basic_block_forward.1}
  #allocation0 [shape = 'u32[]', space=smem, size = 0x4, offset = 0x4, fixed_abs, tag = 'smem constant byte address 0x4 - core index']
  #allocation1 [shape = 'u32[144,128]{1,0:T(1,128)}', space=vmem, size = 0x12000, scoped, tag = 'internal scratch']
  #allocation2 [shape = 'bf16[80,1536]{1,0:T(8,128)(2,1)}', space=vmem, size = 0x3c000, scoped, tag = 'scratch operand']
  #allocation3 [shape = 'bf16[8,1792]{1,0:T(8,128)(2,1)}', space=vmem, size = 0x7000, scoped, tag = 'scratch operand']
  %s0 = inlined_call_operand.vmem [shape: bf16[2,8,1792], index: 0, kind: input, shape index: {}]
  %s1 = inlined_call_operand.vmem [shape: bf16[3,8,80], index: 1, kind: input, shape index: {}]
  %s2 = inlined_call_operand.vmem [shape: bf16[3,8,80], index: 2, kind: input, shape index: {}]
  %s3 = inlined_call_operand.vmem [shape: bf16[2,8,1280], index: 3, kind: output, shape index: {}]
  %s4 = sld [smem:[#allocation0]]
  $region45: #{basic_block_forward.1} parent=0
    _
  %s6 = ssub.s32 1, %s4
  %s7 = scalar_select 0, %s6, %s4
  loop: start=0, step=1, limit=4
  $region2: #{basic_block_forward.1} parent=0 // loop_pre_header
    _
  $region3: #{basic_block_forward.1} parent=0 // loop_header
    %s9 = sphi 0, %s13
    %p10 = scmp.ge.s32.totalorder %s9, 4
    %s19 = sphi 0, %s21
    %s22 = sphi 0, %s19
    %s23 = sphi 0, %s22
    %s39 = sphi 0, %s23
    %s43 = sphi 0, %s43
    %s45 = sphi 0, %s43
    %s46 = sphi 0, %s45
    %s60 = sphi 0, %s46
    %s64 = sphi 0, %s64
    %s66 = sphi 0, %s64
    %s67 = sphi 0, %s66
    %s81 = sphi 0, %s67
    %s87 = sphi 0, %s89
    %s90 = sphi 0, %s87
    %s91 = sphi 0, %s90
    %s107 = sphi 0, %s91
  $region4: #{basic_block_forward.1} parent=0 // loop_header_branch
    %12 = sbr.rel (%p10) target = $region8
  $region5: #{basic_block_forward.1} parent=0 // loop_body
    %s14 = ssub.s32 %s9, 1
    %s15 = ssub.s32 %s9, 2
    %s16 = sadd.s32 %s9, 1
    %s17 = ssub.s32 %s9, %s16
    %p18 = scmp.eq.s32.totalorder %s17, 0
    %s20 = sadd.s32 %s19, 1
    %s21 = scalar_select %p18, %s19, %s20
    %p24 = pneg %p18
    %p25 = scmp.eq.s32.totalorder %s9, 1
    %p26 = por %p24, %p25
    %p27 = scmp.ne.s32.totalorder %s19, %s22
    %p28 = scmp.eq.s32.totalorder %s9, 0
    %p29 = por %p27, %p28
    %p30 = scmp.ne.s32.totalorder %s19, %s22
    %p31 = scmp.eq.s32.totalorder %s14, 1
    %p32 = por %p30, %p31
    %p33 = scmp.ne.s32.totalorder %s22, %s23
    %p34 = scmp.eq.s32.totalorder %s14, 0
    %p35 = por %p33, %p34
    %p36 = scmp.ne.s32.totalorder %s22, %s23
    %p37 = scmp.eq.s32.totalorder %s15, 1
    %p38 = por %p36, %p37
    %p40 = scmp.ne.s32.totalorder %s23, %s39
    %p41 = scmp.eq.s32.totalorder %s15, 0
    %p42 = por %p40, %p41
    %s44 = sadd.s32 %s43, 1
    %p47 = scmp.eq.s32.totalorder %s9, 1
    %p48 = scmp.ne.s32.totalorder %s43, %s45
    %p49 = scmp.eq.s32.totalorder %s9, 0
    %p50 = por %p48, %p49
    %p51 = scmp.ne.s32.totalorder %s43, %s45
    %p52 = scmp.eq.s32.totalorder %s14, 1
    %p53 = por %p51, %p52
    %p54 = scmp.ne.s32.totalorder %s45, %s46
    %p55 = scmp.eq.s32.totalorder %s14, 0
    %p56 = por %p54, %p55
    %p57 = scmp.ne.s32.totalorder %s45, %s46
    %p58 = scmp.eq.s32.totalorder %s15, 1
    %p59 = por %p57, %p58
    %p61 = scmp.ne.s32.totalorder %s46, %s60
    %p62 = scmp.eq.s32.totalorder %s15, 0
    %p63 = por %p61, %p62
    %s65 = sadd.s32 %s64, 1
    %p68 = scmp.eq.s32.totalorder %s9, 1
    %p69 = scmp.ne.s32.totalorder %s64, %s66
    %p70 = scmp.eq.s32.totalorder %s9, 0
    %p71 = por %p69, %p70
    %p72 = scmp.ne.s32.totalorder %s64, %s66
    %p73 = scmp.eq.s32.totalorder %s14, 1
    %p74 = por %p72, %p73
    %p75 = scmp.ne.s32.totalorder %s66, %s67
    %p76 = scmp.eq.s32.totalorder %s14, 0
    %p77 = por %p75, %p76
    %p78 = scmp.ne.s32.totalorder %s66, %s67
    %p79 = scmp.eq.s32.totalorder %s15, 1
    %p80 = por %p78, %p79
    %p82 = scmp.ne.s32.totalorder %s67, %s81
    %p83 = scmp.eq.s32.totalorder %s15, 0
    %p84 = por %p82, %p83
    %s85 = ssub.s32 %s9, %s16
    %p86 = scmp.eq.s32.totalorder %s85, 0
    %s88 = sadd.s32 %s87, 1
    %s89 = scalar_select %p86, %s87, %s88
    %p92 = pneg %p86
    %p93 = scmp.eq.s32.totalorder %s9, 1
    %p94 = por %p92, %p93
    %p95 = scmp.ne.s32.totalorder %s87, %s90
    %p96 = scmp.eq.s32.totalorder %s9, 0
    %p97 = por %p95, %p96
    %p98 = scmp.ne.s32.totalorder %s87, %s90
    %p99 = scmp.eq.s32.totalorder %s14, 1
    %p100 = por %p98, %p99
    %p101 = scmp.ne.s32.totalorder %s90, %s91
    %p102 = scmp.eq.s32.totalorder %s14, 0
    %p103 = por %p101, %p102
    %p104 = scmp.ne.s32.totalorder %s90, %s91
    %p105 = scmp.eq.s32.totalorder %s15, 1
    %p106 = por %p104, %p105
    %p108 = scmp.ne.s32.totalorder %s91, %s107
    %p109 = scmp.eq.s32.totalorder %s15, 0
    %p110 = por %p108, %p109
    %p111 = scmp.le.s32.totalorder 1, %s9
    %p112 = scmp.lt.s32.totalorder %s9, 3
    %p113 = pnand %p111, %p112
    %p114 = pneg %p113
    // Predicated region
    $region9: #{basic_block_forward.1} parent=5 // pred_check
      _
    $region10: #{basic_block_forward.1} parent=5 // pred_check_branch
      %116 = sbr.rel (%p113) target = $region12
    $region11: #{basic_block_forward.1} parent=5 // pred_region
      %s117 = ssub.s32 %s9, 1
      // Predicated region
      $region13: #{basic_block_forward.1} parent=11 // pred_check
        %p118 = pneg %p56
      $region14: #{basic_block_forward.1} parent=11 // pred_check_branch
        %120 = sbr.rel (%p118) target = $region16
      $region15: #{basic_block_forward.1} parent=11 // pred_region
        _
      $region16: #{basic_block_forward.1} parent=11 // pred_fallthru
        _
      // Predicated region
      $region17: #{basic_block_forward.1} parent=11 // pred_check
        %p121 = pneg %p77
      $region18: #{basic_block_forward.1} parent=11 // pred_check_branch
        %123 = sbr.rel (%p121) target = $region20
      $region19: #{basic_block_forward.1} parent=11 // pred_region
        _
      $region20: #{basic_block_forward.1} parent=11 // pred_fallthru
        _
    $region12: #{basic_block_forward.1} parent=5 // pred_fallthru
      _
    %p124 = scmp.lt.s32.totalorder %s9, 2
    // Predicated region
    $region21: #{basic_block_forward.1} parent=5 // pred_check
      %p125 = pneg %p124
    $region22: #{basic_block_forward.1} parent=5 // pred_check_branch
      %127 = sbr.rel (%p125) target = $region24
    $region23: #{basic_block_forward.1} parent=5 // pred_region
      // Predicated region
      $region25: #{basic_block_forward.1} parent=23 // pred_check
        %p128 = pneg %p29
      $region26: #{basic_block_forward.1} parent=23 // pred_check_branch
        %130 = sbr.rel (%p128) target = $region28
      $region27: #{basic_block_forward.1} parent=23 // pred_region
        %p131 = scmp.lt.s32.totalorder %s9, 1
        %s132 = scalar_select %p131, %s9, 1
        %s133 = smul.addr %s132, 14
        %s134 = smul.addr %s133, 4
        %s135 = scalar_lea.vmem %s0, %s134
      $region28: #{basic_block_forward.1} parent=23 // pred_fallthru
        _
    $region24: #{basic_block_forward.1} parent=5 // pred_fallthru
      _
    %p136 = scmp.le.s32.totalorder 1, %s9
    %p137 = scmp.lt.s32.totalorder %s9, 3
    %p138 = pnand %p136, %p137
    %p139 = pneg %p138
    // Predicated region
    $region29: #{basic_block_forward.1} parent=5 // pred_check
      _
    $region30: #{basic_block_forward.1} parent=5 // pred_check_branch
      %141 = sbr.rel (%p138) target = $region32
    $region31: #{basic_block_forward.1} parent=5 // pred_region
      %s142 = ssub.s32 %s9, 1
      %p143 = scmp.lt.s32.totalorder %s14, 1
      %s144 = scalar_select %p143, %s14, 1
      %s145 = smul.addr %s144, 14
      %s146 = smul.addr %s145, 4
      %s147 = scalar_lea.vmem %s0, %s146
      %p148 = pneg %p35
      %p149 = pneg %p32
      %p150 = pneg %p56
      %p151 = pneg %p53
      %p152 = pneg %p77
      %p153 = pneg %p74
      %p154 = pneg %p103
      %p155 = pneg %p100
      %p156 = scmp.lt.s32.totalorder %s14, 1
      %s157 = scalar_select %p156, %s14, 1
      %s158 = smul.addr %s157, 10
      %s159 = smul.addr %s158, 4
      %s160 = scalar_lea.vmem %s3, %s159
      %p161 = scmp.lt.s32.totalorder %s14, 1
      %s162 = scalar_select %p161, %s14, 1
      %s163 = smul.addr %s162, 14
      %s164 = smul.addr %s163, 4
      %s165 = scalar_lea.vmem %s0, %s164
      %p166 = scmp.lt.s32.totalorder %s14, 1
      %s167 = scalar_select %p166, %s14, 1
      %s168 = smul.addr %s167, 10
      %s169 = smul.addr %s168, 4
      %s170 = scalar_lea.vmem %s3, %s169
      %v172 = vlaneseq
      %v173 = vshrl.u32 %v172, 7
      %vm174 = vcmp.eq.s32.totalorder %v173, 0
      %v175 = vsel %vm174, 1.0, 0.0
      %v176 = vpack.c.bf16 %v175, %v175
      %v179 = vunpack.c.l.s4 839922192
      %v180 = vunpack.c.0.s8 %v179
      %v181 = vlaneseq
      %v182 = vshrl.u32 %v181, 7
      %v183 = vsub.s32 %v180, %v182
      %v184 = vrot.slane %v176, %v183
      %186 = vst [vmem:[#allocation2 + $0x1b0] sm:$0xff] %v184
      %187 = vst [vmem:[#allocation2 + $0x1b8] sm:$0xff] %v184
      %188 = vst [vmem:[#allocation2 + $0x1c0] sm:$0xff] %v184
      %189 = vst [vmem:[#allocation2 + $0x1c8] sm:$0xff] %v184
      %190 = vst [vmem:[#allocation2 + $0x1d0] sm:$0xff] %v184
      %191 = vst [vmem:[#allocation2 + $0x1d8] sm:$0xff] %v184
      %192 = vst [vmem:[#allocation3] sm:$0xff] 0
      %193 = vst [vmem:[#allocation3 + $0x30] sm:$0xff] 0
      %v194 = vlaneseq
      %v195 = vand.u32 %v194, 127
      %v196 = vadd.s32 %v195, 128
      %v197 = vadd.s32 %v195, 256
      %v198 = vadd.s32 %v195, 384
      %v199 = vadd.s32 %v195, 512
      %v200 = vadd.s32 %v195, 640
      %v201 = vadd.s32 %v195, 768
      %v202 = vadd.s32 %v195, 896
      %v203 = vadd.s32 %v195, 1024
      %v204 = vadd.s32 %v195, 1152
      %v205 = vcvt.s32.f32 %v195
      %v206 = vcvt.s32.f32 %v196
      %v207 = vcvt.s32.f32 %v197
      %v208 = vcvt.s32.f32 %v198
      %v209 = vcvt.s32.f32 %v199
      %v210 = vcvt.s32.f32 %v200
      %v211 = vcvt.s32.f32 %v201
      %v212 = vcvt.s32.f32 %v202
      %v213 = vcvt.s32.f32 %v203
      %v214 = vcvt.s32.f32 %v204
      %v215 = vadd.f32 %v205, 0.5
      %v216 = vadd.f32 %v206, 0.5
      %v217 = vadd.f32 %v207, 0.5
      %v218 = vadd.f32 %v208, 0.5
      %v219 = vadd.f32 %v209, 0.5
      %v220 = vadd.f32 %v210, 0.5
      %v221 = vadd.f32 %v211, 0.5
      %v222 = vadd.f32 %v212, 0.5
      %v223 = vadd.f32 %v213, 0.5
      %v224 = vadd.f32 %v214, 0.5
      %v225 = vmul.f32 %v215, 0.0078125
      %v226 = vmul.f32 %v216, 0.0078125
      %v227 = vmul.f32 %v217, 0.0078125
      %v228 = vmul.f32 %v218, 0.0078125
      %v229 = vmul.f32 %v219, 0.0078125
      %v230 = vmul.f32 %v220, 0.0078125
      %v231 = vmul.f32 %v221, 0.0078125
      %v232 = vmul.f32 %v222, 0.0078125
      %v233 = vmul.f32 %v223, 0.0078125
      %v234 = vmul.f32 %v224, 0.0078125
      %v235 = vfloor.f32 %v225
      %v236 = vfloor.f32 %v226
      %v237 = vfloor.f32 %v227
      %v238 = vfloor.f32 %v228
      %v239 = vfloor.f32 %v229
      %v240 = vfloor.f32 %v230
      %v241 = vfloor.f32 %v231
      %v242 = vfloor.f32 %v232
      %v243 = vfloor.f32 %v233
      %v244 = vfloor.f32 %v234
      %v245 = vcvt.f32.s32.to.zero.pseudo %v235
      %v246 = vcvt.f32.s32.to.zero.pseudo %v236
      %v247 = vcvt.f32.s32.to.zero.pseudo %v237
      %v248 = vcvt.f32.s32.to.zero.pseudo %v238
      %v249 = vcvt.f32.s32.to.zero.pseudo %v239
      %v250 = vcvt.f32.s32.to.zero.pseudo %v240
      %v251 = vcvt.f32.s32.to.zero.pseudo %v241
      %v252 = vcvt.f32.s32.to.zero.pseudo %v242
      %v253 = vcvt.f32.s32.to.zero.pseudo %v243
      %v254 = vcvt.f32.s32.to.zero.pseudo %v244
      %v255 = vmul.u32 %v245, 128
      %v256 = vmul.u32 %v246, 128
      %v257 = vmul.u32 %v247, 128
      %v258 = vmul.u32 %v248, 128
      %v259 = vmul.u32 %v249, 128
      %v260 = vmul.u32 %v250, 128
      %v261 = vmul.u32 %v251, 128
      %v262 = vmul.u32 %v252, 128
      %v263 = vmul.u32 %v253, 128
      %v264 = vmul.u32 %v254, 128
      %v265 = vsub.s32 %v195, %v255
      %v266 = vsub.s32 %v196, %v256
      %v267 = vsub.s32 %v197, %v257
      %v268 = vsub.s32 %v198, %v258
      %v269 = vsub.s32 %v199, %v259
      %v270 = vsub.s32 %v200, %v260
      %v271 = vsub.s32 %v201, %v261
      %v272 = vsub.s32 %v202, %v262
      %v273 = vsub.s32 %v203, %v263
      %v274 = vsub.s32 %v204, %v264
      %v275 = vcvt.s32.f32 %v265
      %v276 = vcvt.s32.f32 %v266
      %v277 = vcvt.s32.f32 %v267
      %v278 = vcvt.s32.f32 %v268
      %v279 = vcvt.s32.f32 %v269
      %v280 = vcvt.s32.f32 %v270
      %v281 = vcvt.s32.f32 %v271
      %v282 = vcvt.s32.f32 %v272
      %v283 = vcvt.s32.f32 %v273
      %v284 = vcvt.s32.f32 %v274
      %v285 = vadd.f32 %v275, 0.5
      %v286 = vadd.f32 %v276, 0.5
      %v287 = vadd.f32 %v277, 0.5
      %v288 = vadd.f32 %v278, 0.5
      %v289 = vadd.f32 %v279, 0.5
      %v290 = vadd.f32 %v280, 0.5
      %v291 = vadd.f32 %v281, 0.5
      %v292 = vadd.f32 %v282, 0.5
      %v293 = vadd.f32 %v283, 0.5
      %v294 = vadd.f32 %v284, 0.5
      %v295 = vmul.f32 %v285, 0.1
      %v296 = vmul.f32 %v286, 0.1
      %v297 = vmul.f32 %v287, 0.1
      %v298 = vmul.f32 %v288, 0.1
      %v299 = vmul.f32 %v289, 0.1
      %v300 = vmul.f32 %v290, 0.1
      %v301 = vmul.f32 %v291, 0.1
      %v302 = vmul.f32 %v292, 0.1
      %v303 = vmul.f32 %v293, 0.1
      %v304 = vmul.f32 %v294, 0.1
      %v305 = vfloor.f32 %v295
      %v306 = vfloor.f32 %v296
      %v307 = vfloor.f32 %v297
      %v308 = vfloor.f32 %v298
      %v309 = vfloor.f32 %v299
      %v310 = vfloor.f32 %v300
      %v311 = vfloor.f32 %v301
      %v312 = vfloor.f32 %v302
      %v313 = vfloor.f32 %v303
      %v314 = vfloor.f32 %v304
      %v315 = vcvt.f32.s32.to.zero.pseudo %v305
      %v316 = vcvt.f32.s32.to.zero.pseudo %v306
      %v317 = vcvt.f32.s32.to.zero.pseudo %v307
      %v318 = vcvt.f32.s32.to.zero.pseudo %v308
      %v319 = vcvt.f32.s32.to.zero.pseudo %v309
      %v320 = vcvt.f32.s32.to.zero.pseudo %v310
      %v321 = vcvt.f32.s32.to.zero.pseudo %v311
      %v322 = vcvt.f32.s32.to.zero.pseudo %v312
      %v323 = vcvt.f32.s32.to.zero.pseudo %v313
      %v324 = vcvt.f32.s32.to.zero.pseudo %v314
      %v325 = vmul.u32 %v315, 10
      %v326 = vmul.u32 %v316, 10
      %v327 = vmul.u32 %v317, 10
      %v328 = vmul.u32 %v318, 10
      %v329 = vmul.u32 %v319, 10
      %v330 = vmul.u32 %v320, 10
      %v331 = vmul.u32 %v321, 10
      %v332 = vmul.u32 %v322, 10
      %v333 = vmul.u32 %v323, 10
      %v334 = vmul.u32 %v324, 10
      %v335 = vsub.s32 %v265, %v325
      %v336 = vsub.s32 %v266, %v326
      %v337 = vsub.s32 %v267, %v327
      %v338 = vsub.s32 %v268, %v328
      %v339 = vsub.s32 %v269, %v329
      %v340 = vsub.s32 %v270, %v330
      %v341 = vsub.s32 %v271, %v331
      %v342 = vsub.s32 %v272, %v332
      %v343 = vsub.s32 %v273, %v333
      %v344 = vsub.s32 %v274, %v334
      %vm345 = vcmp.ge.s32.totalorder %v245, 1
      %vm346 = vcmp.ge.s32.totalorder %v246, 1
      %vm347 = vcmp.ge.s32.totalorder %v247, 1
      %vm348 = vcmp.ge.s32.totalorder %v248, 1
      %vm349 = vcmp.ge.s32.totalorder %v249, 1
      %vm350 = vcmp.ge.s32.totalorder %v250, 1
      %vm351 = vcmp.ge.s32.totalorder %v251, 1
      %vm352 = vcmp.ge.s32.totalorder %v252, 1
      %vm353 = vcmp.ge.s32.totalorder %v253, 1
      %vm354 = vcmp.ge.s32.totalorder %v254, 1
      %vm355 = vcmp.le.s32.totalorder %v245, 8
      %vm356 = vcmp.le.s32.totalorder %v246, 8
      %vm357 = vcmp.le.s32.totalorder %v247, 8
      %vm358 = vcmp.le.s32.totalorder %v248, 8
      %vm359 = vcmp.le.s32.totalorder %v249, 8
      %vm360 = vcmp.le.s32.totalorder %v250, 8
      %vm361 = vcmp.le.s32.totalorder %v251, 8
      %vm362 = vcmp.le.s32.totalorder %v252, 8
      %vm363 = vcmp.le.s32.totalorder %v253, 8
      %vm364 = vcmp.le.s32.totalorder %v254, 8
      %vm365 = vmand %vm345, %vm355
      %vm366 = vmand %vm346, %vm356
      %vm367 = vmand %vm347, %vm357
      %vm368 = vmand %vm348, %vm358
      %vm369 = vmand %vm349, %vm359
      %vm370 = vmand %vm350, %vm360
      %vm371 = vmand %vm351, %vm361
      %vm372 = vmand %vm352, %vm362
      %vm373 = vmand %vm353, %vm363
      %vm374 = vmand %vm354, %vm364
      %vm375 = vcmp.lt.s32.totalorder %v265, 100
      %vm376 = vcmp.lt.s32.totalorder %v266, 100
      %vm377 = vcmp.lt.s32.totalorder %v267, 100
      %vm378 = vcmp.lt.s32.totalorder %v268, 100
      %vm379 = vcmp.lt.s32.totalorder %v269, 100
      %vm380 = vcmp.lt.s32.totalorder %v270, 100
      %vm381 = vcmp.lt.s32.totalorder %v271, 100
      %vm382 = vcmp.lt.s32.totalorder %v272, 100
      %vm383 = vcmp.lt.s32.totalorder %v273, 100
      %vm384 = vcmp.lt.s32.totalorder %v274, 100
      %vm385 = vmand %vm365, %vm375
      %vm386 = vmand %vm366, %vm376
      %vm387 = vmand %vm367, %vm377
      %vm388 = vmand %vm368, %vm378
      %vm389 = vmand %vm369, %vm379
      %vm390 = vmand %vm370, %vm380
      %vm391 = vmand %vm371, %vm381
      %vm392 = vmand %vm372, %vm382
      %vm393 = vmand %vm373, %vm383
      %vm394 = vmand %vm374, %vm384
      %vm395 = vcmp.ge.s32.totalorder %v315, 1
      %vm396 = vcmp.ge.s32.totalorder %v316, 1
      %vm397 = vcmp.ge.s32.totalorder %v317, 1
      %vm398 = vcmp.ge.s32.totalorder %v318, 1
      %vm399 = vcmp.ge.s32.totalorder %v319, 1
      %vm400 = vcmp.ge.s32.totalorder %v320, 1
      %vm401 = vcmp.ge.s32.totalorder %v321, 1
      %vm402 = vcmp.ge.s32.totalorder %v322, 1
      %vm403 = vcmp.ge.s32.totalorder %v323, 1
      %vm404 = vcmp.ge.s32.totalorder %v324, 1
      %vm405 = vmand %vm385, %vm395
      %vm406 = vmand %vm386, %vm396
      %vm407 = vmand %vm387, %vm397
      %vm408 = vmand %vm388, %vm398
      %vm409 = vmand %vm389, %vm399
      %vm410 = vmand %vm390, %vm400
      %vm411 = vmand %vm391, %vm401
      %vm412 = vmand %vm392, %vm402
      %vm413 = vmand %vm393, %vm403
      %vm414 = vmand %vm394, %vm404
      %vm415 = vcmp.le.s32.totalorder %v315, 8
      %vm416 = vcmp.le.s32.totalorder %v316, 8
      %vm417 = vcmp.le.s32.totalorder %v317, 8
      %vm418 = vcmp.le.s32.totalorder %v318, 8
      %vm419 = vcmp.le.s32.totalorder %v319, 8
      %vm420 = vcmp.le.s32.totalorder %v320, 8
      %vm421 = vcmp.le.s32.totalorder %v321, 8
      %vm422 = vcmp.le.s32.totalorder %v322, 8
      %vm423 = vcmp.le.s32.totalorder %v323, 8
      %vm424 = vcmp.le.s32.totalorder %v324, 8
      %vm425 = vmand %vm405, %vm415
      %vm426 = vmand %vm406, %vm416
      %vm427 = vmand %vm407, %vm417
      %vm428 = vmand %vm408, %vm418
      %vm429 = vmand %vm409, %vm419
      %vm430 = vmand %vm410, %vm420
      %vm431 = vmand %vm411, %vm421
      %vm432 = vmand %vm412, %vm422
      %vm433 = vmand %vm413, %vm423
      %vm434 = vmand %vm414, %vm424
      %vm435 = vcmp.ge.s32.totalorder %v335, 1
      %vm436 = vcmp.ge.s32.totalorder %v336, 1
      %vm437 = vcmp.ge.s32.totalorder %v337, 1
      %vm438 = vcmp.ge.s32.totalorder %v338, 1
      %vm439 = vcmp.ge.s32.totalorder %v339, 1
      %vm440 = vcmp.ge.s32.totalorder %v340, 1
      %vm441 = vcmp.ge.s32.totalorder %v341, 1
      %vm442 = vcmp.ge.s32.totalorder %v342, 1
      %vm443 = vcmp.ge.s32.totalorder %v343, 1
      %vm444 = vcmp.ge.s32.totalorder %v344, 1
      %vm445 = vmand %vm425, %vm435
      %vm446 = vmand %vm426, %vm436
      %vm447 = vmand %vm427, %vm437
      %vm448 = vmand %vm428, %vm438
      %vm449 = vmand %vm429, %vm439
      %vm450 = vmand %vm430, %vm440
      %vm451 = vmand %vm431, %vm441
      %vm452 = vmand %vm432, %vm442
      %vm453 = vmand %vm433, %vm443
      %vm454 = vmand %vm434, %vm444
      %vm455 = vcmp.le.s32.totalorder %v335, 8
      %vm456 = vcmp.le.s32.totalorder %v336, 8
      %vm457 = vcmp.le.s32.totalorder %v337, 8
      %vm458 = vcmp.le.s32.totalorder %v338, 8
      %vm459 = vcmp.le.s32.totalorder %v339, 8
      %vm460 = vcmp.le.s32.totalorder %v340, 8
      %vm461 = vcmp.le.s32.totalorder %v341, 8
      %vm462 = vcmp.le.s32.totalorder %v342, 8
      %vm463 = vcmp.le.s32.totalorder %v343, 8
      %vm464 = vcmp.le.s32.totalorder %v344, 8
      %vm465 = vmand %vm445, %vm455
      %vm466 = vmand %vm446, %vm456
      %vm467 = vmand %vm447, %vm457
      %vm468 = vmand %vm448, %vm458
      %vm469 = vmand %vm449, %vm459
      %vm470 = vmand %vm450, %vm460
      %vm471 = vmand %vm451, %vm461
      %vm472 = vmand %vm452, %vm462
      %vm473 = vmand %vm453, %vm463
      %vm474 = vmand %vm454, %vm464
      %v475 = vld [vmem:[%s165] sm:$0xff]
      %v476 = vld [vmem:[%s165 + $0x8] sm:$0xff]
      %v477 = vld [vmem:[%s165 + $0x10] sm:$0xff]
      %v478 = vld [vmem:[%s165 + $0x18] sm:$0xff]
      %v479 = vld [vmem:[%s165 + $0x20] sm:$0xff]
      %v480 = vld [vmem:[%s165 + $0x28] sm:$0xff]
      %v481 = vld [vmem:[%s165 + $0x30] sm:$0xf]
      %489 = vrot.lane.b32.xlu0 %v475, 11
      %v490 = vpop.permute.xlu0 %489
      %491 = vrot.lane.b32.xlu0 %v476, 11
      %v492 = vpop.permute.xlu0 %491
      %493 = vrot.lane.b32.xlu0 %v477, 11
      %v494 = vpop.permute.xlu0 %493
      %495 = vrot.lane.b32.xlu0 %v478, 11
      %v496 = vpop.permute.xlu0 %495
      %497 = vrot.lane.b32.xlu0 %v479, 11
      %v498 = vpop.permute.xlu0 %497
      %499 = vrot.lane.b32.xlu0 %v480, 11
      %v500 = vpop.permute.xlu0 %499
      %501 = vrot.lane.b32.xlu0 %v481, 11
      %v502 = vpop.permute.xlu0 %501
      %v503 = vrot.slane %v490, 4
      %v504 = vrot.slane %v492, 4
      %v505 = vrot.slane %v494, 4
      %v506 = vrot.slane %v496, 4
      %v507 = vrot.slane %v498, 4
      %v508 = vrot.slane %v500, 4
      %v509 = vrot.slane %v502, 4
      %vm510 = vcmask 1043456
      %v511 = vsel %vm510, %v503, %v504
      %vm512 = vcmask 89088
      %v513 = vsel %vm512, %v490, %v511
      %v514 = vsel %vm510, %v504, %v505
      %v515 = vsel %vm512, %v492, %v514
      %v516 = vsel %vm510, %v505, %v506
      %v517 = vsel %vm512, %v494, %v516
      %v518 = vsel %vm510, %v506, %v507
      %v519 = vsel %vm512, %v496, %v518
      %v520 = vsel %vm510, %v507, %v508
      %v521 = vsel %vm512, %v498, %v520
      %v522 = vsel %vm510, %v508, %v509
      %v523 = vsel %vm512, %v500, %v522
      %530 = vst [vmem:[#allocation2] sm:$0xff] %v513
      %531 = vst [vmem:[#allocation2 + $0x8] sm:$0xff] %v515
      %532 = vst [vmem:[#allocation2 + $0x10] sm:$0xff] %v517
      %533 = vst [vmem:[#allocation2 + $0x18] sm:$0xff] %v519
      %534 = vst [vmem:[#allocation2 + $0x20] sm:$0xff] %v521
      %535 = vst [vmem:[#allocation2 + $0x28] sm:$0xff] %v523
      %v536 = vld [vmem:[%s165] sm:$0xff]
      %v537 = vld [vmem:[%s165 + $0x8] sm:$0xff]
      %v538 = vld [vmem:[%s165 + $0x10] sm:$0xff]
      %v539 = vld [vmem:[%s165 + $0x18] sm:$0xff]
      %v540 = vld [vmem:[%s165 + $0x20] sm:$0xff]
      %v541 = vld [vmem:[%s165 + $0x28] sm:$0xff]
      %v542 = vld [vmem:[%s165 + $0x30] sm:$0xf]
      %550 = vrot.lane.b32.xlu0 %v536, 10
      %v551 = vpop.permute.xlu0 %550
      %552 = vrot.lane.b32.xlu0 %v537, 10
      %v553 = vpop.permute.xlu0 %552
      %554 = vrot.lane.b32.xlu0 %v538, 10
      %v555 = vpop.permute.xlu0 %554
      %556 = vrot.lane.b32.xlu0 %v539, 10
      %v557 = vpop.permute.xlu0 %556
      %558 = vrot.lane.b32.xlu0 %v540, 10
      %v559 = vpop.permute.xlu0 %558
      %560 = vrot.lane.b32.xlu0 %v541, 10
      %v561 = vpop.permute.xlu0 %560
      %562 = vrot.lane.b32.xlu0 %v542, 10
      %v563 = vpop.permute.xlu0 %562
      %v564 = vrot.slane %v551, 4
      %v565 = vrot.slane %v553, 4
      %v566 = vrot.slane %v555, 4
      %v567 = vrot.slane %v557, 4
      %v568 = vrot.slane %v559, 4
      %v569 = vrot.slane %v561, 4
      %v570 = vrot.slane %v563, 4
      %v571 = vsel %vm510, %v564, %v565
      %vm572 = vcmask 80896
      %v573 = vsel %vm572, %v551, %v571
      %v574 = vsel %vm510, %v565, %v566
      %v575 = vsel %vm572, %v553, %v574
      %v576 = vsel %vm510, %v566, %v567
      %v577 = vsel %vm572, %v555, %v576
      %v578 = vsel %vm510, %v567, %v568
      %v579 = vsel %vm572, %v557, %v578
      %v580 = vsel %vm510, %v568, %v569
      %v581 = vsel %vm572, %v559, %v580
      %v582 = vsel %vm510, %v569, %v570
      %v583 = vsel %vm572, %v561, %v582
      %590 = vst [vmem:[#allocation2 + $0x30] sm:$0xff] %v573
      %591 = vst [vmem:[#allocation2 + $0x38] sm:$0xff] %v575
      %592 = vst [vmem:[#allocation2 + $0x40] sm:$0xff] %v577
      %593 = vst [vmem:[#allocation2 + $0x48] sm:$0xff] %v579
      %594 = vst [vmem:[#allocation2 + $0x50] sm:$0xff] %v581
      %595 = vst [vmem:[#allocation2 + $0x58] sm:$0xff] %v583
      %v596 = vld [vmem:[%s165] sm:$0xff]
      %v597 = vld [vmem:[%s165 + $0x8] sm:$0xff]
      %v598 = vld [vmem:[%s165 + $0x10] sm:$0xff]
      %v599 = vld [vmem:[%s165 + $0x18] sm:$0xff]
      %v600 = vld [vmem:[%s165 + $0x20] sm:$0xff]
      %v601 = vld [vmem:[%s165 + $0x28] sm:$0xff]
      %v602 = vld [vmem:[%s165 + $0x30] sm:$0xf]
      %610 = vrot.lane.b32.xlu0 %v596, 9
      %v611 = vpop.permute.xlu0 %610
      %612 = vrot.lane.b32.xlu0 %v597, 9
      %v613 = vpop.permute.xlu0 %612
      %614 = vrot.lane.b32.xlu0 %v598, 9
      %v615 = vpop.permute.xlu0 %614
      %616 = vrot.lane.b32.xlu0 %v599, 9
      %v617 = vpop.permute.xlu0 %616
      %618 = vrot.lane.b32.xlu0 %v600, 9
      %v619 = vpop.permute.xlu0 %618
      %620 = vrot.lane.b32.xlu0 %v601, 9
      %v621 = vpop.permute.xlu0 %620
      %622 = vrot.lane.b32.xlu0 %v602, 9
      %v623 = vpop.permute.xlu0 %622
      %v624 = vrot.slane %v611, 4
      %v625 = vrot.slane %v613, 4
      %v626 = vrot.slane %v615, 4
      %v627 = vrot.slane %v617, 4
      %v628 = vrot.slane %v619, 4
      %v629 = vrot.slane %v621, 4
      %v630 = vrot.slane %v623, 4
      %v631 = vsel %vm510, %v624, %v625
      %vm632 = vcmask 72704
      %v633 = vsel %vm632, %v611, %v631
      %v634 = vsel %vm510, %v625, %v626
      %v635 = vsel %vm632, %v613, %v634
      %v636 = vsel %vm510, %v626, %v627
      %v637 = vsel %vm632, %v615, %v636
      %v638 = vsel %vm510, %v627, %v628
      %v639 = vsel %vm632, %v617, %v638
      %v640 = vsel %vm510, %v628, %v629
      %v641 = vsel %vm632, %v619, %v640
      %v642 = vsel %vm510, %v629, %v630
      %v643 = vsel %vm632, %v621, %v642
      %650 = vst [vmem:[#allocation2 + $0x60] sm:$0xff] %v633
      %651 = vst [vmem:[#allocation2 + $0x68] sm:$0xff] %v635
      %652 = vst [vmem:[#allocation2 + $0x70] sm:$0xff] %v637
      %653 = vst [vmem:[#allocation2 + $0x78] sm:$0xff] %v639
      %654 = vst [vmem:[#allocation2 + $0x80] sm:$0xff] %v641
      %655 = vst [vmem:[#allocation2 + $0x88] sm:$0xff] %v643
      %v656 = vld [vmem:[%s165] sm:$0xff]
      %v657 = vld [vmem:[%s165 + $0x8] sm:$0xff]
      %v658 = vld [vmem:[%s165 + $0x10] sm:$0xff]
      %v659 = vld [vmem:[%s165 + $0x18] sm:$0xff]
      %v660 = vld [vmem:[%s165 + $0x20] sm:$0xff]
      %v661 = vld [vmem:[%s165 + $0x28] sm:$0xff]
      %v662 = vld [vmem:[%s165 + $0x30] sm:$0xf]
      %670 = vrot.lane.b32.xlu0 %v656, 1
      %v671 = vpop.permute.xlu0 %670
      %672 = vrot.lane.b32.xlu0 %v657, 1
      %v673 = vpop.permute.xlu0 %672
      %674 = vrot.lane.b32.xlu0 %v658, 1
      %v675 = vpop.permute.xlu0 %674
      %676 = vrot.lane.b32.xlu0 %v659, 1
      %v677 = vpop.permute.xlu0 %676
      %678 = vrot.lane.b32.xlu0 %v660, 1
      %v679 = vpop.permute.xlu0 %678
      %680 = vrot.lane.b32.xlu0 %v661, 1
      %v681 = vpop.permute.xlu0 %680
      %682 = vrot.lane.b32.xlu0 %v662, 1
      %v683 = vpop.permute.xlu0 %682
      %v684 = vrot.slane %v671, 4
      %v685 = vrot.slane %v673, 4
      %v686 = vrot.slane %v675, 4
      %v687 = vrot.slane %v677, 4
      %v688 = vrot.slane %v679, 4
      %v689 = vrot.slane %v681, 4
      %v690 = vrot.slane %v683, 4
      %v691 = vsel %vm510, %v684, %v685
      %vm692 = vcmask 7168
      %v693 = vsel %vm692, %v671, %v691
      %v694 = vsel %vm510, %v685, %v686
      %v695 = vsel %vm692, %v673, %v694
      %v696 = vsel %vm510, %v686, %v687
      %v697 = vsel %vm692, %v675, %v696
      %v698 = vsel %vm510, %v687, %v688
      %v699 = vsel %vm692, %v677, %v698
      %v700 = vsel %vm510, %v688, %v689
      %v701 = vsel %vm692, %v679, %v700
      %v702 = vsel %vm510, %v689, %v690
      %v703 = vsel %vm692, %v681, %v702
      %710 = vst [vmem:[#allocation2 + $0x90] sm:$0xff] %v693
      %711 = vst [vmem:[#allocation2 + $0x98] sm:$0xff] %v695
      %712 = vst [vmem:[#allocation2 + $0xa0] sm:$0xff] %v697
      %713 = vst [vmem:[#allocation2 + $0xa8] sm:$0xff] %v699
      %714 = vst [vmem:[#allocation2 + $0xb0] sm:$0xff] %v701
      %715 = vst [vmem:[#allocation2 + $0xb8] sm:$0xff] %v703
      %v716 = vld [vmem:[%s165 + $0x4] sm:$0xff]
      %v717 = vld [vmem:[%s165 + $0xc] sm:$0xff]
      %v718 = vld [vmem:[%s165 + $0x14] sm:$0xff]
      %v719 = vld [vmem:[%s165 + $0x1c] sm:$0xff]
      %v720 = vld [vmem:[%s165 + $0x24] sm:$0xff]
      %v721 = vld [vmem:[%s165 + $0x2c] sm:$0xff]
      %722 = vst [vmem:[#allocation2 + $0xc0] sm:$0xff] %v716
      %723 = vst [vmem:[#allocation2 + $0xc8] sm:$0xff] %v717
      %724 = vst [vmem:[#allocation2 + $0xd0] sm:$0xff] %v718
      %725 = vst [vmem:[#allocation2 + $0xd8] sm:$0xff] %v719
      %726 = vst [vmem:[#allocation2 + $0xe0] sm:$0xff] %v720
      %727 = vst [vmem:[#allocation2 + $0xe8] sm:$0xff] %v721
      %v728 = vld [vmem:[%s165 + $0x4] sm:$0xff]
      %v729 = vld [vmem:[%s165 + $0xc] sm:$0xff]
      %v730 = vld [vmem:[%s165 + $0x14] sm:$0xff]
      %v731 = vld [vmem:[%s165 + $0x1c] sm:$0xff]
      %v732 = vld [vmem:[%s165 + $0x24] sm:$0xff]
      %v733 = vld [vmem:[%s165 + $0x2c] sm:$0xff]
      %v734 = vld [vmem:[%s165 + $0x34] sm:$0xf]
      %742 = vrot.lane.b32.xlu0 %v728, 127
      %v743 = vpop.permute.xlu0 %742
      %744 = vrot.lane.b32.xlu0 %v729, 127
      %v745 = vpop.permute.xlu0 %744
      %746 = vrot.lane.b32.xlu0 %v730, 127
      %v747 = vpop.permute.xlu0 %746
      %748 = vrot.lane.b32.xlu0 %v731, 127
      %v749 = vpop.permute.xlu0 %748
      %750 = vrot.lane.b32.xlu0 %v732, 127
      %v751 = vpop.permute.xlu0 %750
      %752 = vrot.lane.b32.xlu0 %v733, 127
      %v753 = vpop.permute.xlu0 %752
      %754 = vrot.lane.b32.xlu0 %v734, 127
      %v755 = vpop.permute.xlu0 %754
      %v756 = vrot.slane %v743, 4
      %v757 = vrot.slane %v745, 4
      %v758 = vrot.slane %v747, 4
      %v759 = vrot.slane %v749, 4
      %v760 = vrot.slane %v751, 4
      %v761 = vrot.slane %v753, 4
      %v762 = vrot.slane %v755, 4
      %v763 = vsel %vm510, %v756, %v757
      %vm764 = vcmask 1039360
      %v765 = vsel %vm764, %v743, %v763
      %v766 = vsel %vm510, %v757, %v758
      %v767 = vsel %vm764, %v745, %v766
      %v768 = vsel %vm510, %v758, %v759
      %v769 = vsel %vm764, %v747, %v768
      %v770 = vsel %vm510, %v759, %v760
      %v771 = vsel %vm764, %v749, %v770
      %v772 = vsel %vm510, %v760, %v761
      %v773 = vsel %vm764, %v751, %v772
      %v774 = vsel %vm510, %v761, %v762
      %v775 = vsel %vm764, %v753, %v774
      %782 = vst [vmem:[#allocation2 + $0xf0] sm:$0xff] %v765
      %783 = vst [vmem:[#allocation2 + $0xf8] sm:$0xff] %v767
      %784 = vst [vmem:[#allocation2 + $0x100] sm:$0xff] %v769
      %785 = vst [vmem:[#allocation2 + $0x108] sm:$0xff] %v771
      %786 = vst [vmem:[#allocation2 + $0x110] sm:$0xff] %v773
      %787 = vst [vmem:[#allocation2 + $0x118] sm:$0xff] %v775
      %v788 = vld [vmem:[%s165 + $0x4] sm:$0xff]
      %v789 = vld [vmem:[%s165 + $0xc] sm:$0xff]
      %v790 = vld [vmem:[%s165 + $0x14] sm:$0xff]
      %v791 = vld [vmem:[%s165 + $0x1c] sm:$0xff]
      %v792 = vld [vmem:[%s165 + $0x24] sm:$0xff]
      %v793 = vld [vmem:[%s165 + $0x2c] sm:$0xff]
      %v794 = vld [vmem:[%s165 + $0x34] sm:$0xf]
      %802 = vrot.lane.b32.xlu0 %v788, 119
      %v803 = vpop.permute.xlu0 %802
      %804 = vrot.lane.b32.xlu0 %v789, 119
      %v805 = vpop.permute.xlu0 %804
      %806 = vrot.lane.b32.xlu0 %v790, 119
      %v807 = vpop.permute.xlu0 %806
      %808 = vrot.lane.b32.xlu0 %v791, 119
      %v809 = vpop.permute.xlu0 %808
      %810 = vrot.lane.b32.xlu0 %v792, 119
      %v811 = vpop.permute.xlu0 %810
      %812 = vrot.lane.b32.xlu0 %v793, 119
      %v813 = vpop.permute.xlu0 %812
      %814 = vrot.lane.b32.xlu0 %v794, 119
      %v815 = vpop.permute.xlu0 %814
      %v816 = vrot.slane %v803, 4
      %v817 = vrot.slane %v805, 4
      %v818 = vrot.slane %v807, 4
      %v819 = vrot.slane %v809, 4
      %v820 = vrot.slane %v811, 4
      %v821 = vrot.slane %v813, 4
      %v822 = vrot.slane %v815, 4
      %v823 = vsel %vm510, %v816, %v817
      %vm824 = vcmask 973824
      %v825 = vsel %vm824, %v803, %v823
      %v826 = vsel %vm510, %v817, %v818
      %v827 = vsel %vm824, %v805, %v826
      %v828 = vsel %vm510, %v818, %v819
      %v829 = vsel %vm824, %v807, %v828
      %v830 = vsel %vm510, %v819, %v820
      %v831 = vsel %vm824, %v809, %v830
      %v832 = vsel %vm510, %v820, %v821
      %v833 = vsel %vm824, %v811, %v832
      %v834 = vsel %vm510, %v821, %v822
      %v835 = vsel %vm824, %v813, %v834
      %842 = vst [vmem:[#allocation2 + $0x120] sm:$0xff] %v825
      %843 = vst [vmem:[#allocation2 + $0x128] sm:$0xff] %v827
      %844 = vst [vmem:[#allocation2 + $0x130] sm:$0xff] %v829
      %845 = vst [vmem:[#allocation2 + $0x138] sm:$0xff] %v831
      %846 = vst [vmem:[#allocation2 + $0x140] sm:$0xff] %v833
      %847 = vst [vmem:[#allocation2 + $0x148] sm:$0xff] %v835
      %v848 = vld [vmem:[%s165 + $0x4] sm:$0xff]
      %v849 = vld [vmem:[%s165 + $0xc] sm:$0xff]
      %v850 = vld [vmem:[%s165 + $0x14] sm:$0xff]
      %v851 = vld [vmem:[%s165 + $0x1c] sm:$0xff]
      %v852 = vld [vmem:[%s165 + $0x24] sm:$0xff]
      %v853 = vld [vmem:[%s165 + $0x2c] sm:$0xff]
      %v854 = vld [vmem:[%s165 + $0x34] sm:$0xf]
      %862 = vrot.lane.b32.xlu0 %v848, 118
      %v863 = vpop.permute.xlu0 %862
      %864 = vrot.lane.b32.xlu0 %v849, 118
      %v865 = vpop.permute.xlu0 %864
      %866 = vrot.lane.b32.xlu0 %v850, 118
      %v867 = vpop.permute.xlu0 %866
      %868 = vrot.lane.b32.xlu0 %v851, 118
      %v869 = vpop.permute.xlu0 %868
      %870 = vrot.lane.b32.xlu0 %v852, 118
      %v871 = vpop.permute.xlu0 %870
      %872 = vrot.lane.b32.xlu0 %v853, 118
      %v873 = vpop.permute.xlu0 %872
      %874 = vrot.lane.b32.xlu0 %v854, 118
      %v875 = vpop.permute.xlu0 %874
      %v876 = vrot.slane %v863, 4
      %v877 = vrot.slane %v865, 4
      %v878 = vrot.slane %v867, 4
      %v879 = vrot.slane %v869, 4
      %v880 = vrot.slane %v871, 4
      %v881 = vrot.slane %v873, 4
      %v882 = vrot.slane %v875, 4
      %v883 = vsel %vm510, %v876, %v877
      %vm884 = vcmask 965632
      %v885 = vsel %vm884, %v863, %v883
      %v886 = vsel %vm510, %v877, %v878
      %v887 = vsel %vm884, %v865, %v886
      %v888 = vsel %vm510, %v878, %v879
      %v889 = vsel %vm884, %v867, %v888
      %v890 = vsel %vm510, %v879, %v880
      %v891 = vsel %vm884, %v869, %v890
      %v892 = vsel %vm510, %v880, %v881
      %v893 = vsel %vm884, %v871, %v892
      %v894 = vsel %vm510, %v881, %v882
      %v895 = vsel %vm884, %v873, %v894
      %902 = vst [vmem:[#allocation2 + $0x150] sm:$0xff] %v885
      %903 = vst [vmem:[#allocation2 + $0x158] sm:$0xff] %v887
      %904 = vst [vmem:[#allocation2 + $0x160] sm:$0xff] %v889
      %905 = vst [vmem:[#allocation2 + $0x168] sm:$0xff] %v891
      %906 = vst [vmem:[#allocation2 + $0x170] sm:$0xff] %v893
      %907 = vst [vmem:[#allocation2 + $0x178] sm:$0xff] %v895
      %v908 = vld [vmem:[%s165 + $0x4] sm:$0xff]
      %v909 = vld [vmem:[%s165 + $0xc] sm:$0xff]
      %v910 = vld [vmem:[%s165 + $0x14] sm:$0xff]
      %v911 = vld [vmem:[%s165 + $0x1c] sm:$0xff]
      %v912 = vld [vmem:[%s165 + $0x24] sm:$0xff]
      %v913 = vld [vmem:[%s165 + $0x2c] sm:$0xff]
      %v914 = vld [vmem:[%s165 + $0x34] sm:$0xf]
      %922 = vrot.lane.b32.xlu0 %v908, 117
      %v923 = vpop.permute.xlu0 %922
      %924 = vrot.lane.b32.xlu0 %v909, 117
      %v925 = vpop.permute.xlu0 %924
      %926 = vrot.lane.b32.xlu0 %v910, 117
      %v927 = vpop.permute.xlu0 %926
      %928 = vrot.lane.b32.xlu0 %v911, 117
      %v929 = vpop.permute.xlu0 %928
      %930 = vrot.lane.b32.xlu0 %v912, 117
      %v931 = vpop.permute.xlu0 %930
      %932 = vrot.lane.b32.xlu0 %v913, 117
      %v933 = vpop.permute.xlu0 %932
      %934 = vrot.lane.b32.xlu0 %v914, 117
      %v935 = vpop.permute.xlu0 %934
      %v936 = vrot.slane %v923, 4
      %v937 = vrot.slane %v925, 4
      %v938 = vrot.slane %v927, 4
      %v939 = vrot.slane %v929, 4
      %v940 = vrot.slane %v931, 4
      %v941 = vrot.slane %v933, 4
      %v942 = vrot.slane %v935, 4
      %v943 = vsel %vm510, %v936, %v937
      %vm944 = vcmask 957440
      %v945 = vsel %vm944, %v923, %v943
      %v946 = vsel %vm510, %v937, %v938
      %v947 = vsel %vm944, %v925, %v946
      %v948 = vsel %vm510, %v938, %v939
      %v949 = vsel %vm944, %v927, %v948
      %v950 = vsel %vm510, %v939, %v940
      %v951 = vsel %vm944, %v929, %v950
      %v952 = vsel %vm510, %v940, %v941
      %v953 = vsel %vm944, %v931, %v952
      %v954 = vsel %vm510, %v941, %v942
      %v955 = vsel %vm944, %v933, %v954
      %962 = vst [vmem:[#allocation2 + $0x180] sm:$0xff] %v945
      %963 = vst [vmem:[#allocation2 + $0x188] sm:$0xff] %v947
      %964 = vst [vmem:[#allocation2 + $0x190] sm:$0xff] %v949
      %965 = vst [vmem:[#allocation2 + $0x198] sm:$0xff] %v951
      %966 = vst [vmem:[#allocation2 + $0x1a0] sm:$0xff] %v953
      %967 = vst [vmem:[#allocation2 + $0x1a8] sm:$0xff] %v955
      %v968 = vld [vmem:[%s1] sm:$0xf]
      %v969 = vld [vmem:[#allocation2] sm:$0xff]
      %v970 = vld [vmem:[#allocation2 + $0x8] sm:$0xff]
      %v971 = vld [vmem:[#allocation2 + $0x10] sm:$0xff]
      %v972 = vld [vmem:[#allocation2 + $0x18] sm:$0xff]
      %v973 = vld [vmem:[#allocation2 + $0x20] sm:$0xff]
      %v974 = vld [vmem:[#allocation2 + $0x30] sm:$0xff]
      %v975 = vld [vmem:[#allocation2 + $0x38] sm:$0xff]
      %v976 = vld [vmem:[#allocation2 + $0x40] sm:$0xff]
      %v977 = vld [vmem:[#allocation2 + $0x48] sm:$0xff]
      %v978 = vld [vmem:[#allocation2 + $0x50] sm:$0xff]
      %v979 = vld [vmem:[#allocation2 + $0x60] sm:$0xff]
      %v980 = vld [vmem:[#allocation2 + $0x68] sm:$0xff]
      %v981 = vld [vmem:[#allocation2 + $0x70] sm:$0xff]
      %v982 = vld [vmem:[#allocation2 + $0x78] sm:$0xff]
      %v983 = vld [vmem:[#allocation2 + $0x80] sm:$0xff]
      %v984 = vld [vmem:[#allocation2 + $0x90] sm:$0xff]
      %v985 = vld [vmem:[#allocation2 + $0x98] sm:$0xff]
      %v986 = vld [vmem:[#allocation2 + $0xa0] sm:$0xff]
      %v987 = vld [vmem:[#allocation2 + $0xa8] sm:$0xff]
      %v988 = vld [vmem:[#allocation2 + $0xb0] sm:$0xff]
      %v989 = vld [vmem:[#allocation2 + $0xc0] sm:$0xff]
      %v990 = vld [vmem:[#allocation2 + $0xc8] sm:$0xff]
      %v991 = vld [vmem:[#allocation2 + $0xd0] sm:$0xff]
      %v992 = vld [vmem:[#allocation2 + $0xd8] sm:$0xff]
      %v993 = vld [vmem:[#allocation2 + $0xe0] sm:$0xff]
      %v994 = vld [vmem:[#allocation2 + $0xf0] sm:$0xff]
      %v995 = vld [vmem:[#allocation2 + $0xf8] sm:$0xff]
      %v996 = vld [vmem:[#allocation2 + $0x100] sm:$0xff]
      %v997 = vld [vmem:[#allocation2 + $0x108] sm:$0xff]
      %v998 = vld [vmem:[#allocation2 + $0x110] sm:$0xff]
      %v999 = vld [vmem:[#allocation2 + $0x120] sm:$0xff]
      %v1000 = vld [vmem:[#allocation2 + $0x128] sm:$0xff]
      %v1001 = vld [vmem:[#allocation2 + $0x130] sm:$0xff]
      %v1002 = vld [vmem:[#allocation2 + $0x138] sm:$0xff]
      %v1003 = vld [vmem:[#allocation2 + $0x140] sm:$0xff]
      %v1004 = vld [vmem:[#allocation2 + $0x150] sm:$0xff]
      %v1005 = vld [vmem:[#allocation2 + $0x158] sm:$0xff]
      %v1006 = vld [vmem:[#allocation2 + $0x160] sm:$0xff]
      %v1007 = vld [vmem:[#allocation2 + $0x168] sm:$0xff]
      %v1008 = vld [vmem:[#allocation2 + $0x170] sm:$0xff]
      %v1009 = vld [vmem:[#allocation2 + $0x180] sm:$0xff]
      %v1010 = vld [vmem:[#allocation2 + $0x188] sm:$0xff]
      %v1011 = vld [vmem:[#allocation2 + $0x190] sm:$0xff]
      %v1012 = vld [vmem:[#allocation2 + $0x198] sm:$0xff]
      %v1013 = vld [vmem:[#allocation2 + $0x1a0] sm:$0xff]
      %v1014 = vld [vmem:[#allocation2 + $0x1b0] sm:$0xff]
      %v1015 = vld [vmem:[#allocation2 + $0x1b8] sm:$0xff]
      %v1016 = vld [vmem:[#allocation2 + $0x1c0] sm:$0xff]
      %v1017 = vld [vmem:[#allocation2 + $0x1c8] sm:$0xff]
      %v1018 = vld [vmem:[#allocation2 + $0x1d0] sm:$0xff]
      %s1019 = scalar_lea.vmem %s1, 4
      %v1020 = vld [vmem:[%s1019] sm:$0xf]
      %v1021 = vld [vmem:[#allocation2 + $0x4] sm:$0xff]
      %v1022 = vld [vmem:[#allocation2 + $0xc] sm:$0xff]
      %v1023 = vld [vmem:[#allocation2 + $0x14] sm:$0xff]
      %v1024 = vld [vmem:[#allocation2 + $0x1c] sm:$0xff]
      %v1025 = vld [vmem:[#allocation2 + $0x24] sm:$0xff]
      %v1026 = vld [vmem:[#allocation2 + $0x34] sm:$0xff]
      %v1027 = vld [vmem:[#allocation2 + $0x3c] sm:$0xff]
      %v1028 = vld [vmem:[#allocation2 + $0x44] sm:$0xff]
      %v1029 = vld [vmem:[#allocation2 + $0x4c] sm:$0xff]
      %v1030 = vld [vmem:[#allocation2 + $0x54] sm:$0xff]
      %v1031 = vld [vmem:[#allocation2 + $0x64] sm:$0xff]
      %v1032 = vld [vmem:[#allocation2 + $0x6c] sm:$0xff]
      %v1033 = vld [vmem:[#allocation2 + $0x74] sm:$0xff]
      %v1034 = vld [vmem:[#allocation2 + $0x7c] sm:$0xff]
      %v1035 = vld [vmem:[#allocation2 + $0x84] sm:$0xff]
      %v1036 = vld [vmem:[#allocation2 + $0x94] sm:$0xff]
      %v1037 = vld [vmem:[#allocation2 + $0x9c] sm:$0xff]
      %v1038 = vld [vmem:[#allocation2 + $0xa4] sm:$0xff]
      %v1039 = vld [vmem:[#allocation2 + $0xac] sm:$0xff]
      %v1040 = vld [vmem:[#allocation2 + $0xb4] sm:$0xff]
      %v1041 = vld [vmem:[#allocation2 + $0xc4] sm:$0xff]
      %v1042 = vld [vmem:[#allocation2 + $0xcc] sm:$0xff]
      %v1043 = vld [vmem:[#allocation2 + $0xd4] sm:$0xff]
      %v1044 = vld [vmem:[#allocation2 + $0xdc] sm:$0xff]
      %v1045 = vld [vmem:[#allocation2 + $0xe4] sm:$0xff]
      %v1046 = vld [vmem:[#allocation2 + $0xf4] sm:$0xff]
      %v1047 = vld [vmem:[#allocation2 + $0xfc] sm:$0xff]
      %v1048 = vld [vmem:[#allocation2 + $0x104] sm:$0xff]
      %v1049 = vld [vmem:[#allocation2 + $0x10c] sm:$0xff]
      %v1050 = vld [vmem:[#allocation2 + $0x114] sm:$0xff]
      %v1051 = vld [vmem:[#allocation2 + $0x124] sm:$0xff]
      %v1052 = vld [vmem:[#allocation2 + $0x12c] sm:$0xff]
      %v1053 = vld [vmem:[#allocation2 + $0x134] sm:$0xff]
      %v1054 = vld [vmem:[#allocation2 + $0x13c] sm:$0xff]
      %v1055 = vld [vmem:[#allocation2 + $0x144] sm:$0xff]
      %v1056 = vld [vmem:[#allocation2 + $0x154] sm:$0xff]
      %v1057 = vld [vmem:[#allocation2 + $0x15c] sm:$0xff]
      %v1058 = vld [vmem:[#allocation2 + $0x164] sm:$0xff]
      %v1059 = vld [vmem:[#allocation2 + $0x16c] sm:$0xff]
      %v1060 = vld [vmem:[#allocation2 + $0x174] sm:$0xff]
      %v1061 = vld [vmem:[#allocation2 + $0x184] sm:$0xff]
      %v1062 = vld [vmem:[#allocation2 + $0x18c] sm:$0xff]
      %v1063 = vld [vmem:[#allocation2 + $0x194] sm:$0xff]
      %v1064 = vld [vmem:[#allocation2 + $0x19c] sm:$0xff]
      %v1065 = vld [vmem:[#allocation2 + $0x1a4] sm:$0xff]
      %v1066 = vld [vmem:[#allocation2 + $0x1b4] sm:$0xff]
      %v1067 = vld [vmem:[#allocation2 + $0x1bc] sm:$0xff]
      %v1068 = vld [vmem:[#allocation2 + $0x1c4] sm:$0xff]
      %v1069 = vld [vmem:[#allocation2 + $0x1cc] sm:$0xff]
      %v1070 = vld [vmem:[#allocation2 + $0x1d4] sm:$0xff]
      %v1121 = vunpack.c.l.b16 %v1021
      %v1122 = vunpack.c.h.b16 %v1021
      %v1123 = vunpack.c.l.b16 %v1022
      %v1124 = vunpack.c.h.b16 %v1022
      %v1125 = vunpack.c.l.b16 %v1023
      %v1126 = vunpack.c.h.b16 %v1023
      %v1127 = vunpack.c.l.b16 %v1024
      %v1128 = vunpack.c.h.b16 %v1024
      %v1129 = vunpack.c.l.b16 %v1025
      %v1130 = vunpack.c.h.b16 %v1025
      %v1131 = vunpack.c.l.b16 %v1026
      %v1132 = vunpack.c.h.b16 %v1026
      %v1133 = vunpack.c.l.b16 %v1027
      %v1134 = vunpack.c.h.b16 %v1027
      %v1135 = vunpack.c.l.b16 %v1028
      %v1136 = vunpack.c.h.b16 %v1028
      %v1137 = vunpack.c.l.b16 %v1029
      %v1138 = vunpack.c.h.b16 %v1029
      %v1139 = vunpack.c.l.b16 %v1030
      %v1140 = vunpack.c.h.b16 %v1030
      %v1141 = vunpack.c.l.b16 %v1031
      %v1142 = vunpack.c.h.b16 %v1031
      %v1143 = vunpack.c.l.b16 %v1032
      %v1144 = vunpack.c.h.b16 %v1032
      %v1145 = vunpack.c.l.b16 %v1033
      %v1146 = vunpack.c.h.b16 %v1033
      %v1147 = vunpack.c.l.b16 %v1034
      %v1148 = vunpack.c.h.b16 %v1034
      %v1149 = vunpack.c.l.b16 %v1035
      %v1150 = vunpack.c.h.b16 %v1035
      %v1151 = vunpack.c.l.b16 %v1036
      %v1152 = vunpack.c.h.b16 %v1036
      %v1153 = vunpack.c.l.b16 %v1037
      %v1154 = vunpack.c.h.b16 %v1037
      %v1155 = vunpack.c.l.b16 %v1038
      %v1156 = vunpack.c.h.b16 %v1038
      %v1157 = vunpack.c.l.b16 %v1039
      %v1158 = vunpack.c.h.b16 %v1039
      %v1159 = vunpack.c.l.b16 %v1040
      %v1160 = vunpack.c.h.b16 %v1040
      %v1161 = vunpack.c.l.b16 %v1041
      %v1162 = vunpack.c.h.b16 %v1041
      %v1163 = vunpack.c.l.b16 %v1042
      %v1164 = vunpack.c.h.b16 %v1042
      %v1165 = vunpack.c.l.b16 %v1043
      %v1166 = vunpack.c.h.b16 %v1043
      %v1167 = vunpack.c.l.b16 %v1044
      %v1168 = vunpack.c.h.b16 %v1044
      %v1169 = vunpack.c.l.b16 %v1045
      %v1170 = vunpack.c.h.b16 %v1045
      %v1171 = vunpack.c.l.b16 %v1046
      %v1172 = vunpack.c.h.b16 %v1046
      %v1173 = vunpack.c.l.b16 %v1047
      %v1174 = vunpack.c.h.b16 %v1047
      %v1175 = vunpack.c.l.b16 %v1048
      %v1176 = vunpack.c.h.b16 %v1048
      %v1177 = vunpack.c.l.b16 %v1049
      %v1178 = vunpack.c.h.b16 %v1049
      %v1179 = vunpack.c.l.b16 %v1050
      %v1180 = vunpack.c.h.b16 %v1050
      %v1181 = vunpack.c.l.b16 %v1051
      %v1182 = vunpack.c.h.b16 %v1051
      %v1183 = vunpack.c.l.b16 %v1052
      %v1184 = vunpack.c.h.b16 %v1052
      %v1185 = vunpack.c.l.b16 %v1053
      %v1186 = vunpack.c.h.b16 %v1053
      %v1187 = vunpack.c.l.b16 %v1054
      %v1188 = vunpack.c.h.b16 %v1054
      %v1189 = vunpack.c.l.b16 %v1055
      %v1190 = vunpack.c.h.b16 %v1055
      %v1191 = vunpack.c.l.b16 %v1056
      %v1192 = vunpack.c.h.b16 %v1056
      %v1193 = vunpack.c.l.b16 %v1057
      %v1194 = vunpack.c.h.b16 %v1057
      %v1195 = vunpack.c.l.b16 %v1058
      %v1196 = vunpack.c.h.b16 %v1058
      %v1197 = vunpack.c.l.b16 %v1059
      %v1198 = vunpack.c.h.b16 %v1059
      %v1199 = vunpack.c.l.b16 %v1060
      %v1200 = vunpack.c.h.b16 %v1060
      %v1201 = vunpack.c.l.b16 %v1061
      %v1202 = vunpack.c.h.b16 %v1061
      %v1203 = vunpack.c.l.b16 %v1062
      %v1204 = vunpack.c.h.b16 %v1062
      %v1205 = vunpack.c.l.b16 %v1063
      %v1206 = vunpack.c.h.b16 %v1063
      %v1207 = vunpack.c.l.b16 %v1064
      %v1208 = vunpack.c.h.b16 %v1064
      %v1209 = vunpack.c.l.b16 %v1065
      %v1210 = vunpack.c.h.b16 %v1065
      %v1211 = vunpack.c.l.b16 %v1066
      %v1212 = vunpack.c.h.b16 %v1066
      %v1213 = vunpack.c.l.b16 %v1067
      %v1214 = vunpack.c.h.b16 %v1067
      %v1215 = vunpack.c.l.b16 %v1068
      %v1216 = vunpack.c.h.b16 %v1068
      %v1217 = vunpack.c.l.b16 %v1069
      %v1218 = vunpack.c.h.b16 %v1069
      %v1219 = vunpack.c.l.b16 %v1070
      %v1220 = vunpack.c.h.b16 %v1070
      %v1221 = vpack.c.b16 %v1131, %v1121
      %v1222 = vpack.c.b16 %v1132, %v1122
      %v1223 = vpack.c.b16 %v1133, %v1123
      %v1224 = vpack.c.b16 %v1134, %v1124
      %v1225 = vpack.c.b16 %v1135, %v1125
      %v1226 = vpack.c.b16 %v1136, %v1126
      %v1227 = vpack.c.b16 %v1137, %v1127
      %v1228 = vpack.c.b16 %v1138, %v1128
      %v1229 = vpack.c.b16 %v1139, %v1129
      %v1230 = vpack.c.b16 %v1140, %v1130
      %v1231 = vpack.c.b16 %v1151, %v1141
      %v1232 = vpack.c.b16 %v1152, %v1142
      %v1233 = vpack.c.b16 %v1153, %v1143
      %v1234 = vpack.c.b16 %v1154, %v1144
      %v1235 = vpack.c.b16 %v1155, %v1145
      %v1236 = vpack.c.b16 %v1156, %v1146
      %v1237 = vpack.c.b16 %v1157, %v1147
      %v1238 = vpack.c.b16 %v1158, %v1148
      %v1239 = vpack.c.b16 %v1159, %v1149
      %v1240 = vpack.c.b16 %v1160, %v1150
      %v1241 = vpack.c.b16 %v1171, %v1161
      %v1242 = vpack.c.b16 %v1172, %v1162
      %v1243 = vpack.c.b16 %v1173, %v1163
      %v1244 = vpack.c.b16 %v1174, %v1164
      %v1245 = vpack.c.b16 %v1175, %v1165
      %v1246 = vpack.c.b16 %v1176, %v1166
      %v1247 = vpack.c.b16 %v1177, %v1167
      %v1248 = vpack.c.b16 %v1178, %v1168
      %v1249 = vpack.c.b16 %v1179, %v1169
      %v1250 = vpack.c.b16 %v1180, %v1170
      %v1251 = vpack.c.b16 %v1191, %v1181
      %v1252 = vpack.c.b16 %v1192, %v1182
      %v1253 = vpack.c.b16 %v1193, %v1183
      %v1254 = vpack.c.b16 %v1194, %v1184
      %v1255 = vpack.c.b16 %v1195, %v1185
      %v1256 = vpack.c.b16 %v1196, %v1186
      %v1257 = vpack.c.b16 %v1197, %v1187
      %v1258 = vpack.c.b16 %v1198, %v1188
      %v1259 = vpack.c.b16 %v1199, %v1189
      %v1260 = vpack.c.b16 %v1200, %v1190
      %v1261 = vpack.c.b16 %v1211, %v1201
      %v1262 = vpack.c.b16 %v1212, %v1202
      %v1263 = vpack.c.b16 %v1213, %v1203
      %v1264 = vpack.c.b16 %v1214, %v1204
      %v1265 = vpack.c.b16 %v1215, %v1205
      %v1266 = vpack.c.b16 %v1216, %v1206
      %v1267 = vpack.c.b16 %v1217, %v1207
      %v1268 = vpack.c.b16 %v1218, %v1208
      %v1269 = vpack.c.b16 %v1219, %v1209
      %v1270 = vpack.c.b16 %v1220, %v1210
      %vm1321 = vcmask 654336
      %v1323 = vsel %vm1321, %v1020, 0
      %1325 = vmatprep.subr.bf16.mxu0 0
      %1326 = vmatpush1.bf16.msra.mxu0 0
      %1327 = vmatprep.subr.bf16.mxu0 0
      %1328 = vmatpush1.bf16.msra.mxu0 0
      %1329 = vmatprep.subr.bf16.mxu0 0
      %1330 = vmatpush1.bf16.msra.mxu0 0
      %1331 = vmatprep.subr.bf16.mxu0 %v1262
      %1332 = vmatpush1.bf16.msra.mxu0 %v1261
      %1333 = vmatprep.subr.bf16.mxu0 %v1252
      %1334 = vmatpush1.bf16.msra.mxu0 %v1251
      %1335 = vmatprep.subr.bf16.mxu0 %v1242
      %1336 = vmatpush1.bf16.msra.mxu0 %v1241
      %1337 = vmatprep.subr.bf16.mxu0 %v1232
      %1338 = vmatpush1.bf16.msra.mxu0 %v1231
      %1339 = vmatprep.subr.bf16.mxu0 %v1222
      %1340 = vmatpush1.bf16.msra.mxu0 %v1221
      %1341 = vmatprep.subr.bf16.mxu0 0
      %1342 = vmatpush2.bf16.msra.mxu0 0
      %1343 = vmatprep.subr.bf16.mxu0 0
      %1344 = vmatpush2.bf16.msra.mxu0 0
      %1345 = vmatprep.subr.bf16.mxu0 0
      %1346 = vmatpush2.bf16.msra.mxu0 0
      %1347 = vmatprep.subr.bf16.mxu0 0
      %1348 = vmatpush2.bf16.msra.mxu0 0
      %1349 = vmatprep.subr.bf16.mxu0 0
      %1350 = vmatpush2.bf16.msra.mxu0 0
      %1351 = vmatprep.subr.bf16.mxu0 0
      %1352 = vmatpush2.bf16.msra.mxu0 0
      %1353 = vmatprep.subr.bf16.mxu0 0
      %1354 = vmatpush2.bf16.msra.mxu0 0
      %1355 = vmatprep.subr.bf16.mxu0 0
      %1356 = vmatpush2.bf16.msra.mxu0 0
      %1357 = vmatprep.mubr.bf16.mxu0 0
      %1358 = vmatmul.mubr.bf16.gmra.mxu0 %v1323
      %v1359 = vpop.f32.mrf.mxu0
      %v1360 = vadd.f32 0.0, %v1359
      %v1361 = vpop.f32.mrf.mxu0
      %v1362 = vadd.f32 0.0, %v1361
      %v1363 = vpop.f32.mrf.mxu0
      %v1364 = vpop.f32.mrf.mxu0
      %1365 = vdwg.mxu0
      %1366 = vmatprep.subr.bf16.mxu0 0
      %1367 = vmatpush1.bf16.msra.mxu0 0
      %1368 = vmatprep.subr.bf16.mxu0 0
      %1369 = vmatpush1.bf16.msra.mxu0 0
      %1370 = vmatprep.subr.bf16.mxu0 0
      %1371 = vmatpush1.bf16.msra.mxu0 0
      %1372 = vmatprep.subr.bf16.mxu0 %v1264
      %1373 = vmatpush1.bf16.msra.mxu0 %v1263
      %1374 = vmatprep.subr.bf16.mxu0 %v1254
      %1375 = vmatpush1.bf16.msra.mxu0 %v1253
      %1376 = vmatprep.subr.bf16.mxu0 %v1244
      %1377 = vmatpush1.bf16.msra.mxu0 %v1243
      %1378 = vmatprep.subr.bf16.mxu0 %v1234
      %1379 = vmatpush1.bf16.msra.mxu0 %v1233
      %1380 = vmatprep.subr.bf16.mxu0 %v1224
      %1381 = vmatpush1.bf16.msra.mxu0 %v1223
      %1382 = vmatprep.subr.bf16.mxu0 0
      %1383 = vmatpush2.bf16.msra.mxu0 0
      %1384 = vmatprep.subr.bf16.mxu0 0
      %1385 = vmatpush2.bf16.msra.mxu0 0
      %1386 = vmatprep.subr.bf16.mxu0 0
      %1387 = vmatpush2.bf16.msra.mxu0 0
      %1388 = vmatprep.subr.bf16.mxu0 0
      %1389 = vmatpush2.bf16.msra.mxu0 0
      %1390 = vmatprep.subr.bf16.mxu0 0
      %1391 = vmatpush2.bf16.msra.mxu0 0
      %1392 = vmatprep.subr.bf16.mxu0 0
      %1393 = vmatpush2.bf16.msra.mxu0 0
      %1394 = vmatprep.subr.bf16.mxu0 0
      %1395 = vmatpush2.bf16.msra.mxu0 0
      %1396 = vmatprep.subr.bf16.mxu0 0
      %1397 = vmatpush2.bf16.msra.mxu0 0
      %1398 = vmatprep.mubr.bf16.mxu0 0
      %1399 = vmatmul.mubr.bf16.gmra.mxu0 %v1323
      %v1400 = vpop.f32.mrf.mxu0
      %v1401 = vadd.f32 0.0, %v1400
      %v1402 = vpop.f32.mrf.mxu0
      %v1403 = vadd.f32 0.0, %v1402
      %v1404 = vpop.f32.mrf.mxu0
      %v1405 = vpop.f32.mrf.mxu0
      %1406 = vdwg.mxu0
      %1407 = vmatprep.subr.bf16.mxu0 0
      %1408 = vmatpush1.bf16.msra.mxu0 0
      %1409 = vmatprep.subr.bf16.mxu0 0
      %1410 = vmatpush1.bf16.msra.mxu0 0
      %1411 = vmatprep.subr.bf16.mxu0 0
      %1412 = vmatpush1.bf16.msra.mxu0 0
      %1413 = vmatprep.subr.bf16.mxu0 %v1266
      %1414 = vmatpush1.bf16.msra.mxu0 %v1265
      %1415 = vmatprep.subr.bf16.mxu0 %v1256
      %1416 = vmatpush1.bf16.msra.mxu0 %v1255
      %1417 = vmatprep.subr.bf16.mxu0 %v1246
      %1418 = vmatpush1.bf16.msra.mxu0 %v1245
      %1419 = vmatprep.subr.bf16.mxu0 %v1236
      %1420 = vmatpush1.bf16.msra.mxu0 %v1235
      %1421 = vmatprep.subr.bf16.mxu0 %v1226
      %1422 = vmatpush1.bf16.msra.mxu0 %v1225
      %1423 = vmatprep.subr.bf16.mxu0 0
      %1424 = vmatpush2.bf16.msra.mxu0 0
      %1425 = vmatprep.subr.bf16.mxu0 0
      %1426 = vmatpush2.bf16.msra.mxu0 0
      %1427 = vmatprep.subr.bf16.mxu0 0
      %1428 = vmatpush2.bf16.msra.mxu0 0
      %1429 = vmatprep.subr.bf16.mxu0 0
      %1430 = vmatpush2.bf16.msra.mxu0 0
      %1431 = vmatprep.subr.bf16.mxu0 0
      %1432 = vmatpush2.bf16.msra.mxu0 0
      %1433 = vmatprep.subr.bf16.mxu0 0
      %1434 = vmatpush2.bf16.msra.mxu0 0
      %1435 = vmatprep.subr.bf16.mxu0 0
      %1436 = vmatpush2.bf16.msra.mxu0 0
      %1437 = vmatprep.subr.bf16.mxu0 0
      %1438 = vmatpush2.bf16.msra.mxu0 0
      %1439 = vmatprep.mubr.bf16.mxu0 0
      %1440 = vmatmul.mubr.bf16.gmra.mxu0 %v1323
      %v1441 = vpop.f32.mrf.mxu0
      %v1442 = vadd.f32 0.0, %v1441
      %v1443 = vpop.f32.mrf.mxu0
      %v1444 = vadd.f32 0.0, %v1443
      %v1445 = vpop.f32.mrf.mxu0
      %v1446 = vpop.f32.mrf.mxu0
      %1447 = vdwg.mxu0
      %1448 = vmatprep.subr.bf16.mxu0 0
      %1449 = vmatpush1.bf16.msra.mxu0 0
      %1450 = vmatprep.subr.bf16.mxu0 0
      %1451 = vmatpush1.bf16.msra.mxu0 0
      %1452 = vmatprep.subr.bf16.mxu0 0
      %1453 = vmatpush1.bf16.msra.mxu0 0
      %1454 = vmatprep.subr.bf16.mxu0 %v1268
      %1455 = vmatpush1.bf16.msra.mxu0 %v1267
      %1456 = vmatprep.subr.bf16.mxu0 %v1258
      %1457 = vmatpush1.bf16.msra.mxu0 %v1257
      %1458 = vmatprep.subr.bf16.mxu0 %v1248
      %1459 = vmatpush1.bf16.msra.mxu0 %v1247
      %1460 = vmatprep.subr.bf16.mxu0 %v1238
      %1461 = vmatpush1.bf16.msra.mxu0 %v1237
      %1462 = vmatprep.subr.bf16.mxu0 %v1228
      %1463 = vmatpush1.bf16.msra.mxu0 %v1227
      %1464 = vmatprep.subr.bf16.mxu0 0
      %1465 = vmatpush2.bf16.msra.mxu0 0
      %1466 = vmatprep.subr.bf16.mxu0 0
      %1467 = vmatpush2.bf16.msra.mxu0 0
      %1468 = vmatprep.subr.bf16.mxu0 0
      %1469 = vmatpush2.bf16.msra.mxu0 0
      %1470 = vmatprep.subr.bf16.mxu0 0
      %1471 = vmatpush2.bf16.msra.mxu0 0
      %1472 = vmatprep.subr.bf16.mxu0 0
      %1473 = vmatpush2.bf16.msra.mxu0 0
      %1474 = vmatprep.subr.bf16.mxu0 0
      %1475 = vmatpush2.bf16.msra.mxu0 0
      %1476 = vmatprep.subr.bf16.mxu0 0
      %1477 = vmatpush2.bf16.msra.mxu0 0
      %1478 = vmatprep.subr.bf16.mxu0 0
      %1479 = vmatpush2.bf16.msra.mxu0 0
      %1480 = vmatprep.mubr.bf16.mxu0 0
      %1481 = vmatmul.mubr.bf16.gmra.mxu0 %v1323
      %v1482 = vpop.f32.mrf.mxu0
      %v1483 = vadd.f32 0.0, %v1482
      %v1484 = vpop.f32.mrf.mxu0
      %v1485 = vadd.f32 0.0, %v1484
      %v1486 = vpop.f32.mrf.mxu0
      %v1487 = vpop.f32.mrf.mxu0
      %1488 = vdwg.mxu0
      %1489 = vmatprep.subr.bf16.mxu0 0
      %1490 = vmatpush1.bf16.msra.mxu0 0
      %1491 = vmatprep.subr.bf16.mxu0 0
      %1492 = vmatpush1.bf16.msra.mxu0 0
      %1493 = vmatprep.subr.bf16.mxu0 0
      %1494 = vmatpush1.bf16.msra.mxu0 0
      %1495 = vmatprep.subr.bf16.mxu0 %v1270
      %1496 = vmatpush1.bf16.msra.mxu0 %v1269
      %1497 = vmatprep.subr.bf16.mxu0 %v1260
      %1498 = vmatpush1.bf16.msra.mxu0 %v1259
      %1499 = vmatprep.subr.bf16.mxu0 %v1250
      %1500 = vmatpush1.bf16.msra.mxu0 %v1249
      %1501 = vmatprep.subr.bf16.mxu0 %v1240
      %1502 = vmatpush1.bf16.msra.mxu0 %v1239
      %1503 = vmatprep.subr.bf16.mxu0 %v1230
      %1504 = vmatpush1.bf16.msra.mxu0 %v1229
      %1505 = vmatprep.subr.bf16.mxu0 0
      %1506 = vmatpush2.bf16.msra.mxu0 0
      %1507 = vmatprep.subr.bf16.mxu0 0
      %1508 = vmatpush2.bf16.msra.mxu0 0
      %1509 = vmatprep.subr.bf16.mxu0 0
      %1510 = vmatpush2.bf16.msra.mxu0 0
      %1511 = vmatprep.subr.bf16.mxu0 0
      %1512 = vmatpush2.bf16.msra.mxu0 0
      %1513 = vmatprep.subr.bf16.mxu0 0
      %1514 = vmatpush2.bf16.msra.mxu0 0
      %1515 = vmatprep.subr.bf16.mxu0 0
      %1516 = vmatpush2.bf16.msra.mxu0 0
      %1517 = vmatprep.subr.bf16.mxu0 0
      %1518 = vmatpush2.bf16.msra.mxu0 0
      %1519 = vmatprep.subr.bf16.mxu0 0
      %1520 = vmatpush2.bf16.msra.mxu0 0
      %1521 = vmatprep.mubr.bf16.mxu0 0
      %1522 = vmatmul.mubr.bf16.gmra.mxu0 %v1323
      %v1523 = vpop.f32.mrf.mxu0
      %v1524 = vadd.f32 0.0, %v1523
      %v1525 = vpop.f32.mrf.mxu0
      %v1526 = vadd.f32 0.0, %v1525
      %v1527 = vpop.f32.mrf.mxu0
      %v1528 = vpop.f32.mrf.mxu0
      %1529 = vdwg.mxu0
      %v1580 = vunpack.c.l.b16 %v969
      %v1581 = vunpack.c.h.b16 %v969
      %v1582 = vunpack.c.l.b16 %v970
      %v1583 = vunpack.c.h.b16 %v970
      %v1584 = vunpack.c.l.b16 %v971
      %v1585 = vunpack.c.h.b16 %v971
      %v1586 = vunpack.c.l.b16 %v972
      %v1587 = vunpack.c.h.b16 %v972
      %v1588 = vunpack.c.l.b16 %v973
      %v1589 = vunpack.c.h.b16 %v973
      %v1590 = vunpack.c.l.b16 %v974
      %v1591 = vunpack.c.h.b16 %v974
      %v1592 = vunpack.c.l.b16 %v975
      %v1593 = vunpack.c.h.b16 %v975
      %v1594 = vunpack.c.l.b16 %v976
      %v1595 = vunpack.c.h.b16 %v976
      %v1596 = vunpack.c.l.b16 %v977
      %v1597 = vunpack.c.h.b16 %v977
      %v1598 = vunpack.c.l.b16 %v978
      %v1599 = vunpack.c.h.b16 %v978
      %v1600 = vunpack.c.l.b16 %v979
      %v1601 = vunpack.c.h.b16 %v979
      %v1602 = vunpack.c.l.b16 %v980
      %v1603 = vunpack.c.h.b16 %v980
      %v1604 = vunpack.c.l.b16 %v981
      %v1605 = vunpack.c.h.b16 %v981
      %v1606 = vunpack.c.l.b16 %v982
      %v1607 = vunpack.c.h.b16 %v982
      %v1608 = vunpack.c.l.b16 %v983
      %v1609 = vunpack.c.h.b16 %v983
      %v1610 = vunpack.c.l.b16 %v984
      %v1611 = vunpack.c.h.b16 %v984
      %v1612 = vunpack.c.l.b16 %v985
      %v1613 = vunpack.c.h.b16 %v985
      %v1614 = vunpack.c.l.b16 %v986
      %v1615 = vunpack.c.h.b16 %v986
      %v1616 = vunpack.c.l.b16 %v987
      %v1617 = vunpack.c.h.b16 %v987
      %v1618 = vunpack.c.l.b16 %v988
      %v1619 = vunpack.c.h.b16 %v988
      %v1620 = vunpack.c.l.b16 %v989
      %v1621 = vunpack.c.h.b16 %v989
      %v1622 = vunpack.c.l.b16 %v990
      %v1623 = vunpack.c.h.b16 %v990
      %v1624 = vunpack.c.l.b16 %v991
      %v1625 = vunpack.c.h.b16 %v991
      %v1626 = vunpack.c.l.b16 %v992
      %v1627 = vunpack.c.h.b16 %v992
      %v1628 = vunpack.c.l.b16 %v993
      %v1629 = vunpack.c.h.b16 %v993
      %v1630 = vunpack.c.l.b16 %v994
      %v1631 = vunpack.c.h.b16 %v994
      %v1632 = vunpack.c.l.b16 %v995
      %v1633 = vunpack.c.h.b16 %v995
      %v1634 = vunpack.c.l.b16 %v996
      %v1635 = vunpack.c.h.b16 %v996
      %v1636 = vunpack.c.l.b16 %v997
      %v1637 = vunpack.c.h.b16 %v997
      %v1638 = vunpack.c.l.b16 %v998
      %v1639 = vunpack.c.h.b16 %v998
      %v1640 = vunpack.c.l.b16 %v999
      %v1641 = vunpack.c.h.b16 %v999
      %v1642 = vunpack.c.l.b16 %v1000
      %v1643 = vunpack.c.h.b16 %v1000
      %v1644 = vunpack.c.l.b16 %v1001
      %v1645 = vunpack.c.h.b16 %v1001
      %v1646 = vunpack.c.l.b16 %v1002
      %v1647 = vunpack.c.h.b16 %v1002
      %v1648 = vunpack.c.l.b16 %v1003
      %v1649 = vunpack.c.h.b16 %v1003
      %v1650 = vunpack.c.l.b16 %v1004
      %v1651 = vunpack.c.h.b16 %v1004
      %v1652 = vunpack.c.l.b16 %v1005
      %v1653 = vunpack.c.h.b16 %v1005
      %v1654 = vunpack.c.l.b16 %v1006
      %v1655 = vunpack.c.h.b16 %v1006
      %v1656 = vunpack.c.l.b16 %v1007
      %v1657 = vunpack.c.h.b16 %v1007
      %v1658 = vunpack.c.l.b16 %v1008
      %v1659 = vunpack.c.h.b16 %v1008
      %v1660 = vunpack.c.l.b16 %v1009
      %v1661 = vunpack.c.h.b16 %v1009
      %v1662 = vunpack.c.l.b16 %v1010
      %v1663 = vunpack.c.h.b16 %v1010
      %v1664 = vunpack.c.l.b16 %v1011
      %v1665 = vunpack.c.h.b16 %v1011
      %v1666 = vunpack.c.l.b16 %v1012
      %v1667 = vunpack.c.h.b16 %v1012
      %v1668 = vunpack.c.l.b16 %v1013
      %v1669 = vunpack.c.h.b16 %v1013
      %v1670 = vunpack.c.l.b16 %v1014
      %v1671 = vunpack.c.h.b16 %v1014
      %v1672 = vunpack.c.l.b16 %v1015
      %v1673 = vunpack.c.h.b16 %v1015
      %v1674 = vunpack.c.l.b16 %v1016
      %v1675 = vunpack.c.h.b16 %v1016
      %v1676 = vunpack.c.l.b16 %v1017
      %v1677 = vunpack.c.h.b16 %v1017
      %v1678 = vunpack.c.l.b16 %v1018
      %v1679 = vunpack.c.h.b16 %v1018
      %v1680 = vpack.c.b16 %v1590, %v1580
      %v1681 = vpack.c.b16 %v1591, %v1581
      %v1682 = vpack.c.b16 %v1592, %v1582
      %v1683 = vpack.c.b16 %v1593, %v1583
      %v1684 = vpack.c.b16 %v1594, %v1584
      %v1685 = vpack.c.b16 %v1595, %v1585
      %v1686 = vpack.c.b16 %v1596, %v1586
      %v1687 = vpack.c.b16 %v1597, %v1587
      %v1688 = vpack.c.b16 %v1598, %v1588
      %v1689 = vpack.c.b16 %v1599, %v1589
      %v1690 = vpack.c.b16 %v1610, %v1600
      %v1691 = vpack.c.b16 %v1611, %v1601
      %v1692 = vpack.c.b16 %v1612, %v1602
      %v1693 = vpack.c.b16 %v1613, %v1603
      %v1694 = vpack.c.b16 %v1614, %v1604
      %v1695 = vpack.c.b16 %v1615, %v1605
      %v1696 = vpack.c.b16 %v1616, %v1606
      %v1697 = vpack.c.b16 %v1617, %v1607
      %v1698 = vpack.c.b16 %v1618, %v1608
      %v1699 = vpack.c.b16 %v1619, %v1609
      %v1700 = vpack.c.b16 %v1630, %v1620
      %v1701 = vpack.c.b16 %v1631, %v1621
      %v1702 = vpack.c.b16 %v1632, %v1622
      %v1703 = vpack.c.b16 %v1633, %v1623
      %v1704 = vpack.c.b16 %v1634, %v1624
      %v1705 = vpack.c.b16 %v1635, %v1625
      %v1706 = vpack.c.b16 %v1636, %v1626
      %v1707 = vpack.c.b16 %v1637, %v1627
      %v1708 = vpack.c.b16 %v1638, %v1628
      %v1709 = vpack.c.b16 %v1639, %v1629
      %v1710 = vpack.c.b16 %v1650, %v1640
      %v1711 = vpack.c.b16 %v1651, %v1641
      %v1712 = vpack.c.b16 %v1652, %v1642
      %v1713 = vpack.c.b16 %v1653, %v1643
      %v1714 = vpack.c.b16 %v1654, %v1644
      %v1715 = vpack.c.b16 %v1655, %v1645
      %v1716 = vpack.c.b16 %v1656, %v1646
      %v1717 = vpack.c.b16 %v1657, %v1647
      %v1718 = vpack.c.b16 %v1658, %v1648
      %v1719 = vpack.c.b16 %v1659, %v1649
      %v1720 = vpack.c.b16 %v1670, %v1660
      %v1721 = vpack.c.b16 %v1671, %v1661
      %v1722 = vpack.c.b16 %v1672, %v1662
      %v1723 = vpack.c.b16 %v1673, %v1663
      %v1724 = vpack.c.b16 %v1674, %v1664
      %v1725 = vpack.c.b16 %v1675, %v1665
      %v1726 = vpack.c.b16 %v1676, %v1666
      %v1727 = vpack.c.b16 %v1677, %v1667
      %v1728 = vpack.c.b16 %v1678, %v1668
      %v1729 = vpack.c.b16 %v1679, %v1669
      %v1781 = vsel %vm1321, %v968, 0
      %1783 = vmatprep.subr.bf16.mxu0 0
      %1784 = vmatpush1.bf16.msra.mxu0 0
      %1785 = vmatprep.subr.bf16.mxu0 0
      %1786 = vmatpush1.bf16.msra.mxu0 0
      %1787 = vmatprep.subr.bf16.mxu0 0
      %1788 = vmatpush1.bf16.msra.mxu0 0
      %1789 = vmatprep.subr.bf16.mxu0 %v1721
      %1790 = vmatpush1.bf16.msra.mxu0 %v1720
      %1791 = vmatprep.subr.bf16.mxu0 %v1711
      %1792 = vmatpush1.bf16.msra.mxu0 %v1710
      %1793 = vmatprep.subr.bf16.mxu0 %v1701
      %1794 = vmatpush1.bf16.msra.mxu0 %v1700
      %1795 = vmatprep.subr.bf16.mxu0 %v1691
      %1796 = vmatpush1.bf16.msra.mxu0 %v1690
      %1797 = vmatprep.subr.bf16.mxu0 %v1681
      %1798 = vmatpush1.bf16.msra.mxu0 %v1680
      %1799 = vmatprep.subr.bf16.mxu0 0
      %1800 = vmatpush2.bf16.msra.mxu0 0
      %1801 = vmatprep.subr.bf16.mxu0 0
      %1802 = vmatpush2.bf16.msra.mxu0 0
      %1803 = vmatprep.subr.bf16.mxu0 0
      %1804 = vmatpush2.bf16.msra.mxu0 0
      %1805 = vmatprep.subr.bf16.mxu0 0
      %1806 = vmatpush2.bf16.msra.mxu0 0
      %1807 = vmatprep.subr.bf16.mxu0 0
      %1808 = vmatpush2.bf16.msra.mxu0 0
      %1809 = vmatprep.subr.bf16.mxu0 0
      %1810 = vmatpush2.bf16.msra.mxu0 0
      %1811 = vmatprep.subr.bf16.mxu0 0
      %1812 = vmatpush2.bf16.msra.mxu0 0
      %1813 = vmatprep.subr.bf16.mxu0 0
      %1814 = vmatpush2.bf16.msra.mxu0 0
      %1815 = vmatprep.mubr.bf16.mxu0 0
      %1816 = vmatmul.mubr.bf16.gmra.mxu0 %v1781
      %v1817 = vpop.f32.mrf.mxu0
      %v1818 = vadd.f32 %v1360, %v1817
      %v1819 = vpop.f32.mrf.mxu0
      %v1820 = vadd.f32 %v1362, %v1819
      %v1821 = vpop.f32.mrf.mxu0
      %v1822 = vpop.f32.mrf.mxu0
      %1823 = vdwg.mxu0
      %1824 = vmatprep.subr.bf16.mxu0 0
      %1825 = vmatpush1.bf16.msra.mxu0 0
      %1826 = vmatprep.subr.bf16.mxu0 0
      %1827 = vmatpush1.bf16.msra.mxu0 0
      %1828 = vmatprep.subr.bf16.mxu0 0
      %1829 = vmatpush1.bf16.msra.mxu0 0
      %1830 = vmatprep.subr.bf16.mxu0 %v1723
      %1831 = vmatpush1.bf16.msra.mxu0 %v1722
      %1832 = vmatprep.subr.bf16.mxu0 %v1713
      %1833 = vmatpush1.bf16.msra.mxu0 %v1712
      %1834 = vmatprep.subr.bf16.mxu0 %v1703
      %1835 = vmatpush1.bf16.msra.mxu0 %v1702
      %1836 = vmatprep.subr.bf16.mxu0 %v1693
      %1837 = vmatpush1.bf16.msra.mxu0 %v1692
      %1838 = vmatprep.subr.bf16.mxu0 %v1683
      %1839 = vmatpush1.bf16.msra.mxu0 %v1682
      %1840 = vmatprep.subr.bf16.mxu0 0
      %1841 = vmatpush2.bf16.msra.mxu0 0
      %1842 = vmatprep.subr.bf16.mxu0 0
      %1843 = vmatpush2.bf16.msra.mxu0 0
      %1844 = vmatprep.subr.bf16.mxu0 0
      %1845 = vmatpush2.bf16.msra.mxu0 0
      %1846 = vmatprep.subr.bf16.mxu0 0
      %1847 = vmatpush2.bf16.msra.mxu0 0
      %1848 = vmatprep.subr.bf16.mxu0 0
      %1849 = vmatpush2.bf16.msra.mxu0 0
      %1850 = vmatprep.subr.bf16.mxu0 0
      %1851 = vmatpush2.bf16.msra.mxu0 0
      %1852 = vmatprep.subr.bf16.mxu0 0
      %1853 = vmatpush2.bf16.msra.mxu0 0
      %1854 = vmatprep.subr.bf16.mxu0 0
      %1855 = vmatpush2.bf16.msra.mxu0 0
      %1856 = vmatprep.mubr.bf16.mxu0 0
      %1857 = vmatmul.mubr.bf16.gmra.mxu0 %v1781
      %v1858 = vpop.f32.mrf.mxu0
      %v1859 = vadd.f32 %v1401, %v1858
      %v1860 = vpop.f32.mrf.mxu0
      %v1861 = vadd.f32 %v1403, %v1860
      %v1862 = vpop.f32.mrf.mxu0
      %v1863 = vpop.f32.mrf.mxu0
      %1864 = vdwg.mxu0
      %1865 = vmatprep.subr.bf16.mxu0 0
      %1866 = vmatpush1.bf16.msra.mxu0 0
      %1867 = vmatprep.subr.bf16.mxu0 0
      %1868 = vmatpush1.bf16.msra.mxu0 0
      %1869 = vmatprep.subr.bf16.mxu0 0
      %1870 = vmatpush1.bf16.msra.mxu0 0
      %1871 = vmatprep.subr.bf16.mxu0 %v1725
      %1872 = vmatpush1.bf16.msra.mxu0 %v1724
      %1873 = vmatprep.subr.bf16.mxu0 %v1715
      %1874 = vmatpush1.bf16.msra.mxu0 %v1714
      %1875 = vmatprep.subr.bf16.mxu0 %v1705
      %1876 = vmatpush1.bf16.msra.mxu0 %v1704
      %1877 = vmatprep.subr.bf16.mxu0 %v1695
      %1878 = vmatpush1.bf16.msra.mxu0 %v1694
      %1879 = vmatprep.subr.bf16.mxu0 %v1685
      %1880 = vmatpush1.bf16.msra.mxu0 %v1684
      %1881 = vmatprep.subr.bf16.mxu0 0
      %1882 = vmatpush2.bf16.msra.mxu0 0
      %1883 = vmatprep.subr.bf16.mxu0 0
      %1884 = vmatpush2.bf16.msra.mxu0 0
      %1885 = vmatprep.subr.bf16.mxu0 0
      %1886 = vmatpush2.bf16.msra.mxu0 0
      %1887 = vmatprep.subr.bf16.mxu0 0
      %1888 = vmatpush2.bf16.msra.mxu0 0
      %1889 = vmatprep.subr.bf16.mxu0 0
      %1890 = vmatpush2.bf16.msra.mxu0 0
      %1891 = vmatprep.subr.bf16.mxu0 0
      %1892 = vmatpush2.bf16.msra.mxu0 0
      %1893 = vmatprep.subr.bf16.mxu0 0
      %1894 = vmatpush2.bf16.msra.mxu0 0
      %1895 = vmatprep.subr.bf16.mxu0 0
      %1896 = vmatpush2.bf16.msra.mxu0 0
      %1897 = vmatprep.mubr.bf16.mxu0 0
      %1898 = vmatmul.mubr.bf16.gmra.mxu0 %v1781
      %v1899 = vpop.f32.mrf.mxu0
      %v1900 = vadd.f32 %v1442, %v1899
      %v1901 = vpop.f32.mrf.mxu0
      %v1902 = vadd.f32 %v1444, %v1901
      %v1903 = vpop.f32.mrf.mxu0
      %v1904 = vpop.f32.mrf.mxu0
      %1905 = vdwg.mxu0
      %1906 = vmatprep.subr.bf16.mxu0 0
      %1907 = vmatpush1.bf16.msra.mxu0 0
      %1908 = vmatprep.subr.bf16.mxu0 0
      %1909 = vmatpush1.bf16.msra.mxu0 0
      %1910 = vmatprep.subr.bf16.mxu0 0
      %1911 = vmatpush1.bf16.msra.mxu0 0
      %1912 = vmatprep.subr.bf16.mxu0 %v1727
      %1913 = vmatpush1.bf16.msra.mxu0 %v1726
      %1914 = vmatprep.subr.bf16.mxu0 %v1717
      %1915 = vmatpush1.bf16.msra.mxu0 %v1716
      %1916 = vmatprep.subr.bf16.mxu0 %v1707
      %1917 = vmatpush1.bf16.msra.mxu0 %v1706
      %1918 = vmatprep.subr.bf16.mxu0 %v1697
      %1919 = vmatpush1.bf16.msra.mxu0 %v1696
      %1920 = vmatprep.subr.bf16.mxu0 %v1687
      %1921 = vmatpush1.bf16.msra.mxu0 %v1686
      %1922 = vmatprep.subr.bf16.mxu0 0
      %1923 = vmatpush2.bf16.msra.mxu0 0
      %1924 = vmatprep.subr.bf16.mxu0 0
      %1925 = vmatpush2.bf16.msra.mxu0 0
      %1926 = vmatprep.subr.bf16.mxu0 0
      %1927 = vmatpush2.bf16.msra.mxu0 0
      %1928 = vmatprep.subr.bf16.mxu0 0
      %1929 = vmatpush2.bf16.msra.mxu0 0
      %1930 = vmatprep.subr.bf16.mxu0 0
      %1931 = vmatpush2.bf16.msra.mxu0 0
      %1932 = vmatprep.subr.bf16.mxu0 0
      %1933 = vmatpush2.bf16.msra.mxu0 0
      %1934 = vmatprep.subr.bf16.mxu0 0
      %1935 = vmatpush2.bf16.msra.mxu0 0
      %1936 = vmatprep.subr.bf16.mxu0 0
      %1937 = vmatpush2.bf16.msra.mxu0 0
      %1938 = vmatprep.mubr.bf16.mxu0 0
      %1939 = vmatmul.mubr.bf16.gmra.mxu0 %v1781
      %v1940 = vpop.f32.mrf.mxu0
      %v1941 = vadd.f32 %v1483, %v1940
      %v1942 = vpop.f32.mrf.mxu0
      %v1943 = vadd.f32 %v1485, %v1942
      %v1944 = vpop.f32.mrf.mxu0
      %v1945 = vpop.f32.mrf.mxu0
      %1946 = vdwg.mxu0
      %1947 = vmatprep.subr.bf16.mxu0 0
      %1948 = vmatpush1.bf16.msra.mxu0 0
      %1949 = vmatprep.subr.bf16.mxu0 0
      %1950 = vmatpush1.bf16.msra.mxu0 0
      %1951 = vmatprep.subr.bf16.mxu0 0
      %1952 = vmatpush1.bf16.msra.mxu0 0
      %1953 = vmatprep.subr.bf16.mxu0 %v1729
      %1954 = vmatpush1.bf16.msra.mxu0 %v1728
      %1955 = vmatprep.subr.bf16.mxu0 %v1719
      %1956 = vmatpush1.bf16.msra.mxu0 %v1718
      %1957 = vmatprep.subr.bf16.mxu0 %v1709
      %1958 = vmatpush1.bf16.msra.mxu0 %v1708
      %1959 = vmatprep.subr.bf16.mxu0 %v1699
      %1960 = vmatpush1.bf16.msra.mxu0 %v1698
      %1961 = vmatprep.subr.bf16.mxu0 %v1689
      %1962 = vmatpush1.bf16.msra.mxu0 %v1688
      %1963 = vmatprep.subr.bf16.mxu0 0
      %1964 = vmatpush2.bf16.msra.mxu0 0
      %1965 = vmatprep.subr.bf16.mxu0 0
      %1966 = vmatpush2.bf16.msra.mxu0 0
      %1967 = vmatprep.subr.bf16.mxu0 0
      %1968 = vmatpush2.bf16.msra.mxu0 0
      %1969 = vmatprep.subr.bf16.mxu0 0
      %1970 = vmatpush2.bf16.msra.mxu0 0
      %1971 = vmatprep.subr.bf16.mxu0 0
      %1972 = vmatpush2.bf16.msra.mxu0 0
      %1973 = vmatprep.subr.bf16.mxu0 0
      %1974 = vmatpush2.bf16.msra.mxu0 0
      %1975 = vmatprep.subr.bf16.mxu0 0
      %1976 = vmatpush2.bf16.msra.mxu0 0
      %1977 = vmatprep.subr.bf16.mxu0 0
      %1978 = vmatpush2.bf16.msra.mxu0 0
      %1979 = vmatprep.mubr.bf16.mxu0 0
      %1980 = vmatmul.mubr.bf16.gmra.mxu0 %v1781
      %v1981 = vpop.f32.mrf.mxu0
      %v1982 = vadd.f32 %v1524, %v1981
      %v1983 = vpop.f32.mrf.mxu0
      %v1984 = vadd.f32 %v1526, %v1983
      %v1985 = vpop.f32.mrf.mxu0
      %v1986 = vpop.f32.mrf.mxu0
      %1987 = vdwg.mxu0
      %s1988 = scalar_lea.vmem %s1, 8
      %v1989 = vld [vmem:[%s1988] sm:$0xf]
      %v1990 = vld [vmem:[#allocation2 + $0x8] sm:$0xff]
      %v1991 = vld [vmem:[#allocation2 + $0x10] sm:$0xff]
      %v1992 = vld [vmem:[#allocation2 + $0x18] sm:$0xff]
      %v1993 = vld [vmem:[#allocation2 + $0x20] sm:$0xff]
      %v1994 = vld [vmem:[#allocation2 + $0x28] sm:$0xff]
      %v1995 = vld [vmem:[#allocation2 + $0x38] sm:$0xff]
      %v1996 = vld [vmem:[#allocation2 + $0x40] sm:$0xff]
      %v1997 = vld [vmem:[#allocation2 + $0x48] sm:$0xff]
      %v1998 = vld [vmem:[#allocation2 + $0x50] sm:$0xff]
      %v1999 = vld [vmem:[#allocation2 + $0x58] sm:$0xff]
      %v2000 = vld [vmem:[#allocation2 + $0x68] sm:$0xff]
      %v2001 = vld [vmem:[#allocation2 + $0x70] sm:$0xff]
      %v2002 = vld [vmem:[#allocation2 + $0x78] sm:$0xff]
      %v2003 = vld [vmem:[#allocation2 + $0x80] sm:$0xff]
      %v2004 = vld [vmem:[#allocation2 + $0x88] sm:$0xff]
      %v2005 = vld [vmem:[#allocation2 + $0x98] sm:$0xff]
      %v2006 = vld [vmem:[#allocation2 + $0xa0] sm:$0xff]
      %v2007 = vld [vmem:[#allocation2 + $0xa8] sm:$0xff]
      %v2008 = vld [vmem:[#allocation2 + $0xb0] sm:$0xff]
      %v2009 = vld [vmem:[#allocation2 + $0xb8] sm:$0xff]
      %v2010 = vld [vmem:[#allocation2 + $0xc8] sm:$0xff]
      %v2011 = vld [vmem:[#allocation2 + $0xd0] sm:$0xff]
      %v2012 = vld [vmem:[#allocation2 + $0xd8] sm:$0xff]
      %v2013 = vld [vmem:[#allocation2 + $0xe0] sm:$0xff]
      %v2014 = vld [vmem:[#allocation2 + $0xe8] sm:$0xff]
      %v2015 = vld [vmem:[#allocation2 + $0xf8] sm:$0xff]
      %v2016 = vld [vmem:[#allocation2 + $0x100] sm:$0xff]
      %v2017 = vld [vmem:[#allocation2 + $0x108] sm:$0xff]
      %v2018 = vld [vmem:[#allocation2 + $0x110] sm:$0xff]
      %v2019 = vld [vmem:[#allocation2 + $0x118] sm:$0xff]
      %v2020 = vld [vmem:[#allocation2 + $0x128] sm:$0xff]
      %v2021 = vld [vmem:[#allocation2 + $0x130] sm:$0xff]
      %v2022 = vld [vmem:[#allocation2 + $0x138] sm:$0xff]
      %v2023 = vld [vmem:[#allocation2 + $0x140] sm:$0xff]
      %v2024 = vld [vmem:[#allocation2 + $0x148] sm:$0xff]
      %v2025 = vld [vmem:[#allocation2 + $0x158] sm:$0xff]
      %v2026 = vld [vmem:[#allocation2 + $0x160] sm:$0xff]
      %v2027 = vld [vmem:[#allocation2 + $0x168] sm:$0xff]
      %v2028 = vld [vmem:[#allocation2 + $0x170] sm:$0xff]
      %v2029 = vld [vmem:[#allocation2 + $0x178] sm:$0xff]
      %v2030 = vld [vmem:[#allocation2 + $0x188] sm:$0xff]
      %v2031 = vld [vmem:[#allocation2 + $0x190] sm:$0xff]
      %v2032 = vld [vmem:[#allocation2 + $0x198] sm:$0xff]
      %v2033 = vld [vmem:[#allocation2 + $0x1a0] sm:$0xff]
      %v2034 = vld [vmem:[#allocation2 + $0x1a8] sm:$0xff]
      %v2035 = vld [vmem:[#allocation2 + $0x1b8] sm:$0xff]
      %v2036 = vld [vmem:[#allocation2 + $0x1c0] sm:$0xff]
      %v2037 = vld [vmem:[#allocation2 + $0x1c8] sm:$0xff]
      %v2038 = vld [vmem:[#allocation2 + $0x1d0] sm:$0xff]
      %v2039 = vld [vmem:[#allocation2 + $0x1d8] sm:$0xff]
      %v2090 = vunpack.c.l.b16 %v1990
      %v2091 = vunpack.c.h.b16 %v1990
      %v2092 = vunpack.c.l.b16 %v1991
      %v2093 = vunpack.c.h.b16 %v1991
      %v2094 = vunpack.c.l.b16 %v1992
      %v2095 = vunpack.c.h.b16 %v1992
      %v2096 = vunpack.c.l.b16 %v1993
      %v2097 = vunpack.c.h.b16 %v1993
      %v2098 = vunpack.c.l.b16 %v1994
      %v2099 = vunpack.c.h.b16 %v1994
      %v2100 = vunpack.c.l.b16 %v1995
      %v2101 = vunpack.c.h.b16 %v1995
      %v2102 = vunpack.c.l.b16 %v1996
      %v2103 = vunpack.c.h.b16 %v1996
      %v2104 = vunpack.c.l.b16 %v1997
      %v2105 = vunpack.c.h.b16 %v1997
      %v2106 = vunpack.c.l.b16 %v1998
      %v2107 = vunpack.c.h.b16 %v1998
      %v2108 = vunpack.c.l.b16 %v1999
      %v2109 = vunpack.c.h.b16 %v1999
      %v2110 = vunpack.c.l.b16 %v2000
      %v2111 = vunpack.c.h.b16 %v2000
      %v2112 = vunpack.c.l.b16 %v2001
      %v2113 = vunpack.c.h.b16 %v2001
      %v2114 = vunpack.c.l.b16 %v2002
      %v2115 = vunpack.c.h.b16 %v2002
      %v2116 = vunpack.c.l.b16 %v2003
      %v2117 = vunpack.c.h.b16 %v2003
      %v2118 = vunpack.c.l.b16 %v2004
      %v2119 = vunpack.c.h.b16 %v2004
      %v2120 = vunpack.c.l.b16 %v2005
      %v2121 = vunpack.c.h.b16 %v2005
      %v2122 = vunpack.c.l.b16 %v2006
      %v2123 = vunpack.c.h.b16 %v2006
      %v2124 = vunpack.c.l.b16 %v2007
      %v2125 = vunpack.c.h.b16 %v2007
      %v2126 = vunpack.c.l.b16 %v2008
      %v2127 = vunpack.c.h.b16 %v2008
      %v2128 = vunpack.c.l.b16 %v2009
      %v2129 = vunpack.c.h.b16 %v2009
      %v2130 = vunpack.c.l.b16 %v2010
      %v2131 = vunpack.c.h.b16 %v2010
      %v2132 = vunpack.c.l.b16 %v2011
      %v2133 = vunpack.c.h.b16 %v2011
      %v2134 = vunpack.c.l.b16 %v2012
      %v2135 = vunpack.c.h.b16 %v2012
      %v2136 = vunpack.c.l.b16 %v2013
      %v2137 = vunpack.c.h.b16 %v2013
      %v2138 = vunpack.c.l.b16 %v2014
      %v2139 = vunpack.c.h.b16 %v2014
      %v2140 = vunpack.c.l.b16 %v2015
      %v2141 = vunpack.c.h.b16 %v2015
      %v2142 = vunpack.c.l.b16 %v2016
      %v2143 = vunpack.c.h.b16 %v2016
      %v2144 = vunpack.c.l.b16 %v2017
      %v2145 = vunpack.c.h.b16 %v2017
      %v2146 = vunpack.c.l.b16 %v2018
      %v2147 = vunpack.c.h.b16 %v2018
      %v2148 = vunpack.c.l.b16 %v2019
      %v2149 = vunpack.c.h.b16 %v2019
      %v2150 = vunpack.c.l.b16 %v2020
      %v2151 = vunpack.c.h.b16 %v2020
      %v2152 = vunpack.c.l.b16 %v2021
      %v2153 = vunpack.c.h.b16 %v2021
      %v2154 = vunpack.c.l.b16 %v2022
      %v2155 = vunpack.c.h.b16 %v2022
      %v2156 = vunpack.c.l.b16 %v2023
      %v2157 = vunpack.c.h.b16 %v2023
      %v2158 = vunpack.c.l.b16 %v2024
      %v2159 = vunpack.c.h.b16 %v2024
      %v2160 = vunpack.c.l.b16 %v2025
      %v2161 = vunpack.c.h.b16 %v2025
      %v2162 = vunpack.c.l.b16 %v2026
      %v2163 = vunpack.c.h.b16 %v2026
      %v2164 = vunpack.c.l.b16 %v2027
      %v2165 = vunpack.c.h.b16 %v2027
      %v2166 = vunpack.c.l.b16 %v2028
      %v2167 = vunpack.c.h.b16 %v2028
      %v2168 = vunpack.c.l.b16 %v2029
      %v2169 = vunpack.c.h.b16 %v2029
      %v2170 = vunpack.c.l.b16 %v2030
      %v2171 = vunpack.c.h.b16 %v2030
      %v2172 = vunpack.c.l.b16 %v2031
      %v2173 = vunpack.c.h.b16 %v2031
      %v2174 = vunpack.c.l.b16 %v2032
      %v2175 = vunpack.c.h.b16 %v2032
      %v2176 = vunpack.c.l.b16 %v2033
      %v2177 = vunpack.c.h.b16 %v2033
      %v2178 = vunpack.c.l.b16 %v2034
      %v2179 = vunpack.c.h.b16 %v2034
      %v2180 = vunpack.c.l.b16 %v2035
      %v2181 = vunpack.c.h.b16 %v2035
      %v2182 = vunpack.c.l.b16 %v2036
      %v2183 = vunpack.c.h.b16 %v2036
      %v2184 = vunpack.c.l.b16 %v2037
      %v2185 = vunpack.c.h.b16 %v2037
      %v2186 = vunpack.c.l.b16 %v2038
      %v2187 = vunpack.c.h.b16 %v2038
      %v2188 = vunpack.c.l.b16 %v2039
      %v2189 = vunpack.c.h.b16 %v2039
      %v2190 = vpack.c.b16 %v2100, %v2090
      %v2191 = vpack.c.b16 %v2101, %v2091
      %v2192 = vpack.c.b16 %v2102, %v2092
      %v2193 = vpack.c.b16 %v2103, %v2093
      %v2194 = vpack.c.b16 %v2104, %v2094
      %v2195 = vpack.c.b16 %v2105, %v2095
      %v2196 = vpack.c.b16 %v2106, %v2096
      %v2197 = vpack.c.b16 %v2107, %v2097
      %v2198 = vpack.c.b16 %v2108, %v2098
      %v2199 = vpack.c.b16 %v2109, %v2099
      %v2200 = vpack.c.b16 %v2120, %v2110
      %v2201 = vpack.c.b16 %v2121, %v2111
      %v2202 = vpack.c.b16 %v2122, %v2112
      %v2203 = vpack.c.b16 %v2123, %v2113
      %v2204 = vpack.c.b16 %v2124, %v2114
      %v2205 = vpack.c.b16 %v2125, %v2115
      %v2206 = vpack.c.b16 %v2126, %v2116
      %v2207 = vpack.c.b16 %v2127, %v2117
      %v2208 = vpack.c.b16 %v2128, %v2118
      %v2209 = vpack.c.b16 %v2129, %v2119
      %v2210 = vpack.c.b16 %v2140, %v2130
      %v2211 = vpack.c.b16 %v2141, %v2131
      %v2212 = vpack.c.b16 %v2142, %v2132
      %v2213 = vpack.c.b16 %v2143, %v2133
      %v2214 = vpack.c.b16 %v2144, %v2134
      %v2215 = vpack.c.b16 %v2145, %v2135
      %v2216 = vpack.c.b16 %v2146, %v2136
      %v2217 = vpack.c.b16 %v2147, %v2137
      %v2218 = vpack.c.b16 %v2148, %v2138
      %v2219 = vpack.c.b16 %v2149, %v2139
      %v2220 = vpack.c.b16 %v2160, %v2150
      %v2221 = vpack.c.b16 %v2161, %v2151
      %v2222 = vpack.c.b16 %v2162, %v2152
      %v2223 = vpack.c.b16 %v2163, %v2153
      %v2224 = vpack.c.b16 %v2164, %v2154
      %v2225 = vpack.c.b16 %v2165, %v2155
      %v2226 = vpack.c.b16 %v2166, %v2156
      %v2227 = vpack.c.b16 %v2167, %v2157
      %v2228 = vpack.c.b16 %v2168, %v2158
      %v2229 = vpack.c.b16 %v2169, %v2159
      %v2230 = vpack.c.b16 %v2180, %v2170
      %v2231 = vpack.c.b16 %v2181, %v2171
      %v2232 = vpack.c.b16 %v2182, %v2172
      %v2233 = vpack.c.b16 %v2183, %v2173
      %v2234 = vpack.c.b16 %v2184, %v2174
      %v2235 = vpack.c.b16 %v2185, %v2175
      %v2236 = vpack.c.b16 %v2186, %v2176
      %v2237 = vpack.c.b16 %v2187, %v2177
      %v2238 = vpack.c.b16 %v2188, %v2178
      %v2239 = vpack.c.b16 %v2189, %v2179
      %v2291 = vsel %vm1321, %v1989, 0
      %2293 = vmatprep.subr.bf16.mxu0 0
      %2294 = vmatpush1.bf16.msra.mxu0 0
      %2295 = vmatprep.subr.bf16.mxu0 0
      %2296 = vmatpush1.bf16.msra.mxu0 0
      %2297 = vmatprep.subr.bf16.mxu0 0
      %2298 = vmatpush1.bf16.msra.mxu0 0
      %2299 = vmatprep.subr.bf16.mxu0 %v2231
      %2300 = vmatpush1.bf16.msra.mxu0 %v2230
      %2301 = vmatprep.subr.bf16.mxu0 %v2221
      %2302 = vmatpush1.bf16.msra.mxu0 %v2220
      %2303 = vmatprep.subr.bf16.mxu0 %v2211
      %2304 = vmatpush1.bf16.msra.mxu0 %v2210
      %2305 = vmatprep.subr.bf16.mxu0 %v2201
      %2306 = vmatpush1.bf16.msra.mxu0 %v2200
      %2307 = vmatprep.subr.bf16.mxu0 %v2191
      %2308 = vmatpush1.bf16.msra.mxu0 %v2190
      %2309 = vmatprep.subr.bf16.mxu0 0
      %2310 = vmatpush2.bf16.msra.mxu0 0
      %2311 = vmatprep.subr.bf16.mxu0 0
      %2312 = vmatpush2.bf16.msra.mxu0 0
      %2313 = vmatprep.subr.bf16.mxu0 0
      %2314 = vmatpush2.bf16.msra.mxu0 0
      %2315 = vmatprep.subr.bf16.mxu0 0
      %2316 = vmatpush2.bf16.msra.mxu0 0
      %2317 = vmatprep.subr.bf16.mxu0 0
      %2318 = vmatpush2.bf16.msra.mxu0 0
      %2319 = vmatprep.subr.bf16.mxu0 0
      %2320 = vmatpush2.bf16.msra.mxu0 0
      %2321 = vmatprep.subr.bf16.mxu0 0
      %2322 = vmatpush2.bf16.msra.mxu0 0
      %2323 = vmatprep.subr.bf16.mxu0 0
      %2324 = vmatpush2.bf16.msra.mxu0 0
      %2325 = vmatprep.mubr.bf16.mxu0 0
      %2326 = vmatmul.mubr.bf16.gmra.mxu0 %v2291
      %v2327 = vpop.f32.mrf.mxu0
      %v2328 = vadd.f32 0.0, %v2327
      %v2329 = vpop.f32.mrf.mxu0
      %v2330 = vadd.f32 0.0, %v2329
      %v2331 = vpop.f32.mrf.mxu0
      %v2332 = vpop.f32.mrf.mxu0
      %2333 = vdwg.mxu0
      %2334 = vmatprep.subr.bf16.mxu0 0
      %2335 = vmatpush1.bf16.msra.mxu0 0
      %2336 = vmatprep.subr.bf16.mxu0 0
      %2337 = vmatpush1.bf16.msra.mxu0 0
      %2338 = vmatprep.subr.bf16.mxu0 0
      %2339 = vmatpush1.bf16.msra.mxu0 0
      %2340 = vmatprep.subr.bf16.mxu0 %v2233
      %2341 = vmatpush1.bf16.msra.mxu0 %v2232
      %2342 = vmatprep.subr.bf16.mxu0 %v2223
      %2343 = vmatpush1.bf16.msra.mxu0 %v2222
      %2344 = vmatprep.subr.bf16.mxu0 %v2213
      %2345 = vmatpush1.bf16.msra.mxu0 %v2212
      %2346 = vmatprep.subr.bf16.mxu0 %v2203
      %2347 = vmatpush1.bf16.msra.mxu0 %v2202
      %2348 = vmatprep.subr.bf16.mxu0 %v2193
      %2349 = vmatpush1.bf16.msra.mxu0 %v2192
      %2350 = vmatprep.subr.bf16.mxu0 0
      %2351 = vmatpush2.bf16.msra.mxu0 0
      %2352 = vmatprep.subr.bf16.mxu0 0
      %2353 = vmatpush2.bf16.msra.mxu0 0
      %2354 = vmatprep.subr.bf16.mxu0 0
      %2355 = vmatpush2.bf16.msra.mxu0 0
      %2356 = vmatprep.subr.bf16.mxu0 0
      %2357 = vmatpush2.bf16.msra.mxu0 0
      %2358 = vmatprep.subr.bf16.mxu0 0
      %2359 = vmatpush2.bf16.msra.mxu0 0
      %2360 = vmatprep.subr.bf16.mxu0 0
      %2361 = vmatpush2.bf16.msra.mxu0 0
      %2362 = vmatprep.subr.bf16.mxu0 0
      %2363 = vmatpush2.bf16.msra.mxu0 0
      %2364 = vmatprep.subr.bf16.mxu0 0
      %2365 = vmatpush2.bf16.msra.mxu0 0
      %2366 = vmatprep.mubr.bf16.mxu0 0
      %2367 = vmatmul.mubr.bf16.gmra.mxu0 %v2291
      %v2368 = vpop.f32.mrf.mxu0
      %v2369 = vadd.f32 0.0, %v2368
      %v2370 = vpop.f32.mrf.mxu0
      %v2371 = vadd.f32 0.0, %v2370
      %v2372 = vpop.f32.mrf.mxu0
      %v2373 = vpop.f32.mrf.mxu0
      %2374 = vdwg.mxu0
      %2375 = vmatprep.subr.bf16.mxu0 0
      %2376 = vmatpush1.bf16.msra.mxu0 0
      %2377 = vmatprep.subr.bf16.mxu0 0
      %2378 = vmatpush1.bf16.msra.mxu0 0
      %2379 = vmatprep.subr.bf16.mxu0 0
      %2380 = vmatpush1.bf16.msra.mxu0 0
      %2381 = vmatprep.subr.bf16.mxu0 %v2235
      %2382 = vmatpush1.bf16.msra.mxu0 %v2234
      %2383 = vmatprep.subr.bf16.mxu0 %v2225
      %2384 = vmatpush1.bf16.msra.mxu0 %v2224
      %2385 = vmatprep.subr.bf16.mxu0 %v2215
      %2386 = vmatpush1.bf16.msra.mxu0 %v2214
      %2387 = vmatprep.subr.bf16.mxu0 %v2205
      %2388 = vmatpush1.bf16.msra.mxu0 %v2204
      %2389 = vmatprep.subr.bf16.mxu0 %v2195
      %2390 = vmatpush1.bf16.msra.mxu0 %v2194
      %2391 = vmatprep.subr.bf16.mxu0 0
      %2392 = vmatpush2.bf16.msra.mxu0 0
      %2393 = vmatprep.subr.bf16.mxu0 0
      %2394 = vmatpush2.bf16.msra.mxu0 0
      %2395 = vmatprep.subr.bf16.mxu0 0
      %2396 = vmatpush2.bf16.msra.mxu0 0
      %2397 = vmatprep.subr.bf16.mxu0 0
      %2398 = vmatpush2.bf16.msra.mxu0 0
      %2399 = vmatprep.subr.bf16.mxu0 0
      %2400 = vmatpush2.bf16.msra.mxu0 0
      %2401 = vmatprep.subr.bf16.mxu0 0
      %2402 = vmatpush2.bf16.msra.mxu0 0
      %2403 = vmatprep.subr.bf16.mxu0 0
      %2404 = vmatpush2.bf16.msra.mxu0 0
      %2405 = vmatprep.subr.bf16.mxu0 0
      %2406 = vmatpush2.bf16.msra.mxu0 0
      %2407 = vmatprep.mubr.bf16.mxu0 0
      %2408 = vmatmul.mubr.bf16.gmra.mxu0 %v2291
      %v2409 = vpop.f32.mrf.mxu0
      %v2410 = vadd.f32 0.0, %v2409
      %v2411 = vpop.f32.mrf.mxu0
      %v2412 = vadd.f32 0.0, %v2411
      %v2413 = vpop.f32.mrf.mxu0
      %v2414 = vpop.f32.mrf.mxu0
      %2415 = vdwg.mxu0
      %2416 = vmatprep.subr.bf16.mxu0 0
      %2417 = vmatpush1.bf16.msra.mxu0 0
      %2418 = vmatprep.subr.bf16.mxu0 0
      %2419 = vmatpush1.bf16.msra.mxu0 0
      %2420 = vmatprep.subr.bf16.mxu0 0
      %2421 = vmatpush1.bf16.msra.mxu0 0
      %2422 = vmatprep.subr.bf16.mxu0 %v2237
      %2423 = vmatpush1.bf16.msra.mxu0 %v2236
      %2424 = vmatprep.subr.bf16.mxu0 %v2227
      %2425 = vmatpush1.bf16.msra.mxu0 %v2226
      %2426 = vmatprep.subr.bf16.mxu0 %v2217
      %2427 = vmatpush1.bf16.msra.mxu0 %v2216
      %2428 = vmatprep.subr.bf16.mxu0 %v2207
      %2429 = vmatpush1.bf16.msra.mxu0 %v2206
      %2430 = vmatprep.subr.bf16.mxu0 %v2197
      %2431 = vmatpush1.bf16.msra.mxu0 %v2196
      %2432 = vmatprep.subr.bf16.mxu0 0
      %2433 = vmatpush2.bf16.msra.mxu0 0
      %2434 = vmatprep.subr.bf16.mxu0 0
      %2435 = vmatpush2.bf16.msra.mxu0 0
      %2436 = vmatprep.subr.bf16.mxu0 0
      %2437 = vmatpush2.bf16.msra.mxu0 0
      %2438 = vmatprep.subr.bf16.mxu0 0
      %2439 = vmatpush2.bf16.msra.mxu0 0
      %2440 = vmatprep.subr.bf16.mxu0 0
      %2441 = vmatpush2.bf16.msra.mxu0 0
      %2442 = vmatprep.subr.bf16.mxu0 0
      %2443 = vmatpush2.bf16.msra.mxu0 0
      %2444 = vmatprep.subr.bf16.mxu0 0
      %2445 = vmatpush2.bf16.msra.mxu0 0
      %2446 = vmatprep.subr.bf16.mxu0 0
      %2447 = vmatpush2.bf16.msra.mxu0 0
      %2448 = vmatprep.mubr.bf16.mxu0 0
      %2449 = vmatmul.mubr.bf16.gmra.mxu0 %v2291
      %v2450 = vpop.f32.mrf.mxu0
      %v2451 = vadd.f32 0.0, %v2450
      %v2452 = vpop.f32.mrf.mxu0
      %v2453 = vadd.f32 0.0, %v2452
      %v2454 = vpop.f32.mrf.mxu0
      %v2455 = vpop.f32.mrf.mxu0
      %2456 = vdwg.mxu0
      %2457 = vmatprep.subr.bf16.mxu0 0
      %2458 = vmatpush1.bf16.msra.mxu0 0
      %2459 = vmatprep.subr.bf16.mxu0 0
      %2460 = vmatpush1.bf16.msra.mxu0 0
      %2461 = vmatprep.subr.bf16.mxu0 0
      %2462 = vmatpush1.bf16.msra.mxu0 0
      %2463 = vmatprep.subr.bf16.mxu0 %v2239
      %2464 = vmatpush1.bf16.msra.mxu0 %v2238
      %2465 = vmatprep.subr.bf16.mxu0 %v2229
      %2466 = vmatpush1.bf16.msra.mxu0 %v2228
      %2467 = vmatprep.subr.bf16.mxu0 %v2219
      %2468 = vmatpush1.bf16.msra.mxu0 %v2218
      %2469 = vmatprep.subr.bf16.mxu0 %v2209
      %2470 = vmatpush1.bf16.msra.mxu0 %v2208
      %2471 = vmatprep.subr.bf16.mxu0 %v2199
      %2472 = vmatpush1.bf16.msra.mxu0 %v2198
      %2473 = vmatprep.subr.bf16.mxu0 0
      %2474 = vmatpush2.bf16.msra.mxu0 0
      %2475 = vmatprep.subr.bf16.mxu0 0
      %2476 = vmatpush2.bf16.msra.mxu0 0
      %2477 = vmatprep.subr.bf16.mxu0 0
      %2478 = vmatpush2.bf16.msra.mxu0 0
      %2479 = vmatprep.subr.bf16.mxu0 0
      %2480 = vmatpush2.bf16.msra.mxu0 0
      %2481 = vmatprep.subr.bf16.mxu0 0
      %2482 = vmatpush2.bf16.msra.mxu0 0
      %2483 = vmatprep.subr.bf16.mxu0 0
      %2484 = vmatpush2.bf16.msra.mxu0 0
      %2485 = vmatprep.subr.bf16.mxu0 0
      %2486 = vmatpush2.bf16.msra.mxu0 0
      %2487 = vmatprep.subr.bf16.mxu0 0
      %2488 = vmatpush2.bf16.msra.mxu0 0
      %2489 = vmatprep.mubr.bf16.mxu0 0
      %2490 = vmatmul.mubr.bf16.gmra.mxu0 %v2291
      %v2491 = vpop.f32.mrf.mxu0
      %v2492 = vadd.f32 0.0, %v2491
      %v2493 = vpop.f32.mrf.mxu0
      %v2494 = vadd.f32 0.0, %v2493
      %v2495 = vpop.f32.mrf.mxu0
      %v2496 = vpop.f32.mrf.mxu0
      %2497 = vdwg.mxu0
      %v2498 = vadd.f32 %v1818, %v2328
      %v2499 = vadd.f32 %v1820, %v2330
      %v2500 = vadd.f32 %v1859, %v2369
      %v2501 = vadd.f32 %v1861, %v2371
      %v2502 = vadd.f32 %v1900, %v2410
      %v2503 = vadd.f32 %v1902, %v2412
      %v2504 = vadd.f32 %v1941, %v2451
      %v2505 = vadd.f32 %v1943, %v2453
      %v2506 = vadd.f32 %v1982, %v2492
      %v2507 = vadd.f32 %v1984, %v2494
      %v2508 = vmax.f32 %v2498, 0.0
      %v2509 = vmax.f32 %v2499, 0.0
      %v2510 = vmax.f32 %v2500, 0.0
      %v2511 = vmax.f32 %v2501, 0.0
      %v2512 = vmax.f32 %v2502, 0.0
      %v2513 = vmax.f32 %v2503, 0.0
      %v2514 = vmax.f32 %v2504, 0.0
      %v2515 = vmax.f32 %v2505, 0.0
      %v2516 = vmax.f32 %v2506, 0.0
      %v2517 = vmax.f32 %v2507, 0.0
      %v2518 = vsel %vm465, 1, 0
      %v2519 = vsel %vm466, 1, 0
      %v2520 = vsel %vm467, 1, 0
      %v2521 = vsel %vm468, 1, 0
      %v2522 = vsel %vm469, 1, 0
      %v2523 = vsel %vm470, 1, 0
      %v2524 = vsel %vm471, 1, 0
      %v2525 = vsel %vm472, 1, 0
      %v2526 = vsel %vm473, 1, 0
      %v2527 = vsel %vm474, 1, 0
      %vm2528 = vcmp.eq.s32.totalorder %v2518, 1
      %vm2529 = vcmp.eq.s32.totalorder %v2519, 1
      %vm2530 = vcmp.eq.s32.totalorder %v2520, 1
      %vm2531 = vcmp.eq.s32.totalorder %v2521, 1
      %vm2532 = vcmp.eq.s32.totalorder %v2522, 1
      %vm2533 = vcmp.eq.s32.totalorder %v2523, 1
      %vm2534 = vcmp.eq.s32.totalorder %v2524, 1
      %vm2535 = vcmp.eq.s32.totalorder %v2525, 1
      %vm2536 = vcmp.eq.s32.totalorder %v2526, 1
      %vm2537 = vcmp.eq.s32.totalorder %v2527, 1
      %v2538 = vsel %vm2528, %v2508, 0.0
      %v2539 = vsel %vm2529, %v2509, 0.0
      %v2540 = vsel %vm2530, %v2510, 0.0
      %v2541 = vsel %vm2531, %v2511, 0.0
      %v2542 = vsel %vm2532, %v2512, 0.0
      %v2543 = vsel %vm2533, %v2513, 0.0
      %v2544 = vsel %vm2534, %v2514, 0.0
      %v2545 = vsel %vm2535, %v2515, 0.0
      %v2546 = vsel %vm2536, %v2516, 0.0
      %v2547 = vsel %vm2537, %v2517, 0.0
      %v2548 = vpack.c.bf16 %v2538, %v2538
      %v2549 = vpack.c.bf16 %v2539, %v2539
      %v2550 = vpack.c.bf16 %v2540, %v2540
      %v2551 = vpack.c.bf16 %v2541, %v2541
      %v2552 = vpack.c.bf16 %v2542, %v2542
      %v2553 = vpack.c.bf16 %v2543, %v2543
      %v2554 = vpack.c.bf16 %v2544, %v2544
      %v2555 = vpack.c.bf16 %v2545, %v2545
      %v2556 = vpack.c.bf16 %v2546, %v2546
      %v2557 = vpack.c.bf16 %v2547, %v2547
      %v2568 = vunpack.c.l.b16 %v2548
      %v2569 = vunpack.c.l.b16 %v2549
      %v2570 = vunpack.c.l.b16 %v2550
      %v2571 = vunpack.c.l.b16 %v2551
      %v2572 = vunpack.c.l.b16 %v2552
      %v2573 = vunpack.c.l.b16 %v2553
      %v2574 = vunpack.c.l.b16 %v2554
      %v2575 = vunpack.c.l.b16 %v2555
      %v2576 = vunpack.c.l.b16 %v2556
      %v2577 = vunpack.c.l.b16 %v2557
      %v2578 = vpack.c.b16 %v2569, %v2568
      %v2579 = vpack.c.b16 %v2571, %v2570
      %v2580 = vpack.c.b16 %v2573, %v2572
      %v2581 = vpack.c.b16 %v2575, %v2574
      %v2582 = vpack.c.b16 %v2577, %v2576
      %2588 = vst [vmem:[#allocation3 + $0x8] sm:$0xff] %v2578
      %2589 = vst [vmem:[#allocation3 + $0x10] sm:$0xff] %v2579
      %2590 = vst [vmem:[#allocation3 + $0x18] sm:$0xff] %v2580
      %2591 = vst [vmem:[#allocation3 + $0x20] sm:$0xff] %v2581
      %2592 = vst [vmem:[#allocation3 + $0x28] sm:$0xff] %v2582
      %v2593 = vld [vmem:[#allocation3] sm:$0xff]
      %v2594 = vld [vmem:[#allocation3 + $0x8] sm:$0xff]
      %v2595 = vld [vmem:[#allocation3 + $0x10] sm:$0xff]
      %v2596 = vld [vmem:[#allocation3 + $0x18] sm:$0xff]
      %v2597 = vld [vmem:[#allocation3 + $0x20] sm:$0xff]
      %v2598 = vld [vmem:[#allocation3 + $0x28] sm:$0xff]
      %v2599 = vld [vmem:[#allocation3 + $0x30] sm:$0xf]
      %2607 = vrot.lane.b32.xlu0 %v2593, 11
      %v2608 = vpop.permute.xlu0 %2607
      %2609 = vrot.lane.b32.xlu0 %v2594, 11
      %v2610 = vpop.permute.xlu0 %2609
      %2611 = vrot.lane.b32.xlu0 %v2595, 11
      %v2612 = vpop.permute.xlu0 %2611
      %2613 = vrot.lane.b32.xlu0 %v2596, 11
      %v2614 = vpop.permute.xlu0 %2613
      %2615 = vrot.lane.b32.xlu0 %v2597, 11
      %v2616 = vpop.permute.xlu0 %2615
      %2617 = vrot.lane.b32.xlu0 %v2598, 11
      %v2618 = vpop.permute.xlu0 %2617
      %2619 = vrot.lane.b32.xlu0 %v2599, 11
      %v2620 = vpop.permute.xlu0 %2619
      %v2621 = vrot.slane %v2608, 4
      %v2622 = vrot.slane %v2610, 4
      %v2623 = vrot.slane %v2612, 4
      %v2624 = vrot.slane %v2614, 4
      %v2625 = vrot.slane %v2616, 4
      %v2626 = vrot.slane %v2618, 4
      %v2627 = vrot.slane %v2620, 4
      %v2628 = vsel %vm510, %v2621, %v2622
      %v2629 = vsel %vm512, %v2608, %v2628
      %v2630 = vsel %vm510, %v2622, %v2623
      %v2631 = vsel %vm512, %v2610, %v2630
      %v2632 = vsel %vm510, %v2623, %v2624
      %v2633 = vsel %vm512, %v2612, %v2632
      %v2634 = vsel %vm510, %v2624, %v2625
      %v2635 = vsel %vm512, %v2614, %v2634
      %v2636 = vsel %vm510, %v2625, %v2626
      %v2637 = vsel %vm512, %v2616, %v2636
      %v2638 = vsel %vm510, %v2626, %v2627
      %v2639 = vsel %vm512, %v2618, %v2638
      %2646 = vst [vmem:[#allocation2] sm:$0xff] %v2629
      %2647 = vst [vmem:[#allocation2 + $0x8] sm:$0xff] %v2631
      %2648 = vst [vmem:[#allocation2 + $0x10] sm:$0xff] %v2633
      %2649 = vst [vmem:[#allocation2 + $0x18] sm:$0xff] %v2635
      %2650 = vst [vmem:[#allocation2 + $0x20] sm:$0xff] %v2637
      %2651 = vst [vmem:[#allocation2 + $0x28] sm:$0xff] %v2639
      %v2652 = vld [vmem:[#allocation3] sm:$0xff]
      %v2653 = vld [vmem:[#allocation3 + $0x8] sm:$0xff]
      %v2654 = vld [vmem:[#allocation3 + $0x10] sm:$0xff]
      %v2655 = vld [vmem:[#allocation3 + $0x18] sm:$0xff]
      %v2656 = vld [vmem:[#allocation3 + $0x20] sm:$0xff]
      %v2657 = vld [vmem:[#allocation3 + $0x28] sm:$0xff]
      %v2658 = vld [vmem:[#allocation3 + $0x30] sm:$0xf]
      %2666 = vrot.lane.b32.xlu0 %v2652, 10
      %v2667 = vpop.permute.xlu0 %2666
      %2668 = vrot.lane.b32.xlu0 %v2653, 10
      %v2669 = vpop.permute.xlu0 %2668
      %2670 = vrot.lane.b32.xlu0 %v2654, 10
      %v2671 = vpop.permute.xlu0 %2670
      %2672 = vrot.lane.b32.xlu0 %v2655, 10
      %v2673 = vpop.permute.xlu0 %2672
      %2674 = vrot.lane.b32.xlu0 %v2656, 10
      %v2675 = vpop.permute.xlu0 %2674
      %2676 = vrot.lane.b32.xlu0 %v2657, 10
      %v2677 = vpop.permute.xlu0 %2676
      %2678 = vrot.lane.b32.xlu0 %v2658, 10
      %v2679 = vpop.permute.xlu0 %2678
      %v2680 = vrot.slane %v2667, 4
      %v2681 = vrot.slane %v2669, 4
      %v2682 = vrot.slane %v2671, 4
      %v2683 = vrot.slane %v2673, 4
      %v2684 = vrot.slane %v2675, 4
      %v2685 = vrot.slane %v2677, 4
      %v2686 = vrot.slane %v2679, 4
      %v2687 = vsel %vm510, %v2680, %v2681
      %v2688 = vsel %vm572, %v2667, %v2687
      %v2689 = vsel %vm510, %v2681, %v2682
      %v2690 = vsel %vm572, %v2669, %v2689
      %v2691 = vsel %vm510, %v2682, %v2683
      %v2692 = vsel %vm572, %v2671, %v2691
      %v2693 = vsel %vm510, %v2683, %v2684
      %v2694 = vsel %vm572, %v2673, %v2693
      %v2695 = vsel %vm510, %v2684, %v2685
      %v2696 = vsel %vm572, %v2675, %v2695
      %v2697 = vsel %vm510, %v2685, %v2686
      %v2698 = vsel %vm572, %v2677, %v2697
      %2705 = vst [vmem:[#allocation2 + $0x30] sm:$0xff] %v2688
      %2706 = vst [vmem:[#allocation2 + $0x38] sm:$0xff] %v2690
      %2707 = vst [vmem:[#allocation2 + $0x40] sm:$0xff] %v2692
      %2708 = vst [vmem:[#allocation2 + $0x48] sm:$0xff] %v2694
      %2709 = vst [vmem:[#allocation2 + $0x50] sm:$0xff] %v2696
      %2710 = vst [vmem:[#allocation2 + $0x58] sm:$0xff] %v2698
      %v2711 = vld [vmem:[#allocation3] sm:$0xff]
      %v2712 = vld [vmem:[#allocation3 + $0x8] sm:$0xff]
      %v2713 = vld [vmem:[#allocation3 + $0x10] sm:$0xff]
      %v2714 = vld [vmem:[#allocation3 + $0x18] sm:$0xff]
      %v2715 = vld [vmem:[#allocation3 + $0x20] sm:$0xff]
      %v2716 = vld [vmem:[#allocation3 + $0x28] sm:$0xff]
      %v2717 = vld [vmem:[#allocation3 + $0x30] sm:$0xf]
      %2725 = vrot.lane.b32.xlu0 %v2711, 9
      %v2726 = vpop.permute.xlu0 %2725
      %2727 = vrot.lane.b32.xlu0 %v2712, 9
      %v2728 = vpop.permute.xlu0 %2727
      %2729 = vrot.lane.b32.xlu0 %v2713, 9
      %v2730 = vpop.permute.xlu0 %2729
      %2731 = vrot.lane.b32.xlu0 %v2714, 9
      %v2732 = vpop.permute.xlu0 %2731
      %2733 = vrot.lane.b32.xlu0 %v2715, 9
      %v2734 = vpop.permute.xlu0 %2733
      %2735 = vrot.lane.b32.xlu0 %v2716, 9
      %v2736 = vpop.permute.xlu0 %2735
      %2737 = vrot.lane.b32.xlu0 %v2717, 9
      %v2738 = vpop.permute.xlu0 %2737
      %v2739 = vrot.slane %v2726, 4
      %v2740 = vrot.slane %v2728, 4
      %v2741 = vrot.slane %v2730, 4
      %v2742 = vrot.slane %v2732, 4
      %v2743 = vrot.slane %v2734, 4
      %v2744 = vrot.slane %v2736, 4
      %v2745 = vrot.slane %v2738, 4
      %v2746 = vsel %vm510, %v2739, %v2740
      %v2747 = vsel %vm632, %v2726, %v2746
      %v2748 = vsel %vm510, %v2740, %v2741
      %v2749 = vsel %vm632, %v2728, %v2748
      %v2750 = vsel %vm510, %v2741, %v2742
      %v2751 = vsel %vm632, %v2730, %v2750
      %v2752 = vsel %vm510, %v2742, %v2743
      %v2753 = vsel %vm632, %v2732, %v2752
      %v2754 = vsel %vm510, %v2743, %v2744
      %v2755 = vsel %vm632, %v2734, %v2754
      %v2756 = vsel %vm510, %v2744, %v2745
      %v2757 = vsel %vm632, %v2736, %v2756
      %2764 = vst [vmem:[#allocation2 + $0x60] sm:$0xff] %v2747
      %2765 = vst [vmem:[#allocation2 + $0x68] sm:$0xff] %v2749
      %2766 = vst [vmem:[#allocation2 + $0x70] sm:$0xff] %v2751
      %2767 = vst [vmem:[#allocation2 + $0x78] sm:$0xff] %v2753
      %2768 = vst [vmem:[#allocation2 + $0x80] sm:$0xff] %v2755
      %2769 = vst [vmem:[#allocation2 + $0x88] sm:$0xff] %v2757
      %v2770 = vld [vmem:[#allocation3] sm:$0xff]
      %v2771 = vld [vmem:[#allocation3 + $0x8] sm:$0xff]
      %v2772 = vld [vmem:[#allocation3 + $0x10] sm:$0xff]
      %v2773 = vld [vmem:[#allocation3 + $0x18] sm:$0xff]
      %v2774 = vld [vmem:[#allocation3 + $0x20] sm:$0xff]
      %v2775 = vld [vmem:[#allocation3 + $0x28] sm:$0xff]
      %v2776 = vld [vmem:[#allocation3 + $0x30] sm:$0xf]
      %2784 = vrot.lane.b32.xlu0 %v2770, 1
      %v2785 = vpop.permute.xlu0 %2784
      %2786 = vrot.lane.b32.xlu0 %v2771, 1
      %v2787 = vpop.permute.xlu0 %2786
      %2788 = vrot.lane.b32.xlu0 %v2772, 1
      %v2789 = vpop.permute.xlu0 %2788
      %2790 = vrot.lane.b32.xlu0 %v2773, 1
      %v2791 = vpop.permute.xlu0 %2790
      %2792 = vrot.lane.b32.xlu0 %v2774, 1
      %v2793 = vpop.permute.xlu0 %2792
      %2794 = vrot.lane.b32.xlu0 %v2775, 1
      %v2795 = vpop.permute.xlu0 %2794
      %2796 = vrot.lane.b32.xlu0 %v2776, 1
      %v2797 = vpop.permute.xlu0 %2796
      %v2798 = vrot.slane %v2785, 4
      %v2799 = vrot.slane %v2787, 4
      %v2800 = vrot.slane %v2789, 4
      %v2801 = vrot.slane %v2791, 4
      %v2802 = vrot.slane %v2793, 4
      %v2803 = vrot.slane %v2795, 4
      %v2804 = vrot.slane %v2797, 4
      %v2805 = vsel %vm510, %v2798, %v2799
      %v2806 = vsel %vm692, %v2785, %v2805
      %v2807 = vsel %vm510, %v2799, %v2800
      %v2808 = vsel %vm692, %v2787, %v2807
      %v2809 = vsel %vm510, %v2800, %v2801
      %v2810 = vsel %vm692, %v2789, %v2809
      %v2811 = vsel %vm510, %v2801, %v2802
      %v2812 = vsel %vm692, %v2791, %v2811
      %v2813 = vsel %vm510, %v2802, %v2803
      %v2814 = vsel %vm692, %v2793, %v2813
      %v2815 = vsel %vm510, %v2803, %v2804
      %v2816 = vsel %vm692, %v2795, %v2815
      %2823 = vst [vmem:[#allocation2 + $0x90] sm:$0xff] %v2806
      %2824 = vst [vmem:[#allocation2 + $0x98] sm:$0xff] %v2808
      %2825 = vst [vmem:[#allocation2 + $0xa0] sm:$0xff] %v2810
      %2826 = vst [vmem:[#allocation2 + $0xa8] sm:$0xff] %v2812
      %2827 = vst [vmem:[#allocation2 + $0xb0] sm:$0xff] %v2814
      %2828 = vst [vmem:[#allocation2 + $0xb8] sm:$0xff] %v2816
      %v2829 = vld [vmem:[#allocation3 + $0x4] sm:$0xff]
      %v2830 = vld [vmem:[#allocation3 + $0xc] sm:$0xff]
      %v2831 = vld [vmem:[#allocation3 + $0x14] sm:$0xff]
      %v2832 = vld [vmem:[#allocation3 + $0x1c] sm:$0xff]
      %v2833 = vld [vmem:[#allocation3 + $0x24] sm:$0xff]
      %v2834 = vld [vmem:[#allocation3 + $0x2c] sm:$0xff]
      %2835 = vst [vmem:[#allocation2 + $0xc0] sm:$0xff] %v2829
      %2836 = vst [vmem:[#allocation2 + $0xc8] sm:$0xff] %v2830
      %2837 = vst [vmem:[#allocation2 + $0xd0] sm:$0xff] %v2831
      %2838 = vst [vmem:[#allocation2 + $0xd8] sm:$0xff] %v2832
      %2839 = vst [vmem:[#allocation2 + $0xe0] sm:$0xff] %v2833
      %2840 = vst [vmem:[#allocation2 + $0xe8] sm:$0xff] %v2834
      %v2841 = vld [vmem:[#allocation3 + $0x4] sm:$0xff]
      %v2842 = vld [vmem:[#allocation3 + $0xc] sm:$0xff]
      %v2843 = vld [vmem:[#allocation3 + $0x14] sm:$0xff]
      %v2844 = vld [vmem:[#allocation3 + $0x1c] sm:$0xff]
      %v2845 = vld [vmem:[#allocation3 + $0x24] sm:$0xff]
      %v2846 = vld [vmem:[#allocation3 + $0x2c] sm:$0xff]
      %v2847 = vld [vmem:[#allocation3 + $0x34] sm:$0xf]
      %2855 = vrot.lane.b32.xlu0 %v2841, 127
      %v2856 = vpop.permute.xlu0 %2855
      %2857 = vrot.lane.b32.xlu0 %v2842, 127
      %v2858 = vpop.permute.xlu0 %2857
      %2859 = vrot.lane.b32.xlu0 %v2843, 127
      %v2860 = vpop.permute.xlu0 %2859
      %2861 = vrot.lane.b32.xlu0 %v2844, 127
      %v2862 = vpop.permute.xlu0 %2861
      %2863 = vrot.lane.b32.xlu0 %v2845, 127
      %v2864 = vpop.permute.xlu0 %2863
      %2865 = vrot.lane.b32.xlu0 %v2846, 127
      %v2866 = vpop.permute.xlu0 %2865
      %2867 = vrot.lane.b32.xlu0 %v2847, 127
      %v2868 = vpop.permute.xlu0 %2867
      %v2869 = vrot.slane %v2856, 4
      %v2870 = vrot.slane %v2858, 4
      %v2871 = vrot.slane %v2860, 4
      %v2872 = vrot.slane %v2862, 4
      %v2873 = vrot.slane %v2864, 4
      %v2874 = vrot.slane %v2866, 4
      %v2875 = vrot.slane %v2868, 4
      %v2876 = vsel %vm510, %v2869, %v2870
      %v2877 = vsel %vm764, %v2856, %v2876
      %v2878 = vsel %vm510, %v2870, %v2871
      %v2879 = vsel %vm764, %v2858, %v2878
      %v2880 = vsel %vm510, %v2871, %v2872
      %v2881 = vsel %vm764, %v2860, %v2880
      %v2882 = vsel %vm510, %v2872, %v2873
      %v2883 = vsel %vm764, %v2862, %v2882
      %v2884 = vsel %vm510, %v2873, %v2874
      %v2885 = vsel %vm764, %v2864, %v2884
      %v2886 = vsel %vm510, %v2874, %v2875
      %v2887 = vsel %vm764, %v2866, %v2886
      %2894 = vst [vmem:[#allocation2 + $0xf0] sm:$0xff] %v2877
      %2895 = vst [vmem:[#allocation2 + $0xf8] sm:$0xff] %v2879
      %2896 = vst [vmem:[#allocation2 + $0x100] sm:$0xff] %v2881
      %2897 = vst [vmem:[#allocation2 + $0x108] sm:$0xff] %v2883
      %2898 = vst [vmem:[#allocation2 + $0x110] sm:$0xff] %v2885
      %2899 = vst [vmem:[#allocation2 + $0x118] sm:$0xff] %v2887
      %v2900 = vld [vmem:[#allocation3 + $0x4] sm:$0xff]
      %v2901 = vld [vmem:[#allocation3 + $0xc] sm:$0xff]
      %v2902 = vld [vmem:[#allocation3 + $0x14] sm:$0xff]
      %v2903 = vld [vmem:[#allocation3 + $0x1c] sm:$0xff]
      %v2904 = vld [vmem:[#allocation3 + $0x24] sm:$0xff]
      %v2905 = vld [vmem:[#allocation3 + $0x2c] sm:$0xff]
      %v2906 = vld [vmem:[#allocation3 + $0x34] sm:$0xf]
      %2914 = vrot.lane.b32.xlu0 %v2900, 119
      %v2915 = vpop.permute.xlu0 %2914
      %2916 = vrot.lane.b32.xlu0 %v2901, 119
      %v2917 = vpop.permute.xlu0 %2916
      %2918 = vrot.lane.b32.xlu0 %v2902, 119
      %v2919 = vpop.permute.xlu0 %2918
      %2920 = vrot.lane.b32.xlu0 %v2903, 119
      %v2921 = vpop.permute.xlu0 %2920
      %2922 = vrot.lane.b32.xlu0 %v2904, 119
      %v2923 = vpop.permute.xlu0 %2922
      %2924 = vrot.lane.b32.xlu0 %v2905, 119
      %v2925 = vpop.permute.xlu0 %2924
      %2926 = vrot.lane.b32.xlu0 %v2906, 119
      %v2927 = vpop.permute.xlu0 %2926
      %v2928 = vrot.slane %v2915, 4
      %v2929 = vrot.slane %v2917, 4
      %v2930 = vrot.slane %v2919, 4
      %v2931 = vrot.slane %v2921, 4
      %v2932 = vrot.slane %v2923, 4
      %v2933 = vrot.slane %v2925, 4
      %v2934 = vrot.slane %v2927, 4
      %v2935 = vsel %vm510, %v2928, %v2929
      %v2936 = vsel %vm824, %v2915, %v2935
      %v2937 = vsel %vm510, %v2929, %v2930
      %v2938 = vsel %vm824, %v2917, %v2937
      %v2939 = vsel %vm510, %v2930, %v2931
      %v2940 = vsel %vm824, %v2919, %v2939
      %v2941 = vsel %vm510, %v2931, %v2932
      %v2942 = vsel %vm824, %v2921, %v2941
      %v2943 = vsel %vm510, %v2932, %v2933
      %v2944 = vsel %vm824, %v2923, %v2943
      %v2945 = vsel %vm510, %v2933, %v2934
      %v2946 = vsel %vm824, %v2925, %v2945
      %2953 = vst [vmem:[#allocation2 + $0x120] sm:$0xff] %v2936
      %2954 = vst [vmem:[#allocation2 + $0x128] sm:$0xff] %v2938
      %2955 = vst [vmem:[#allocation2 + $0x130] sm:$0xff] %v2940
      %2956 = vst [vmem:[#allocation2 + $0x138] sm:$0xff] %v2942
      %2957 = vst [vmem:[#allocation2 + $0x140] sm:$0xff] %v2944
      %2958 = vst [vmem:[#allocation2 + $0x148] sm:$0xff] %v2946
      %v2959 = vld [vmem:[#allocation3 + $0x4] sm:$0xff]
      %v2960 = vld [vmem:[#allocation3 + $0xc] sm:$0xff]
      %v2961 = vld [vmem:[#allocation3 + $0x14] sm:$0xff]
      %v2962 = vld [vmem:[#allocation3 + $0x1c] sm:$0xff]
      %v2963 = vld [vmem:[#allocation3 + $0x24] sm:$0xff]
      %v2964 = vld [vmem:[#allocation3 + $0x2c] sm:$0xff]
      %v2965 = vld [vmem:[#allocation3 + $0x34] sm:$0xf]
      %2973 = vrot.lane.b32.xlu0 %v2959, 118
      %v2974 = vpop.permute.xlu0 %2973
      %2975 = vrot.lane.b32.xlu0 %v2960, 118
      %v2976 = vpop.permute.xlu0 %2975
      %2977 = vrot.lane.b32.xlu0 %v2961, 118
      %v2978 = vpop.permute.xlu0 %2977
      %2979 = vrot.lane.b32.xlu0 %v2962, 118
      %v2980 = vpop.permute.xlu0 %2979
      %2981 = vrot.lane.b32.xlu0 %v2963, 118
      %v2982 = vpop.permute.xlu0 %2981
      %2983 = vrot.lane.b32.xlu0 %v2964, 118
      %v2984 = vpop.permute.xlu0 %2983
      %2985 = vrot.lane.b32.xlu0 %v2965, 118
      %v2986 = vpop.permute.xlu0 %2985
      %v2987 = vrot.slane %v2974, 4
      %v2988 = vrot.slane %v2976, 4
      %v2989 = vrot.slane %v2978, 4
      %v2990 = vrot.slane %v2980, 4
      %v2991 = vrot.slane %v2982, 4
      %v2992 = vrot.slane %v2984, 4
      %v2993 = vrot.slane %v2986, 4
      %v2994 = vsel %vm510, %v2987, %v2988
      %v2995 = vsel %vm884, %v2974, %v2994
      %v2996 = vsel %vm510, %v2988, %v2989
      %v2997 = vsel %vm884, %v2976, %v2996
      %v2998 = vsel %vm510, %v2989, %v2990
      %v2999 = vsel %vm884, %v2978, %v2998
      %v3000 = vsel %vm510, %v2990, %v2991
      %v3001 = vsel %vm884, %v2980, %v3000
      %v3002 = vsel %vm510, %v2991, %v2992
      %v3003 = vsel %vm884, %v2982, %v3002
      %v3004 = vsel %vm510, %v2992, %v2993
      %v3005 = vsel %vm884, %v2984, %v3004
      %3012 = vst [vmem:[#allocation2 + $0x150] sm:$0xff] %v2995
      %3013 = vst [vmem:[#allocation2 + $0x158] sm:$0xff] %v2997
      %3014 = vst [vmem:[#allocation2 + $0x160] sm:$0xff] %v2999
      %3015 = vst [vmem:[#allocation2 + $0x168] sm:$0xff] %v3001
      %3016 = vst [vmem:[#allocation2 + $0x170] sm:$0xff] %v3003
      %3017 = vst [vmem:[#allocation2 + $0x178] sm:$0xff] %v3005
      %v3018 = vld [vmem:[#allocation3 + $0x4] sm:$0xff]
      %v3019 = vld [vmem:[#allocation3 + $0xc] sm:$0xff]
      %v3020 = vld [vmem:[#allocation3 + $0x14] sm:$0xff]
      %v3021 = vld [vmem:[#allocation3 + $0x1c] sm:$0xff]
      %v3022 = vld [vmem:[#allocation3 + $0x24] sm:$0xff]
      %v3023 = vld [vmem:[#allocation3 + $0x2c] sm:$0xff]
      %v3024 = vld [vmem:[#allocation3 + $0x34] sm:$0xf]
      %3032 = vrot.lane.b32.xlu0 %v3018, 117
      %v3033 = vpop.permute.xlu0 %3032
      %3034 = vrot.lane.b32.xlu0 %v3019, 117
      %v3035 = vpop.permute.xlu0 %3034
      %3036 = vrot.lane.b32.xlu0 %v3020, 117
      %v3037 = vpop.permute.xlu0 %3036
      %3038 = vrot.lane.b32.xlu0 %v3021, 117
      %v3039 = vpop.permute.xlu0 %3038
      %3040 = vrot.lane.b32.xlu0 %v3022, 117
      %v3041 = vpop.permute.xlu0 %3040
      %3042 = vrot.lane.b32.xlu0 %v3023, 117
      %v3043 = vpop.permute.xlu0 %3042
      %3044 = vrot.lane.b32.xlu0 %v3024, 117
      %v3045 = vpop.permute.xlu0 %3044
      %v3046 = vrot.slane %v3033, 4
      %v3047 = vrot.slane %v3035, 4
      %v3048 = vrot.slane %v3037, 4
      %v3049 = vrot.slane %v3039, 4
      %v3050 = vrot.slane %v3041, 4
      %v3051 = vrot.slane %v3043, 4
      %v3052 = vrot.slane %v3045, 4
      %v3053 = vsel %vm510, %v3046, %v3047
      %v3054 = vsel %vm944, %v3033, %v3053
      %v3055 = vsel %vm510, %v3047, %v3048
      %v3056 = vsel %vm944, %v3035, %v3055
      %v3057 = vsel %vm510, %v3048, %v3049
      %v3058 = vsel %vm944, %v3037, %v3057
      %v3059 = vsel %vm510, %v3049, %v3050
      %v3060 = vsel %vm944, %v3039, %v3059
      %v3061 = vsel %vm510, %v3050, %v3051
      %v3062 = vsel %vm944, %v3041, %v3061
      %v3063 = vsel %vm510, %v3051, %v3052
      %v3064 = vsel %vm944, %v3043, %v3063
      %3071 = vst [vmem:[#allocation2 + $0x180] sm:$0xff] %v3054
      %3072 = vst [vmem:[#allocation2 + $0x188] sm:$0xff] %v3056
      %3073 = vst [vmem:[#allocation2 + $0x190] sm:$0xff] %v3058
      %3074 = vst [vmem:[#allocation2 + $0x198] sm:$0xff] %v3060
      %3075 = vst [vmem:[#allocation2 + $0x1a0] sm:$0xff] %v3062
      %3076 = vst [vmem:[#allocation2 + $0x1a8] sm:$0xff] %v3064
      %v3077 = vld [vmem:[%s2] sm:$0xf]
      %v3078 = vld [vmem:[#allocation2] sm:$0xff]
      %v3079 = vld [vmem:[#allocation2 + $0x8] sm:$0xff]
      %v3080 = vld [vmem:[#allocation2 + $0x10] sm:$0xff]
      %v3081 = vld [vmem:[#allocation2 + $0x18] sm:$0xff]
      %v3082 = vld [vmem:[#allocation2 + $0x20] sm:$0xff]
      %v3083 = vld [vmem:[#allocation2 + $0x30] sm:$0xff]
      %v3084 = vld [vmem:[#allocation2 + $0x38] sm:$0xff]
      %v3085 = vld [vmem:[#allocation2 + $0x40] sm:$0xff]
      %v3086 = vld [vmem:[#allocation2 + $0x48] sm:$0xff]
      %v3087 = vld [vmem:[#allocation2 + $0x50] sm:$0xff]
      %v3088 = vld [vmem:[#allocation2 + $0x60] sm:$0xff]
      %v3089 = vld [vmem:[#allocation2 + $0x68] sm:$0xff]
      %v3090 = vld [vmem:[#allocation2 + $0x70] sm:$0xff]
      %v3091 = vld [vmem:[#allocation2 + $0x78] sm:$0xff]
      %v3092 = vld [vmem:[#allocation2 + $0x80] sm:$0xff]
      %v3093 = vld [vmem:[#allocation2 + $0x90] sm:$0xff]
      %v3094 = vld [vmem:[#allocation2 + $0x98] sm:$0xff]
      %v3095 = vld [vmem:[#allocation2 + $0xa0] sm:$0xff]
      %v3096 = vld [vmem:[#allocation2 + $0xa8] sm:$0xff]
      %v3097 = vld [vmem:[#allocation2 + $0xb0] sm:$0xff]
      %v3098 = vld [vmem:[#allocation2 + $0xc0] sm:$0xff]
      %v3099 = vld [vmem:[#allocation2 + $0xc8] sm:$0xff]
      %v3100 = vld [vmem:[#allocation2 + $0xd0] sm:$0xff]
      %v3101 = vld [vmem:[#allocation2 + $0xd8] sm:$0xff]
      %v3102 = vld [vmem:[#allocation2 + $0xe0] sm:$0xff]
      %v3103 = vld [vmem:[#allocation2 + $0xf0] sm:$0xff]
      %v3104 = vld [vmem:[#allocation2 + $0xf8] sm:$0xff]
      %v3105 = vld [vmem:[#allocation2 + $0x100] sm:$0xff]
      %v3106 = vld [vmem:[#allocation2 + $0x108] sm:$0xff]
      %v3107 = vld [vmem:[#allocation2 + $0x110] sm:$0xff]
      %v3108 = vld [vmem:[#allocation2 + $0x120] sm:$0xff]
      %v3109 = vld [vmem:[#allocation2 + $0x128] sm:$0xff]
      %v3110 = vld [vmem:[#allocation2 + $0x130] sm:$0xff]
      %v3111 = vld [vmem:[#allocation2 + $0x138] sm:$0xff]
      %v3112 = vld [vmem:[#allocation2 + $0x140] sm:$0xff]
      %v3113 = vld [vmem:[#allocation2 + $0x150] sm:$0xff]
      %v3114 = vld [vmem:[#allocation2 + $0x158] sm:$0xff]
      %v3115 = vld [vmem:[#allocation2 + $0x160] sm:$0xff]
      %v3116 = vld [vmem:[#allocation2 + $0x168] sm:$0xff]
      %v3117 = vld [vmem:[#allocation2 + $0x170] sm:$0xff]
      %v3118 = vld [vmem:[#allocation2 + $0x180] sm:$0xff]
      %v3119 = vld [vmem:[#allocation2 + $0x188] sm:$0xff]
      %v3120 = vld [vmem:[#allocation2 + $0x190] sm:$0xff]
      %v3121 = vld [vmem:[#allocation2 + $0x198] sm:$0xff]
      %v3122 = vld [vmem:[#allocation2 + $0x1a0] sm:$0xff]
      %v3123 = vld [vmem:[#allocation2 + $0x1b0] sm:$0xff]
      %v3124 = vld [vmem:[#allocation2 + $0x1b8] sm:$0xff]
      %v3125 = vld [vmem:[#allocation2 + $0x1c0] sm:$0xff]
      %v3126 = vld [vmem:[#allocation2 + $0x1c8] sm:$0xff]
      %v3127 = vld [vmem:[#allocation2 + $0x1d0] sm:$0xff]
      %s3128 = scalar_lea.vmem %s2, 4
      %v3129 = vld [vmem:[%s3128] sm:$0xf]
      %v3130 = vld [vmem:[#allocation2 + $0x4] sm:$0xff]
      %v3131 = vld [vmem:[#allocation2 + $0xc] sm:$0xff]
      %v3132 = vld [vmem:[#allocation2 + $0x14] sm:$0xff]
      %v3133 = vld [vmem:[#allocation2 + $0x1c] sm:$0xff]
      %v3134 = vld [vmem:[#allocation2 + $0x24] sm:$0xff]
      %v3135 = vld [vmem:[#allocation2 + $0x34] sm:$0xff]
      %v3136 = vld [vmem:[#allocation2 + $0x3c] sm:$0xff]
      %v3137 = vld [vmem:[#allocation2 + $0x44] sm:$0xff]
      %v3138 = vld [vmem:[#allocation2 + $0x4c] sm:$0xff]
      %v3139 = vld [vmem:[#allocation2 + $0x54] sm:$0xff]
      %v3140 = vld [vmem:[#allocation2 + $0x64] sm:$0xff]
      %v3141 = vld [vmem:[#allocation2 + $0x6c] sm:$0xff]
      %v3142 = vld [vmem:[#allocation2 + $0x74] sm:$0xff]
      %v3143 = vld [vmem:[#allocation2 + $0x7c] sm:$0xff]
      %v3144 = vld [vmem:[#allocation2 + $0x84] sm:$0xff]
      %v3145 = vld [vmem:[#allocation2 + $0x94] sm:$0xff]
      %v3146 = vld [vmem:[#allocation2 + $0x9c] sm:$0xff]
      %v3147 = vld [vmem:[#allocation2 + $0xa4] sm:$0xff]
      %v3148 = vld [vmem:[#allocation2 + $0xac] sm:$0xff]
      %v3149 = vld [vmem:[#allocation2 + $0xb4] sm:$0xff]
      %v3150 = vld [vmem:[#allocation2 + $0xc4] sm:$0xff]
      %v3151 = vld [vmem:[#allocation2 + $0xcc] sm:$0xff]
      %v3152 = vld [vmem:[#allocation2 + $0xd4] sm:$0xff]
      %v3153 = vld [vmem:[#allocation2 + $0xdc] sm:$0xff]
      %v3154 = vld [vmem:[#allocation2 + $0xe4] sm:$0xff]
      %v3155 = vld [vmem:[#allocation2 + $0xf4] sm:$0xff]
      %v3156 = vld [vmem:[#allocation2 + $0xfc] sm:$0xff]
      %v3157 = vld [vmem:[#allocation2 + $0x104] sm:$0xff]
      %v3158 = vld [vmem:[#allocation2 + $0x10c] sm:$0xff]
      %v3159 = vld [vmem:[#allocation2 + $0x114] sm:$0xff]
      %v3160 = vld [vmem:[#allocation2 + $0x124] sm:$0xff]
      %v3161 = vld [vmem:[#allocation2 + $0x12c] sm:$0xff]
      %v3162 = vld [vmem:[#allocation2 + $0x134] sm:$0xff]
      %v3163 = vld [vmem:[#allocation2 + $0x13c] sm:$0xff]
      %v3164 = vld [vmem:[#allocation2 + $0x144] sm:$0xff]
      %v3165 = vld [vmem:[#allocation2 + $0x154] sm:$0xff]
      %v3166 = vld [vmem:[#allocation2 + $0x15c] sm:$0xff]
      %v3167 = vld [vmem:[#allocation2 + $0x164] sm:$0xff]
      %v3168 = vld [vmem:[#allocation2 + $0x16c] sm:$0xff]
      %v3169 = vld [vmem:[#allocation2 + $0x174] sm:$0xff]
      %v3170 = vld [vmem:[#allocation2 + $0x184] sm:$0xff]
      %v3171 = vld [vmem:[#allocation2 + $0x18c] sm:$0xff]
      %v3172 = vld [vmem:[#allocation2 + $0x194] sm:$0xff]
      %v3173 = vld [vmem:[#allocation2 + $0x19c] sm:$0xff]
      %v3174 = vld [vmem:[#allocation2 + $0x1a4] sm:$0xff]
      %v3175 = vld [vmem:[#allocation2 + $0x1b4] sm:$0xff]
      %v3176 = vld [vmem:[#allocation2 + $0x1bc] sm:$0xff]
      %v3177 = vld [vmem:[#allocation2 + $0x1c4] sm:$0xff]
      %v3178 = vld [vmem:[#allocation2 + $0x1cc] sm:$0xff]
      %v3179 = vld [vmem:[#allocation2 + $0x1d4] sm:$0xff]
      %v3230 = vunpack.c.l.b16 %v3130
      %v3231 = vunpack.c.h.b16 %v3130
      %v3232 = vunpack.c.l.b16 %v3131
      %v3233 = vunpack.c.h.b16 %v3131
      %v3234 = vunpack.c.l.b16 %v3132
      %v3235 = vunpack.c.h.b16 %v3132
      %v3236 = vunpack.c.l.b16 %v3133
      %v3237 = vunpack.c.h.b16 %v3133
      %v3238 = vunpack.c.l.b16 %v3134
      %v3239 = vunpack.c.h.b16 %v3134
      %v3240 = vunpack.c.l.b16 %v3135
      %v3241 = vunpack.c.h.b16 %v3135
      %v3242 = vunpack.c.l.b16 %v3136
      %v3243 = vunpack.c.h.b16 %v3136
      %v3244 = vunpack.c.l.b16 %v3137
      %v3245 = vunpack.c.h.b16 %v3137
      %v3246 = vunpack.c.l.b16 %v3138
      %v3247 = vunpack.c.h.b16 %v3138
      %v3248 = vunpack.c.l.b16 %v3139
      %v3249 = vunpack.c.h.b16 %v3139
      %v3250 = vunpack.c.l.b16 %v3140
      %v3251 = vunpack.c.h.b16 %v3140
      %v3252 = vunpack.c.l.b16 %v3141
      %v3253 = vunpack.c.h.b16 %v3141
      %v3254 = vunpack.c.l.b16 %v3142
      %v3255 = vunpack.c.h.b16 %v3142
      %v3256 = vunpack.c.l.b16 %v3143
      %v3257 = vunpack.c.h.b16 %v3143
      %v3258 = vunpack.c.l.b16 %v3144
      %v3259 = vunpack.c.h.b16 %v3144
      %v3260 = vunpack.c.l.b16 %v3145
      %v3261 = vunpack.c.h.b16 %v3145
      %v3262 = vunpack.c.l.b16 %v3146
      %v3263 = vunpack.c.h.b16 %v3146
      %v3264 = vunpack.c.l.b16 %v3147
      %v3265 = vunpack.c.h.b16 %v3147
      %v3266 = vunpack.c.l.b16 %v3148
      %v3267 = vunpack.c.h.b16 %v3148
      %v3268 = vunpack.c.l.b16 %v3149
      %v3269 = vunpack.c.h.b16 %v3149
      %v3270 = vunpack.c.l.b16 %v3150
      %v3271 = vunpack.c.h.b16 %v3150
      %v3272 = vunpack.c.l.b16 %v3151
      %v3273 = vunpack.c.h.b16 %v3151
      %v3274 = vunpack.c.l.b16 %v3152
      %v3275 = vunpack.c.h.b16 %v3152
      %v3276 = vunpack.c.l.b16 %v3153
      %v3277 = vunpack.c.h.b16 %v3153
      %v3278 = vunpack.c.l.b16 %v3154
      %v3279 = vunpack.c.h.b16 %v3154
      %v3280 = vunpack.c.l.b16 %v3155
      %v3281 = vunpack.c.h.b16 %v3155
      %v3282 = vunpack.c.l.b16 %v3156
      %v3283 = vunpack.c.h.b16 %v3156
      %v3284 = vunpack.c.l.b16 %v3157
      %v3285 = vunpack.c.h.b16 %v3157
      %v3286 = vunpack.c.l.b16 %v3158
      %v3287 = vunpack.c.h.b16 %v3158
      %v3288 = vunpack.c.l.b16 %v3159
      %v3289 = vunpack.c.h.b16 %v3159
      %v3290 = vunpack.c.l.b16 %v3160
      %v3291 = vunpack.c.h.b16 %v3160
      %v3292 = vunpack.c.l.b16 %v3161
      %v3293 = vunpack.c.h.b16 %v3161
      %v3294 = vunpack.c.l.b16 %v3162
      %v3295 = vunpack.c.h.b16 %v3162
      %v3296 = vunpack.c.l.b16 %v3163
      %v3297 = vunpack.c.h.b16 %v3163
      %v3298 = vunpack.c.l.b16 %v3164
      %v3299 = vunpack.c.h.b16 %v3164
      %v3300 = vunpack.c.l.b16 %v3165
      %v3301 = vunpack.c.h.b16 %v3165
      %v3302 = vunpack.c.l.b16 %v3166
      %v3303 = vunpack.c.h.b16 %v3166
      %v3304 = vunpack.c.l.b16 %v3167
      %v3305 = vunpack.c.h.b16 %v3167
      %v3306 = vunpack.c.l.b16 %v3168
      %v3307 = vunpack.c.h.b16 %v3168
      %v3308 = vunpack.c.l.b16 %v3169
      %v3309 = vunpack.c.h.b16 %v3169
      %v3310 = vunpack.c.l.b16 %v3170
      %v3311 = vunpack.c.h.b16 %v3170
      %v3312 = vunpack.c.l.b16 %v3171
      %v3313 = vunpack.c.h.b16 %v3171
      %v3314 = vunpack.c.l.b16 %v3172
      %v3315 = vunpack.c.h.b16 %v3172
      %v3316 = vunpack.c.l.b16 %v3173
      %v3317 = vunpack.c.h.b16 %v3173
      %v3318 = vunpack.c.l.b16 %v3174
      %v3319 = vunpack.c.h.b16 %v3174
      %v3320 = vunpack.c.l.b16 %v3175
      %v3321 = vunpack.c.h.b16 %v3175
      %v3322 = vunpack.c.l.b16 %v3176
      %v3323 = vunpack.c.h.b16 %v3176
      %v3324 = vunpack.c.l.b16 %v3177
      %v3325 = vunpack.c.h.b16 %v3177
      %v3326 = vunpack.c.l.b16 %v3178
      %v3327 = vunpack.c.h.b16 %v3178
      %v3328 = vunpack.c.l.b16 %v3179
      %v3329 = vunpack.c.h.b16 %v3179
      %v3330 = vpack.c.b16 %v3240, %v3230
      %v3331 = vpack.c.b16 %v3241, %v3231
      %v3332 = vpack.c.b16 %v3242, %v3232
      %v3333 = vpack.c.b16 %v3243, %v3233
      %v3334 = vpack.c.b16 %v3244, %v3234
      %v3335 = vpack.c.b16 %v3245, %v3235
      %v3336 = vpack.c.b16 %v3246, %v3236
      %v3337 = vpack.c.b16 %v3247, %v3237
      %v3338 = vpack.c.b16 %v3248, %v3238
      %v3339 = vpack.c.b16 %v3249, %v3239
      %v3340 = vpack.c.b16 %v3260, %v3250
      %v3341 = vpack.c.b16 %v3261, %v3251
      %v3342 = vpack.c.b16 %v3262, %v3252
      %v3343 = vpack.c.b16 %v3263, %v3253
      %v3344 = vpack.c.b16 %v3264, %v3254
      %v3345 = vpack.c.b16 %v3265, %v3255
      %v3346 = vpack.c.b16 %v3266, %v3256
      %v3347 = vpack.c.b16 %v3267, %v3257
      %v3348 = vpack.c.b16 %v3268, %v3258
      %v3349 = vpack.c.b16 %v3269, %v3259
      %v3350 = vpack.c.b16 %v3280, %v3270
      %v3351 = vpack.c.b16 %v3281, %v3271
      %v3352 = vpack.c.b16 %v3282, %v3272
      %v3353 = vpack.c.b16 %v3283, %v3273
      %v3354 = vpack.c.b16 %v3284, %v3274
      %v3355 = vpack.c.b16 %v3285, %v3275
      %v3356 = vpack.c.b16 %v3286, %v3276
      %v3357 = vpack.c.b16 %v3287, %v3277
      %v3358 = vpack.c.b16 %v3288, %v3278
      %v3359 = vpack.c.b16 %v3289, %v3279
      %v3360 = vpack.c.b16 %v3300, %v3290
      %v3361 = vpack.c.b16 %v3301, %v3291
      %v3362 = vpack.c.b16 %v3302, %v3292
      %v3363 = vpack.c.b16 %v3303, %v3293
      %v3364 = vpack.c.b16 %v3304, %v3294
      %v3365 = vpack.c.b16 %v3305, %v3295
      %v3366 = vpack.c.b16 %v3306, %v3296
      %v3367 = vpack.c.b16 %v3307, %v3297
      %v3368 = vpack.c.b16 %v3308, %v3298
      %v3369 = vpack.c.b16 %v3309, %v3299
      %v3370 = vpack.c.b16 %v3320, %v3310
      %v3371 = vpack.c.b16 %v3321, %v3311
      %v3372 = vpack.c.b16 %v3322, %v3312
      %v3373 = vpack.c.b16 %v3323, %v3313
      %v3374 = vpack.c.b16 %v3324, %v3314
      %v3375 = vpack.c.b16 %v3325, %v3315
      %v3376 = vpack.c.b16 %v3326, %v3316
      %v3377 = vpack.c.b16 %v3327, %v3317
      %v3378 = vpack.c.b16 %v3328, %v3318
      %v3379 = vpack.c.b16 %v3329, %v3319
      %v3431 = vsel %vm1321, %v3129, 0
      %3433 = vmatprep.subr.bf16.mxu0 0
      %3434 = vmatpush1.bf16.msra.mxu0 0
      %3435 = vmatprep.subr.bf16.mxu0 0
      %3436 = vmatpush1.bf16.msra.mxu0 0
      %3437 = vmatprep.subr.bf16.mxu0 0
      %3438 = vmatpush1.bf16.msra.mxu0 0
      %3439 = vmatprep.subr.bf16.mxu0 %v3371
      %3440 = vmatpush1.bf16.msra.mxu0 %v3370
      %3441 = vmatprep.subr.bf16.mxu0 %v3361
      %3442 = vmatpush1.bf16.msra.mxu0 %v3360
      %3443 = vmatprep.subr.bf16.mxu0 %v3351
      %3444 = vmatpush1.bf16.msra.mxu0 %v3350
      %3445 = vmatprep.subr.bf16.mxu0 %v3341
      %3446 = vmatpush1.bf16.msra.mxu0 %v3340
      %3447 = vmatprep.subr.bf16.mxu0 %v3331
      %3448 = vmatpush1.bf16.msra.mxu0 %v3330
      %3449 = vmatprep.subr.bf16.mxu0 0
      %3450 = vmatpush2.bf16.msra.mxu0 0
      %3451 = vmatprep.subr.bf16.mxu0 0
      %3452 = vmatpush2.bf16.msra.mxu0 0
      %3453 = vmatprep.subr.bf16.mxu0 0
      %3454 = vmatpush2.bf16.msra.mxu0 0
      %3455 = vmatprep.subr.bf16.mxu0 0
      %3456 = vmatpush2.bf16.msra.mxu0 0
      %3457 = vmatprep.subr.bf16.mxu0 0
      %3458 = vmatpush2.bf16.msra.mxu0 0
      %3459 = vmatprep.subr.bf16.mxu0 0
      %3460 = vmatpush2.bf16.msra.mxu0 0
      %3461 = vmatprep.subr.bf16.mxu0 0
      %3462 = vmatpush2.bf16.msra.mxu0 0
      %3463 = vmatprep.subr.bf16.mxu0 0
      %3464 = vmatpush2.bf16.msra.mxu0 0
      %3465 = vmatprep.mubr.bf16.mxu0 0
      %3466 = vmatmul.mubr.bf16.gmra.mxu0 %v3431
      %v3467 = vpop.f32.mrf.mxu0
      %v3468 = vadd.f32 0.0, %v3467
      %v3469 = vpop.f32.mrf.mxu0
      %v3470 = vadd.f32 0.0, %v3469
      %v3471 = vpop.f32.mrf.mxu0
      %v3472 = vpop.f32.mrf.mxu0
      %3473 = vdwg.mxu0
      %3474 = vmatprep.subr.bf16.mxu0 0
      %3475 = vmatpush1.bf16.msra.mxu0 0
      %3476 = vmatprep.subr.bf16.mxu0 0
      %3477 = vmatpush1.bf16.msra.mxu0 0
      %3478 = vmatprep.subr.bf16.mxu0 0
      %3479 = vmatpush1.bf16.msra.mxu0 0
      %3480 = vmatprep.subr.bf16.mxu0 %v3373
      %3481 = vmatpush1.bf16.msra.mxu0 %v3372
      %3482 = vmatprep.subr.bf16.mxu0 %v3363
      %3483 = vmatpush1.bf16.msra.mxu0 %v3362
      %3484 = vmatprep.subr.bf16.mxu0 %v3353
      %3485 = vmatpush1.bf16.msra.mxu0 %v3352
      %3486 = vmatprep.subr.bf16.mxu0 %v3343
      %3487 = vmatpush1.bf16.msra.mxu0 %v3342
      %3488 = vmatprep.subr.bf16.mxu0 %v3333
      %3489 = vmatpush1.bf16.msra.mxu0 %v3332
      %3490 = vmatprep.subr.bf16.mxu0 0
      %3491 = vmatpush2.bf16.msra.mxu0 0
      %3492 = vmatprep.subr.bf16.mxu0 0
      %3493 = vmatpush2.bf16.msra.mxu0 0
      %3494 = vmatprep.subr.bf16.mxu0 0
      %3495 = vmatpush2.bf16.msra.mxu0 0
      %3496 = vmatprep.subr.bf16.mxu0 0
      %3497 = vmatpush2.bf16.msra.mxu0 0
      %3498 = vmatprep.subr.bf16.mxu0 0
      %3499 = vmatpush2.bf16.msra.mxu0 0
      %3500 = vmatprep.subr.bf16.mxu0 0
      %3501 = vmatpush2.bf16.msra.mxu0 0
      %3502 = vmatprep.subr.bf16.mxu0 0
      %3503 = vmatpush2.bf16.msra.mxu0 0
      %3504 = vmatprep.subr.bf16.mxu0 0
      %3505 = vmatpush2.bf16.msra.mxu0 0
      %3506 = vmatprep.mubr.bf16.mxu0 0
      %3507 = vmatmul.mubr.bf16.gmra.mxu0 %v3431
      %v3508 = vpop.f32.mrf.mxu0
      %v3509 = vadd.f32 0.0, %v3508
      %v3510 = vpop.f32.mrf.mxu0
      %v3511 = vadd.f32 0.0, %v3510
      %v3512 = vpop.f32.mrf.mxu0
      %v3513 = vpop.f32.mrf.mxu0
      %3514 = vdwg.mxu0
      %3515 = vmatprep.subr.bf16.mxu0 0
      %3516 = vmatpush1.bf16.msra.mxu0 0
      %3517 = vmatprep.subr.bf16.mxu0 0
      %3518 = vmatpush1.bf16.msra.mxu0 0
      %3519 = vmatprep.subr.bf16.mxu0 0
      %3520 = vmatpush1.bf16.msra.mxu0 0
      %3521 = vmatprep.subr.bf16.mxu0 %v3375
      %3522 = vmatpush1.bf16.msra.mxu0 %v3374
      %3523 = vmatprep.subr.bf16.mxu0 %v3365
      %3524 = vmatpush1.bf16.msra.mxu0 %v3364
      %3525 = vmatprep.subr.bf16.mxu0 %v3355
      %3526 = vmatpush1.bf16.msra.mxu0 %v3354
      %3527 = vmatprep.subr.bf16.mxu0 %v3345
      %3528 = vmatpush1.bf16.msra.mxu0 %v3344
      %3529 = vmatprep.subr.bf16.mxu0 %v3335
      %3530 = vmatpush1.bf16.msra.mxu0 %v3334
      %3531 = vmatprep.subr.bf16.mxu0 0
      %3532 = vmatpush2.bf16.msra.mxu0 0
      %3533 = vmatprep.subr.bf16.mxu0 0
      %3534 = vmatpush2.bf16.msra.mxu0 0
      %3535 = vmatprep.subr.bf16.mxu0 0
      %3536 = vmatpush2.bf16.msra.mxu0 0
      %3537 = vmatprep.subr.bf16.mxu0 0
      %3538 = vmatpush2.bf16.msra.mxu0 0
      %3539 = vmatprep.subr.bf16.mxu0 0
      %3540 = vmatpush2.bf16.msra.mxu0 0
      %3541 = vmatprep.subr.bf16.mxu0 0
      %3542 = vmatpush2.bf16.msra.mxu0 0
      %3543 = vmatprep.subr.bf16.mxu0 0
      %3544 = vmatpush2.bf16.msra.mxu0 0
      %3545 = vmatprep.subr.bf16.mxu0 0
      %3546 = vmatpush2.bf16.msra.mxu0 0
      %3547 = vmatprep.mubr.bf16.mxu0 0
      %3548 = vmatmul.mubr.bf16.gmra.mxu0 %v3431
      %v3549 = vpop.f32.mrf.mxu0
      %v3550 = vadd.f32 0.0, %v3549
      %v3551 = vpop.f32.mrf.mxu0
      %v3552 = vadd.f32 0.0, %v3551
      %v3553 = vpop.f32.mrf.mxu0
      %v3554 = vpop.f32.mrf.mxu0
      %3555 = vdwg.mxu0
      %3556 = vmatprep.subr.bf16.mxu0 0
      %3557 = vmatpush1.bf16.msra.mxu0 0
      %3558 = vmatprep.subr.bf16.mxu0 0
      %3559 = vmatpush1.bf16.msra.mxu0 0
      %3560 = vmatprep.subr.bf16.mxu0 0
      %3561 = vmatpush1.bf16.msra.mxu0 0
      %3562 = vmatprep.subr.bf16.mxu0 %v3377
      %3563 = vmatpush1.bf16.msra.mxu0 %v3376
      %3564 = vmatprep.subr.bf16.mxu0 %v3367
      %3565 = vmatpush1.bf16.msra.mxu0 %v3366
      %3566 = vmatprep.subr.bf16.mxu0 %v3357
      %3567 = vmatpush1.bf16.msra.mxu0 %v3356
      %3568 = vmatprep.subr.bf16.mxu0 %v3347
      %3569 = vmatpush1.bf16.msra.mxu0 %v3346
      %3570 = vmatprep.subr.bf16.mxu0 %v3337
      %3571 = vmatpush1.bf16.msra.mxu0 %v3336
      %3572 = vmatprep.subr.bf16.mxu0 0
      %3573 = vmatpush2.bf16.msra.mxu0 0
      %3574 = vmatprep.subr.bf16.mxu0 0
      %3575 = vmatpush2.bf16.msra.mxu0 0
      %3576 = vmatprep.subr.bf16.mxu0 0
      %3577 = vmatpush2.bf16.msra.mxu0 0
      %3578 = vmatprep.subr.bf16.mxu0 0
      %3579 = vmatpush2.bf16.msra.mxu0 0
      %3580 = vmatprep.subr.bf16.mxu0 0
      %3581 = vmatpush2.bf16.msra.mxu0 0
      %3582 = vmatprep.subr.bf16.mxu0 0
      %3583 = vmatpush2.bf16.msra.mxu0 0
      %3584 = vmatprep.subr.bf16.mxu0 0
      %3585 = vmatpush2.bf16.msra.mxu0 0
      %3586 = vmatprep.subr.bf16.mxu0 0
      %3587 = vmatpush2.bf16.msra.mxu0 0
      %3588 = vmatprep.mubr.bf16.mxu0 0
      %3589 = vmatmul.mubr.bf16.gmra.mxu0 %v3431
      %v3590 = vpop.f32.mrf.mxu0
      %v3591 = vadd.f32 0.0, %v3590
      %v3592 = vpop.f32.mrf.mxu0
      %v3593 = vadd.f32 0.0, %v3592
      %v3594 = vpop.f32.mrf.mxu0
      %v3595 = vpop.f32.mrf.mxu0
      %3596 = vdwg.mxu0
      %3597 = vmatprep.subr.bf16.mxu0 0
      %3598 = vmatpush1.bf16.msra.mxu0 0
      %3599 = vmatprep.subr.bf16.mxu0 0
      %3600 = vmatpush1.bf16.msra.mxu0 0
      %3601 = vmatprep.subr.bf16.mxu0 0
      %3602 = vmatpush1.bf16.msra.mxu0 0
      %3603 = vmatprep.subr.bf16.mxu0 %v3379
      %3604 = vmatpush1.bf16.msra.mxu0 %v3378
      %3605 = vmatprep.subr.bf16.mxu0 %v3369
      %3606 = vmatpush1.bf16.msra.mxu0 %v3368
      %3607 = vmatprep.subr.bf16.mxu0 %v3359
      %3608 = vmatpush1.bf16.msra.mxu0 %v3358
      %3609 = vmatprep.subr.bf16.mxu0 %v3349
      %3610 = vmatpush1.bf16.msra.mxu0 %v3348
      %3611 = vmatprep.subr.bf16.mxu0 %v3339
      %3612 = vmatpush1.bf16.msra.mxu0 %v3338
      %3613 = vmatprep.subr.bf16.mxu0 0
      %3614 = vmatpush2.bf16.msra.mxu0 0
      %3615 = vmatprep.subr.bf16.mxu0 0
      %3616 = vmatpush2.bf16.msra.mxu0 0
      %3617 = vmatprep.subr.bf16.mxu0 0
      %3618 = vmatpush2.bf16.msra.mxu0 0
      %3619 = vmatprep.subr.bf16.mxu0 0
      %3620 = vmatpush2.bf16.msra.mxu0 0
      %3621 = vmatprep.subr.bf16.mxu0 0
      %3622 = vmatpush2.bf16.msra.mxu0 0
      %3623 = vmatprep.subr.bf16.mxu0 0
      %3624 = vmatpush2.bf16.msra.mxu0 0
      %3625 = vmatprep.subr.bf16.mxu0 0
      %3626 = vmatpush2.bf16.msra.mxu0 0
      %3627 = vmatprep.subr.bf16.mxu0 0
      %3628 = vmatpush2.bf16.msra.mxu0 0
      %3629 = vmatprep.mubr.bf16.mxu0 0
      %3630 = vmatmul.mubr.bf16.gmra.mxu0 %v3431
      %v3631 = vpop.f32.mrf.mxu0
      %v3632 = vadd.f32 0.0, %v3631
      %v3633 = vpop.f32.mrf.mxu0
      %v3634 = vadd.f32 0.0, %v3633
      %v3635 = vpop.f32.mrf.mxu0
      %v3636 = vpop.f32.mrf.mxu0
      %3637 = vdwg.mxu0
      %v3688 = vunpack.c.l.b16 %v3078
      %v3689 = vunpack.c.h.b16 %v3078
      %v3690 = vunpack.c.l.b16 %v3079
      %v3691 = vunpack.c.h.b16 %v3079
      %v3692 = vunpack.c.l.b16 %v3080
      %v3693 = vunpack.c.h.b16 %v3080
      %v3694 = vunpack.c.l.b16 %v3081
      %v3695 = vunpack.c.h.b16 %v3081
      %v3696 = vunpack.c.l.b16 %v3082
      %v3697 = vunpack.c.h.b16 %v3082
      %v3698 = vunpack.c.l.b16 %v3083
      %v3699 = vunpack.c.h.b16 %v3083
      %v3700 = vunpack.c.l.b16 %v3084
      %v3701 = vunpack.c.h.b16 %v3084
      %v3702 = vunpack.c.l.b16 %v3085
      %v3703 = vunpack.c.h.b16 %v3085
      %v3704 = vunpack.c.l.b16 %v3086
      %v3705 = vunpack.c.h.b16 %v3086
      %v3706 = vunpack.c.l.b16 %v3087
      %v3707 = vunpack.c.h.b16 %v3087
      %v3708 = vunpack.c.l.b16 %v3088
      %v3709 = vunpack.c.h.b16 %v3088
      %v3710 = vunpack.c.l.b16 %v3089
      %v3711 = vunpack.c.h.b16 %v3089
      %v3712 = vunpack.c.l.b16 %v3090
      %v3713 = vunpack.c.h.b16 %v3090
      %v3714 = vunpack.c.l.b16 %v3091
      %v3715 = vunpack.c.h.b16 %v3091
      %v3716 = vunpack.c.l.b16 %v3092
      %v3717 = vunpack.c.h.b16 %v3092
      %v3718 = vunpack.c.l.b16 %v3093
      %v3719 = vunpack.c.h.b16 %v3093
      %v3720 = vunpack.c.l.b16 %v3094
      %v3721 = vunpack.c.h.b16 %v3094
      %v3722 = vunpack.c.l.b16 %v3095
      %v3723 = vunpack.c.h.b16 %v3095
      %v3724 = vunpack.c.l.b16 %v3096
      %v3725 = vunpack.c.h.b16 %v3096
      %v3726 = vunpack.c.l.b16 %v3097
      %v3727 = vunpack.c.h.b16 %v3097
      %v3728 = vunpack.c.l.b16 %v3098
      %v3729 = vunpack.c.h.b16 %v3098
      %v3730 = vunpack.c.l.b16 %v3099
      %v3731 = vunpack.c.h.b16 %v3099
      %v3732 = vunpack.c.l.b16 %v3100
      %v3733 = vunpack.c.h.b16 %v3100
      %v3734 = vunpack.c.l.b16 %v3101
      %v3735 = vunpack.c.h.b16 %v3101
      %v3736 = vunpack.c.l.b16 %v3102
      %v3737 = vunpack.c.h.b16 %v3102
      %v3738 = vunpack.c.l.b16 %v3103
      %v3739 = vunpack.c.h.b16 %v3103
      %v3740 = vunpack.c.l.b16 %v3104
      %v3741 = vunpack.c.h.b16 %v3104
      %v3742 = vunpack.c.l.b16 %v3105
      %v3743 = vunpack.c.h.b16 %v3105
      %v3744 = vunpack.c.l.b16 %v3106
      %v3745 = vunpack.c.h.b16 %v3106
      %v3746 = vunpack.c.l.b16 %v3107
      %v3747 = vunpack.c.h.b16 %v3107
      %v3748 = vunpack.c.l.b16 %v3108
      %v3749 = vunpack.c.h.b16 %v3108
      %v3750 = vunpack.c.l.b16 %v3109
      %v3751 = vunpack.c.h.b16 %v3109
      %v3752 = vunpack.c.l.b16 %v3110
      %v3753 = vunpack.c.h.b16 %v3110
      %v3754 = vunpack.c.l.b16 %v3111
      %v3755 = vunpack.c.h.b16 %v3111
      %v3756 = vunpack.c.l.b16 %v3112
      %v3757 = vunpack.c.h.b16 %v3112
      %v3758 = vunpack.c.l.b16 %v3113
      %v3759 = vunpack.c.h.b16 %v3113
      %v3760 = vunpack.c.l.b16 %v3114
      %v3761 = vunpack.c.h.b16 %v3114
      %v3762 = vunpack.c.l.b16 %v3115
      %v3763 = vunpack.c.h.b16 %v3115
      %v3764 = vunpack.c.l.b16 %v3116
      %v3765 = vunpack.c.h.b16 %v3116
      %v3766 = vunpack.c.l.b16 %v3117
      %v3767 = vunpack.c.h.b16 %v3117
      %v3768 = vunpack.c.l.b16 %v3118
      %v3769 = vunpack.c.h.b16 %v3118
      %v3770 = vunpack.c.l.b16 %v3119
      %v3771 = vunpack.c.h.b16 %v3119
      %v3772 = vunpack.c.l.b16 %v3120
      %v3773 = vunpack.c.h.b16 %v3120
      %v3774 = vunpack.c.l.b16 %v3121
      %v3775 = vunpack.c.h.b16 %v3121
      %v3776 = vunpack.c.l.b16 %v3122
      %v3777 = vunpack.c.h.b16 %v3122
      %v3778 = vunpack.c.l.b16 %v3123
      %v3779 = vunpack.c.h.b16 %v3123
      %v3780 = vunpack.c.l.b16 %v3124
      %v3781 = vunpack.c.h.b16 %v3124
      %v3782 = vunpack.c.l.b16 %v3125
      %v3783 = vunpack.c.h.b16 %v3125
      %v3784 = vunpack.c.l.b16 %v3126
      %v3785 = vunpack.c.h.b16 %v3126
      %v3786 = vunpack.c.l.b16 %v3127
      %v3787 = vunpack.c.h.b16 %v3127
      %v3788 = vpack.c.b16 %v3698, %v3688
      %v3789 = vpack.c.b16 %v3699, %v3689
      %v3790 = vpack.c.b16 %v3700, %v3690
      %v3791 = vpack.c.b16 %v3701, %v3691
      %v3792 = vpack.c.b16 %v3702, %v3692
      %v3793 = vpack.c.b16 %v3703, %v3693
      %v3794 = vpack.c.b16 %v3704, %v3694
      %v3795 = vpack.c.b16 %v3705, %v3695
      %v3796 = vpack.c.b16 %v3706, %v3696
      %v3797 = vpack.c.b16 %v3707, %v3697
      %v3798 = vpack.c.b16 %v3718, %v3708
      %v3799 = vpack.c.b16 %v3719, %v3709
      %v3800 = vpack.c.b16 %v3720, %v3710
      %v3801 = vpack.c.b16 %v3721, %v3711
      %v3802 = vpack.c.b16 %v3722, %v3712
      %v3803 = vpack.c.b16 %v3723, %v3713
      %v3804 = vpack.c.b16 %v3724, %v3714
      %v3805 = vpack.c.b16 %v3725, %v3715
      %v3806 = vpack.c.b16 %v3726, %v3716
      %v3807 = vpack.c.b16 %v3727, %v3717
      %v3808 = vpack.c.b16 %v3738, %v3728
      %v3809 = vpack.c.b16 %v3739, %v3729
      %v3810 = vpack.c.b16 %v3740, %v3730
      %v3811 = vpack.c.b16 %v3741, %v3731
      %v3812 = vpack.c.b16 %v3742, %v3732
      %v3813 = vpack.c.b16 %v3743, %v3733
      %v3814 = vpack.c.b16 %v3744, %v3734
      %v3815 = vpack.c.b16 %v3745, %v3735
      %v3816 = vpack.c.b16 %v3746, %v3736
      %v3817 = vpack.c.b16 %v3747, %v3737
      %v3818 = vpack.c.b16 %v3758, %v3748
      %v3819 = vpack.c.b16 %v3759, %v3749
      %v3820 = vpack.c.b16 %v3760, %v3750
      %v3821 = vpack.c.b16 %v3761, %v3751
      %v3822 = vpack.c.b16 %v3762, %v3752
      %v3823 = vpack.c.b16 %v3763, %v3753
      %v3824 = vpack.c.b16 %v3764, %v3754
      %v3825 = vpack.c.b16 %v3765, %v3755
      %v3826 = vpack.c.b16 %v3766, %v3756
      %v3827 = vpack.c.b16 %v3767, %v3757
      %v3828 = vpack.c.b16 %v3778, %v3768
      %v3829 = vpack.c.b16 %v3779, %v3769
      %v3830 = vpack.c.b16 %v3780, %v3770
      %v3831 = vpack.c.b16 %v3781, %v3771
      %v3832 = vpack.c.b16 %v3782, %v3772
      %v3833 = vpack.c.b16 %v3783, %v3773
      %v3834 = vpack.c.b16 %v3784, %v3774
      %v3835 = vpack.c.b16 %v3785, %v3775
      %v3836 = vpack.c.b16 %v3786, %v3776
      %v3837 = vpack.c.b16 %v3787, %v3777
      %v3889 = vsel %vm1321, %v3077, 0
      %3891 = vmatprep.subr.bf16.mxu0 0
      %3892 = vmatpush1.bf16.msra.mxu0 0
      %3893 = vmatprep.subr.bf16.mxu0 0
      %3894 = vmatpush1.bf16.msra.mxu0 0
      %3895 = vmatprep.subr.bf16.mxu0 0
      %3896 = vmatpush1.bf16.msra.mxu0 0
      %3897 = vmatprep.subr.bf16.mxu0 %v3829
      %3898 = vmatpush1.bf16.msra.mxu0 %v3828
      %3899 = vmatprep.subr.bf16.mxu0 %v3819
      %3900 = vmatpush1.bf16.msra.mxu0 %v3818
      %3901 = vmatprep.subr.bf16.mxu0 %v3809
      %3902 = vmatpush1.bf16.msra.mxu0 %v3808
      %3903 = vmatprep.subr.bf16.mxu0 %v3799
      %3904 = vmatpush1.bf16.msra.mxu0 %v3798
      %3905 = vmatprep.subr.bf16.mxu0 %v3789
      %3906 = vmatpush1.bf16.msra.mxu0 %v3788
      %3907 = vmatprep.subr.bf16.mxu0 0
      %3908 = vmatpush2.bf16.msra.mxu0 0
      %3909 = vmatprep.subr.bf16.mxu0 0
      %3910 = vmatpush2.bf16.msra.mxu0 0
      %3911 = vmatprep.subr.bf16.mxu0 0
      %3912 = vmatpush2.bf16.msra.mxu0 0
      %3913 = vmatprep.subr.bf16.mxu0 0
      %3914 = vmatpush2.bf16.msra.mxu0 0
      %3915 = vmatprep.subr.bf16.mxu0 0
      %3916 = vmatpush2.bf16.msra.mxu0 0
      %3917 = vmatprep.subr.bf16.mxu0 0
      %3918 = vmatpush2.bf16.msra.mxu0 0
      %3919 = vmatprep.subr.bf16.mxu0 0
      %3920 = vmatpush2.bf16.msra.mxu0 0
      %3921 = vmatprep.subr.bf16.mxu0 0
      %3922 = vmatpush2.bf16.msra.mxu0 0
      %3923 = vmatprep.mubr.bf16.mxu0 0
      %3924 = vmatmul.mubr.bf16.gmra.mxu0 %v3889
      %v3925 = vpop.f32.mrf.mxu0
      %v3926 = vadd.f32 %v3468, %v3925
      %v3927 = vpop.f32.mrf.mxu0
      %v3928 = vadd.f32 %v3470, %v3927
      %v3929 = vpop.f32.mrf.mxu0
      %v3930 = vpop.f32.mrf.mxu0
      %3931 = vdwg.mxu0
      %3932 = vmatprep.subr.bf16.mxu0 0
      %3933 = vmatpush1.bf16.msra.mxu0 0
      %3934 = vmatprep.subr.bf16.mxu0 0
      %3935 = vmatpush1.bf16.msra.mxu0 0
      %3936 = vmatprep.subr.bf16.mxu0 0
      %3937 = vmatpush1.bf16.msra.mxu0 0
      %3938 = vmatprep.subr.bf16.mxu0 %v3831
      %3939 = vmatpush1.bf16.msra.mxu0 %v3830
      %3940 = vmatprep.subr.bf16.mxu0 %v3821
      %3941 = vmatpush1.bf16.msra.mxu0 %v3820
      %3942 = vmatprep.subr.bf16.mxu0 %v3811
      %3943 = vmatpush1.bf16.msra.mxu0 %v3810
      %3944 = vmatprep.subr.bf16.mxu0 %v3801
      %3945 = vmatpush1.bf16.msra.mxu0 %v3800
      %3946 = vmatprep.subr.bf16.mxu0 %v3791
      %3947 = vmatpush1.bf16.msra.mxu0 %v3790
      %3948 = vmatprep.subr.bf16.mxu0 0
      %3949 = vmatpush2.bf16.msra.mxu0 0
      %3950 = vmatprep.subr.bf16.mxu0 0
      %3951 = vmatpush2.bf16.msra.mxu0 0
      %3952 = vmatprep.subr.bf16.mxu0 0
      %3953 = vmatpush2.bf16.msra.mxu0 0
      %3954 = vmatprep.subr.bf16.mxu0 0
      %3955 = vmatpush2.bf16.msra.mxu0 0
      %3956 = vmatprep.subr.bf16.mxu0 0
      %3957 = vmatpush2.bf16.msra.mxu0 0
      %3958 = vmatprep.subr.bf16.mxu0 0
      %3959 = vmatpush2.bf16.msra.mxu0 0
      %3960 = vmatprep.subr.bf16.mxu0 0
      %3961 = vmatpush2.bf16.msra.mxu0 0
      %3962 = vmatprep.subr.bf16.mxu0 0
      %3963 = vmatpush2.bf16.msra.mxu0 0
      %3964 = vmatprep.mubr.bf16.mxu0 0
      %3965 = vmatmul.mubr.bf16.gmra.mxu0 %v3889
      %v3966 = vpop.f32.mrf.mxu0
      %v3967 = vadd.f32 %v3509, %v3966
      %v3968 = vpop.f32.mrf.mxu0
      %v3969 = vadd.f32 %v3511, %v3968
      %v3970 = vpop.f32.mrf.mxu0
      %v3971 = vpop.f32.mrf.mxu0
      %3972 = vdwg.mxu0
      %3973 = vmatprep.subr.bf16.mxu0 0
      %3974 = vmatpush1.bf16.msra.mxu0 0
      %3975 = vmatprep.subr.bf16.mxu0 0
      %3976 = vmatpush1.bf16.msra.mxu0 0
      %3977 = vmatprep.subr.bf16.mxu0 0
      %3978 = vmatpush1.bf16.msra.mxu0 0
      %3979 = vmatprep.subr.bf16.mxu0 %v3833
      %3980 = vmatpush1.bf16.msra.mxu0 %v3832
      %3981 = vmatprep.subr.bf16.mxu0 %v3823
      %3982 = vmatpush1.bf16.msra.mxu0 %v3822
      %3983 = vmatprep.subr.bf16.mxu0 %v3813
      %3984 = vmatpush1.bf16.msra.mxu0 %v3812
      %3985 = vmatprep.subr.bf16.mxu0 %v3803
      %3986 = vmatpush1.bf16.msra.mxu0 %v3802
      %3987 = vmatprep.subr.bf16.mxu0 %v3793
      %3988 = vmatpush1.bf16.msra.mxu0 %v3792
      %3989 = vmatprep.subr.bf16.mxu0 0
      %3990 = vmatpush2.bf16.msra.mxu0 0
      %3991 = vmatprep.subr.bf16.mxu0 0
      %3992 = vmatpush2.bf16.msra.mxu0 0
      %3993 = vmatprep.subr.bf16.mxu0 0
      %3994 = vmatpush2.bf16.msra.mxu0 0
      %3995 = vmatprep.subr.bf16.mxu0 0
      %3996 = vmatpush2.bf16.msra.mxu0 0
      %3997 = vmatprep.subr.bf16.mxu0 0
      %3998 = vmatpush2.bf16.msra.mxu0 0
      %3999 = vmatprep.subr.bf16.mxu0 0
      %4000 = vmatpush2.bf16.msra.mxu0 0
      %4001 = vmatprep.subr.bf16.mxu0 0
      %4002 = vmatpush2.bf16.msra.mxu0 0
      %4003 = vmatprep.subr.bf16.mxu0 0
      %4004 = vmatpush2.bf16.msra.mxu0 0
      %4005 = vmatprep.mubr.bf16.mxu0 0
      %4006 = vmatmul.mubr.bf16.gmra.mxu0 %v3889
      %v4007 = vpop.f32.mrf.mxu0
      %v4008 = vadd.f32 %v3550, %v4007
      %v4009 = vpop.f32.mrf.mxu0
      %v4010 = vadd.f32 %v3552, %v4009
      %v4011 = vpop.f32.mrf.mxu0
      %v4012 = vpop.f32.mrf.mxu0
      %4013 = vdwg.mxu0
      %4014 = vmatprep.subr.bf16.mxu0 0
      %4015 = vmatpush1.bf16.msra.mxu0 0
      %4016 = vmatprep.subr.bf16.mxu0 0
      %4017 = vmatpush1.bf16.msra.mxu0 0
      %4018 = vmatprep.subr.bf16.mxu0 0
      %4019 = vmatpush1.bf16.msra.mxu0 0
      %4020 = vmatprep.subr.bf16.mxu0 %v3835
      %4021 = vmatpush1.bf16.msra.mxu0 %v3834
      %4022 = vmatprep.subr.bf16.mxu0 %v3825
      %4023 = vmatpush1.bf16.msra.mxu0 %v3824
      %4024 = vmatprep.subr.bf16.mxu0 %v3815
      %4025 = vmatpush1.bf16.msra.mxu0 %v3814
      %4026 = vmatprep.subr.bf16.mxu0 %v3805
      %4027 = vmatpush1.bf16.msra.mxu0 %v3804
      %4028 = vmatprep.subr.bf16.mxu0 %v3795
      %4029 = vmatpush1.bf16.msra.mxu0 %v3794
      %4030 = vmatprep.subr.bf16.mxu0 0
      %4031 = vmatpush2.bf16.msra.mxu0 0
      %4032 = vmatprep.subr.bf16.mxu0 0
      %4033 = vmatpush2.bf16.msra.mxu0 0
      %4034 = vmatprep.subr.bf16.mxu0 0
      %4035 = vmatpush2.bf16.msra.mxu0 0
      %4036 = vmatprep.subr.bf16.mxu0 0
      %4037 = vmatpush2.bf16.msra.mxu0 0
      %4038 = vmatprep.subr.bf16.mxu0 0
      %4039 = vmatpush2.bf16.msra.mxu0 0
      %4040 = vmatprep.subr.bf16.mxu0 0
      %4041 = vmatpush2.bf16.msra.mxu0 0
      %4042 = vmatprep.subr.bf16.mxu0 0
      %4043 = vmatpush2.bf16.msra.mxu0 0
      %4044 = vmatprep.subr.bf16.mxu0 0
      %4045 = vmatpush2.bf16.msra.mxu0 0
      %4046 = vmatprep.mubr.bf16.mxu0 0
      %4047 = vmatmul.mubr.bf16.gmra.mxu0 %v3889
      %v4048 = vpop.f32.mrf.mxu0
      %v4049 = vadd.f32 %v3591, %v4048
      %v4050 = vpop.f32.mrf.mxu0
      %v4051 = vadd.f32 %v3593, %v4050
      %v4052 = vpop.f32.mrf.mxu0
      %v4053 = vpop.f32.mrf.mxu0
      %4054 = vdwg.mxu0
      %4055 = vmatprep.subr.bf16.mxu0 0
      %4056 = vmatpush1.bf16.msra.mxu0 0
      %4057 = vmatprep.subr.bf16.mxu0 0
      %4058 = vmatpush1.bf16.msra.mxu0 0
      %4059 = vmatprep.subr.bf16.mxu0 0
      %4060 = vmatpush1.bf16.msra.mxu0 0
      %4061 = vmatprep.subr.bf16.mxu0 %v3837
      %4062 = vmatpush1.bf16.msra.mxu0 %v3836
      %4063 = vmatprep.subr.bf16.mxu0 %v3827
      %4064 = vmatpush1.bf16.msra.mxu0 %v3826
      %4065 = vmatprep.subr.bf16.mxu0 %v3817
      %4066 = vmatpush1.bf16.msra.mxu0 %v3816
      %4067 = vmatprep.subr.bf16.mxu0 %v3807
      %4068 = vmatpush1.bf16.msra.mxu0 %v3806
      %4069 = vmatprep.subr.bf16.mxu0 %v3797
      %4070 = vmatpush1.bf16.msra.mxu0 %v3796
      %4071 = vmatprep.subr.bf16.mxu0 0
      %4072 = vmatpush2.bf16.msra.mxu0 0
      %4073 = vmatprep.subr.bf16.mxu0 0
      %4074 = vmatpush2.bf16.msra.mxu0 0
      %4075 = vmatprep.subr.bf16.mxu0 0
      %4076 = vmatpush2.bf16.msra.mxu0 0
      %4077 = vmatprep.subr.bf16.mxu0 0
      %4078 = vmatpush2.bf16.msra.mxu0 0
      %4079 = vmatprep.subr.bf16.mxu0 0
      %4080 = vmatpush2.bf16.msra.mxu0 0
      %4081 = vmatprep.subr.bf16.mxu0 0
      %4082 = vmatpush2.bf16.msra.mxu0 0
      %4083 = vmatprep.subr.bf16.mxu0 0
      %4084 = vmatpush2.bf16.msra.mxu0 0
      %4085 = vmatprep.subr.bf16.mxu0 0
      %4086 = vmatpush2.bf16.msra.mxu0 0
      %4087 = vmatprep.mubr.bf16.mxu0 0
      %4088 = vmatmul.mubr.bf16.gmra.mxu0 %v3889
      %v4089 = vpop.f32.mrf.mxu0
      %v4090 = vadd.f32 %v3632, %v4089
      %v4091 = vpop.f32.mrf.mxu0
      %v4092 = vadd.f32 %v3634, %v4091
      %v4093 = vpop.f32.mrf.mxu0
      %v4094 = vpop.f32.mrf.mxu0
      %4095 = vdwg.mxu0
      %s4096 = scalar_lea.vmem %s2, 8
      %v4097 = vld [vmem:[%s4096] sm:$0xf]
      %v4098 = vld [vmem:[#allocation2 + $0x8] sm:$0xff]
      %v4099 = vld [vmem:[#allocation2 + $0x10] sm:$0xff]
      %v4100 = vld [vmem:[#allocation2 + $0x18] sm:$0xff]
      %v4101 = vld [vmem:[#allocation2 + $0x20] sm:$0xff]
      %v4102 = vld [vmem:[#allocation2 + $0x28] sm:$0xff]
      %v4103 = vld [vmem:[#allocation2 + $0x38] sm:$0xff]
      %v4104 = vld [vmem:[#allocation2 + $0x40] sm:$0xff]
      %v4105 = vld [vmem:[#allocation2 + $0x48] sm:$0xff]
      %v4106 = vld [vmem:[#allocation2 + $0x50] sm:$0xff]
      %v4107 = vld [vmem:[#allocation2 + $0x58] sm:$0xff]
      %v4108 = vld [vmem:[#allocation2 + $0x68] sm:$0xff]
      %v4109 = vld [vmem:[#allocation2 + $0x70] sm:$0xff]
      %v4110 = vld [vmem:[#allocation2 + $0x78] sm:$0xff]
      %v4111 = vld [vmem:[#allocation2 + $0x80] sm:$0xff]
      %v4112 = vld [vmem:[#allocation2 + $0x88] sm:$0xff]
      %v4113 = vld [vmem:[#allocation2 + $0x98] sm:$0xff]
      %v4114 = vld [vmem:[#allocation2 + $0xa0] sm:$0xff]
      %v4115 = vld [vmem:[#allocation2 + $0xa8] sm:$0xff]
      %v4116 = vld [vmem:[#allocation2 + $0xb0] sm:$0xff]
      %v4117 = vld [vmem:[#allocation2 + $0xb8] sm:$0xff]
      %v4118 = vld [vmem:[#allocation2 + $0xc8] sm:$0xff]
      %v4119 = vld [vmem:[#allocation2 + $0xd0] sm:$0xff]
      %v4120 = vld [vmem:[#allocation2 + $0xd8] sm:$0xff]
      %v4121 = vld [vmem:[#allocation2 + $0xe0] sm:$0xff]
      %v4122 = vld [vmem:[#allocation2 + $0xe8] sm:$0xff]
      %v4123 = vld [vmem:[#allocation2 + $0xf8] sm:$0xff]
      %v4124 = vld [vmem:[#allocation2 + $0x100] sm:$0xff]
      %v4125 = vld [vmem:[#allocation2 + $0x108] sm:$0xff]
      %v4126 = vld [vmem:[#allocation2 + $0x110] sm:$0xff]
      %v4127 = vld [vmem:[#allocation2 + $0x118] sm:$0xff]
      %v4128 = vld [vmem:[#allocation2 + $0x128] sm:$0xff]
      %v4129 = vld [vmem:[#allocation2 + $0x130] sm:$0xff]
      %v4130 = vld [vmem:[#allocation2 + $0x138] sm:$0xff]
      %v4131 = vld [vmem:[#allocation2 + $0x140] sm:$0xff]
      %v4132 = vld [vmem:[#allocation2 + $0x148] sm:$0xff]
      %v4133 = vld [vmem:[#allocation2 + $0x158] sm:$0xff]
      %v4134 = vld [vmem:[#allocation2 + $0x160] sm:$0xff]
      %v4135 = vld [vmem:[#allocation2 + $0x168] sm:$0xff]
      %v4136 = vld [vmem:[#allocation2 + $0x170] sm:$0xff]
      %v4137 = vld [vmem:[#allocation2 + $0x178] sm:$0xff]
      %v4138 = vld [vmem:[#allocation2 + $0x188] sm:$0xff]
      %v4139 = vld [vmem:[#allocation2 + $0x190] sm:$0xff]
      %v4140 = vld [vmem:[#allocation2 + $0x198] sm:$0xff]
      %v4141 = vld [vmem:[#allocation2 + $0x1a0] sm:$0xff]
      %v4142 = vld [vmem:[#allocation2 + $0x1a8] sm:$0xff]
      %v4143 = vld [vmem:[#allocation2 + $0x1b8] sm:$0xff]
      %v4144 = vld [vmem:[#allocation2 + $0x1c0] sm:$0xff]
      %v4145 = vld [vmem:[#allocation2 + $0x1c8] sm:$0xff]
      %v4146 = vld [vmem:[#allocation2 + $0x1d0] sm:$0xff]
      %v4147 = vld [vmem:[#allocation2 + $0x1d8] sm:$0xff]
      %v4198 = vunpack.c.l.b16 %v4098
      %v4199 = vunpack.c.h.b16 %v4098
      %v4200 = vunpack.c.l.b16 %v4099
      %v4201 = vunpack.c.h.b16 %v4099
      %v4202 = vunpack.c.l.b16 %v4100
      %v4203 = vunpack.c.h.b16 %v4100
      %v4204 = vunpack.c.l.b16 %v4101
      %v4205 = vunpack.c.h.b16 %v4101
      %v4206 = vunpack.c.l.b16 %v4102
      %v4207 = vunpack.c.h.b16 %v4102
      %v4208 = vunpack.c.l.b16 %v4103
      %v4209 = vunpack.c.h.b16 %v4103
      %v4210 = vunpack.c.l.b16 %v4104
      %v4211 = vunpack.c.h.b16 %v4104
      %v4212 = vunpack.c.l.b16 %v4105
      %v4213 = vunpack.c.h.b16 %v4105
      %v4214 = vunpack.c.l.b16 %v4106
      %v4215 = vunpack.c.h.b16 %v4106
      %v4216 = vunpack.c.l.b16 %v4107
      %v4217 = vunpack.c.h.b16 %v4107
      %v4218 = vunpack.c.l.b16 %v4108
      %v4219 = vunpack.c.h.b16 %v4108
      %v4220 = vunpack.c.l.b16 %v4109
      %v4221 = vunpack.c.h.b16 %v4109
      %v4222 = vunpack.c.l.b16 %v4110
      %v4223 = vunpack.c.h.b16 %v4110
      %v4224 = vunpack.c.l.b16 %v4111
      %v4225 = vunpack.c.h.b16 %v4111
      %v4226 = vunpack.c.l.b16 %v4112
      %v4227 = vunpack.c.h.b16 %v4112
      %v4228 = vunpack.c.l.b16 %v4113
      %v4229 = vunpack.c.h.b16 %v4113
      %v4230 = vunpack.c.l.b16 %v4114
      %v4231 = vunpack.c.h.b16 %v4114
      %v4232 = vunpack.c.l.b16 %v4115
      %v4233 = vunpack.c.h.b16 %v4115
      %v4234 = vunpack.c.l.b16 %v4116
      %v4235 = vunpack.c.h.b16 %v4116
      %v4236 = vunpack.c.l.b16 %v4117
      %v4237 = vunpack.c.h.b16 %v4117
      %v4238 = vunpack.c.l.b16 %v4118
      %v4239 = vunpack.c.h.b16 %v4118
      %v4240 = vunpack.c.l.b16 %v4119
      %v4241 = vunpack.c.h.b16 %v4119
      %v4242 = vunpack.c.l.b16 %v4120
      %v4243 = vunpack.c.h.b16 %v4120
      %v4244 = vunpack.c.l.b16 %v4121
      %v4245 = vunpack.c.h.b16 %v4121
      %v4246 = vunpack.c.l.b16 %v4122
      %v4247 = vunpack.c.h.b16 %v4122
      %v4248 = vunpack.c.l.b16 %v4123
      %v4249 = vunpack.c.h.b16 %v4123
      %v4250 = vunpack.c.l.b16 %v4124
      %v4251 = vunpack.c.h.b16 %v4124
      %v4252 = vunpack.c.l.b16 %v4125
      %v4253 = vunpack.c.h.b16 %v4125
      %v4254 = vunpack.c.l.b16 %v4126
      %v4255 = vunpack.c.h.b16 %v4126
      %v4256 = vunpack.c.l.b16 %v4127
      %v4257 = vunpack.c.h.b16 %v4127
      %v4258 = vunpack.c.l.b16 %v4128
      %v4259 = vunpack.c.h.b16 %v4128
      %v4260 = vunpack.c.l.b16 %v4129
      %v4261 = vunpack.c.h.b16 %v4129
      %v4262 = vunpack.c.l.b16 %v4130
      %v4263 = vunpack.c.h.b16 %v4130
      %v4264 = vunpack.c.l.b16 %v4131
      %v4265 = vunpack.c.h.b16 %v4131
      %v4266 = vunpack.c.l.b16 %v4132
      %v4267 = vunpack.c.h.b16 %v4132
      %v4268 = vunpack.c.l.b16 %v4133
      %v4269 = vunpack.c.h.b16 %v4133
      %v4270 = vunpack.c.l.b16 %v4134
      %v4271 = vunpack.c.h.b16 %v4134
      %v4272 = vunpack.c.l.b16 %v4135
      %v4273 = vunpack.c.h.b16 %v4135
      %v4274 = vunpack.c.l.b16 %v4136
      %v4275 = vunpack.c.h.b16 %v4136
      %v4276 = vunpack.c.l.b16 %v4137
      %v4277 = vunpack.c.h.b16 %v4137
      %v4278 = vunpack.c.l.b16 %v4138
      %v4279 = vunpack.c.h.b16 %v4138
      %v4280 = vunpack.c.l.b16 %v4139
      %v4281 = vunpack.c.h.b16 %v4139
      %v4282 = vunpack.c.l.b16 %v4140
      %v4283 = vunpack.c.h.b16 %v4140
      %v4284 = vunpack.c.l.b16 %v4141
      %v4285 = vunpack.c.h.b16 %v4141
      %v4286 = vunpack.c.l.b16 %v4142
      %v4287 = vunpack.c.h.b16 %v4142
      %v4288 = vunpack.c.l.b16 %v4143
      %v4289 = vunpack.c.h.b16 %v4143
      %v4290 = vunpack.c.l.b16 %v4144
      %v4291 = vunpack.c.h.b16 %v4144
      %v4292 = vunpack.c.l.b16 %v4145
      %v4293 = vunpack.c.h.b16 %v4145
      %v4294 = vunpack.c.l.b16 %v4146
      %v4295 = vunpack.c.h.b16 %v4146
      %v4296 = vunpack.c.l.b16 %v4147
      %v4297 = vunpack.c.h.b16 %v4147
      %v4298 = vpack.c.b16 %v4208, %v4198
      %v4299 = vpack.c.b16 %v4209, %v4199
      %v4300 = vpack.c.b16 %v4210, %v4200
      %v4301 = vpack.c.b16 %v4211, %v4201
      %v4302 = vpack.c.b16 %v4212, %v4202
      %v4303 = vpack.c.b16 %v4213, %v4203
      %v4304 = vpack.c.b16 %v4214, %v4204
      %v4305 = vpack.c.b16 %v4215, %v4205
      %v4306 = vpack.c.b16 %v4216, %v4206
      %v4307 = vpack.c.b16 %v4217, %v4207
      %v4308 = vpack.c.b16 %v4228, %v4218
      %v4309 = vpack.c.b16 %v4229, %v4219
      %v4310 = vpack.c.b16 %v4230, %v4220
      %v4311 = vpack.c.b16 %v4231, %v4221
      %v4312 = vpack.c.b16 %v4232, %v4222
      %v4313 = vpack.c.b16 %v4233, %v4223
      %v4314 = vpack.c.b16 %v4234, %v4224
      %v4315 = vpack.c.b16 %v4235, %v4225
      %v4316 = vpack.c.b16 %v4236, %v4226
      %v4317 = vpack.c.b16 %v4237, %v4227
      %v4318 = vpack.c.b16 %v4248, %v4238
      %v4319 = vpack.c.b16 %v4249, %v4239
      %v4320 = vpack.c.b16 %v4250, %v4240
      %v4321 = vpack.c.b16 %v4251, %v4241
      %v4322 = vpack.c.b16 %v4252, %v4242
      %v4323 = vpack.c.b16 %v4253, %v4243
      %v4324 = vpack.c.b16 %v4254, %v4244
      %v4325 = vpack.c.b16 %v4255, %v4245
      %v4326 = vpack.c.b16 %v4256, %v4246
      %v4327 = vpack.c.b16 %v4257, %v4247
      %v4328 = vpack.c.b16 %v4268, %v4258
      %v4329 = vpack.c.b16 %v4269, %v4259
      %v4330 = vpack.c.b16 %v4270, %v4260
      %v4331 = vpack.c.b16 %v4271, %v4261
      %v4332 = vpack.c.b16 %v4272, %v4262
      %v4333 = vpack.c.b16 %v4273, %v4263
      %v4334 = vpack.c.b16 %v4274, %v4264
      %v4335 = vpack.c.b16 %v4275, %v4265
      %v4336 = vpack.c.b16 %v4276, %v4266
      %v4337 = vpack.c.b16 %v4277, %v4267
      %v4338 = vpack.c.b16 %v4288, %v4278
      %v4339 = vpack.c.b16 %v4289, %v4279
      %v4340 = vpack.c.b16 %v4290, %v4280
      %v4341 = vpack.c.b16 %v4291, %v4281
      %v4342 = vpack.c.b16 %v4292, %v4282
      %v4343 = vpack.c.b16 %v4293, %v4283
      %v4344 = vpack.c.b16 %v4294, %v4284
      %v4345 = vpack.c.b16 %v4295, %v4285
      %v4346 = vpack.c.b16 %v4296, %v4286
      %v4347 = vpack.c.b16 %v4297, %v4287
      %v4399 = vsel %vm1321, %v4097, 0
      %4401 = vmatprep.subr.bf16.mxu0 0
      %4402 = vmatpush1.bf16.msra.mxu0 0
      %4403 = vmatprep.subr.bf16.mxu0 0
      %4404 = vmatpush1.bf16.msra.mxu0 0
      %4405 = vmatprep.subr.bf16.mxu0 0
      %4406 = vmatpush1.bf16.msra.mxu0 0
      %4407 = vmatprep.subr.bf16.mxu0 %v4339
      %4408 = vmatpush1.bf16.msra.mxu0 %v4338
      %4409 = vmatprep.subr.bf16.mxu0 %v4329
      %4410 = vmatpush1.bf16.msra.mxu0 %v4328
      %4411 = vmatprep.subr.bf16.mxu0 %v4319
      %4412 = vmatpush1.bf16.msra.mxu0 %v4318
      %4413 = vmatprep.subr.bf16.mxu0 %v4309
      %4414 = vmatpush1.bf16.msra.mxu0 %v4308
      %4415 = vmatprep.subr.bf16.mxu0 %v4299
      %4416 = vmatpush1.bf16.msra.mxu0 %v4298
      %4417 = vmatprep.subr.bf16.mxu0 0
      %4418 = vmatpush2.bf16.msra.mxu0 0
      %4419 = vmatprep.subr.bf16.mxu0 0
      %4420 = vmatpush2.bf16.msra.mxu0 0
      %4421 = vmatprep.subr.bf16.mxu0 0
      %4422 = vmatpush2.bf16.msra.mxu0 0
      %4423 = vmatprep.subr.bf16.mxu0 0
      %4424 = vmatpush2.bf16.msra.mxu0 0
      %4425 = vmatprep.subr.bf16.mxu0 0
      %4426 = vmatpush2.bf16.msra.mxu0 0
      %4427 = vmatprep.subr.bf16.mxu0 0
      %4428 = vmatpush2.bf16.msra.mxu0 0
      %4429 = vmatprep.subr.bf16.mxu0 0
      %4430 = vmatpush2.bf16.msra.mxu0 0
      %4431 = vmatprep.subr.bf16.mxu0 0
      %4432 = vmatpush2.bf16.msra.mxu0 0
      %4433 = vmatprep.mubr.bf16.mxu0 0
      %4434 = vmatmul.mubr.bf16.gmra.mxu0 %v4399
      %v4435 = vpop.f32.mrf.mxu0
      %v4436 = vadd.f32 0.0, %v4435
      %v4437 = vpop.f32.mrf.mxu0
      %v4438 = vadd.f32 0.0, %v4437
      %v4439 = vpop.f32.mrf.mxu0
      %v4440 = vpop.f32.mrf.mxu0
      %4441 = vdwg.mxu0
      %4442 = vmatprep.subr.bf16.mxu0 0
      %4443 = vmatpush1.bf16.msra.mxu0 0
      %4444 = vmatprep.subr.bf16.mxu0 0
      %4445 = vmatpush1.bf16.msra.mxu0 0
      %4446 = vmatprep.subr.bf16.mxu0 0
      %4447 = vmatpush1.bf16.msra.mxu0 0
      %4448 = vmatprep.subr.bf16.mxu0 %v4341
      %4449 = vmatpush1.bf16.msra.mxu0 %v4340
      %4450 = vmatprep.subr.bf16.mxu0 %v4331
      %4451 = vmatpush1.bf16.msra.mxu0 %v4330
      %4452 = vmatprep.subr.bf16.mxu0 %v4321
      %4453 = vmatpush1.bf16.msra.mxu0 %v4320
      %4454 = vmatprep.subr.bf16.mxu0 %v4311
      %4455 = vmatpush1.bf16.msra.mxu0 %v4310
      %4456 = vmatprep.subr.bf16.mxu0 %v4301
      %4457 = vmatpush1.bf16.msra.mxu0 %v4300
      %4458 = vmatprep.subr.bf16.mxu0 0
      %4459 = vmatpush2.bf16.msra.mxu0 0
      %4460 = vmatprep.subr.bf16.mxu0 0
      %4461 = vmatpush2.bf16.msra.mxu0 0
      %4462 = vmatprep.subr.bf16.mxu0 0
      %4463 = vmatpush2.bf16.msra.mxu0 0
      %4464 = vmatprep.subr.bf16.mxu0 0
      %4465 = vmatpush2.bf16.msra.mxu0 0
      %4466 = vmatprep.subr.bf16.mxu0 0
      %4467 = vmatpush2.bf16.msra.mxu0 0
      %4468 = vmatprep.subr.bf16.mxu0 0
      %4469 = vmatpush2.bf16.msra.mxu0 0
      %4470 = vmatprep.subr.bf16.mxu0 0
      %4471 = vmatpush2.bf16.msra.mxu0 0
      %4472 = vmatprep.subr.bf16.mxu0 0
      %4473 = vmatpush2.bf16.msra.mxu0 0
      %4474 = vmatprep.mubr.bf16.mxu0 0
      %4475 = vmatmul.mubr.bf16.gmra.mxu0 %v4399
      %v4476 = vpop.f32.mrf.mxu0
      %v4477 = vadd.f32 0.0, %v4476
      %v4478 = vpop.f32.mrf.mxu0
      %v4479 = vadd.f32 0.0, %v4478
      %v4480 = vpop.f32.mrf.mxu0
      %v4481 = vpop.f32.mrf.mxu0
      %4482 = vdwg.mxu0
      %4483 = vmatprep.subr.bf16.mxu0 0
      %4484 = vmatpush1.bf16.msra.mxu0 0
      %4485 = vmatprep.subr.bf16.mxu0 0
      %4486 = vmatpush1.bf16.msra.mxu0 0
      %4487 = vmatprep.subr.bf16.mxu0 0
      %4488 = vmatpush1.bf16.msra.mxu0 0
      %4489 = vmatprep.subr.bf16.mxu0 %v4343
      %4490 = vmatpush1.bf16.msra.mxu0 %v4342
      %4491 = vmatprep.subr.bf16.mxu0 %v4333
      %4492 = vmatpush1.bf16.msra.mxu0 %v4332
      %4493 = vmatprep.subr.bf16.mxu0 %v4323
      %4494 = vmatpush1.bf16.msra.mxu0 %v4322
      %4495 = vmatprep.subr.bf16.mxu0 %v4313
      %4496 = vmatpush1.bf16.msra.mxu0 %v4312
      %4497 = vmatprep.subr.bf16.mxu0 %v4303
      %4498 = vmatpush1.bf16.msra.mxu0 %v4302
      %4499 = vmatprep.subr.bf16.mxu0 0
      %4500 = vmatpush2.bf16.msra.mxu0 0
      %4501 = vmatprep.subr.bf16.mxu0 0
      %4502 = vmatpush2.bf16.msra.mxu0 0
      %4503 = vmatprep.subr.bf16.mxu0 0
      %4504 = vmatpush2.bf16.msra.mxu0 0
      %4505 = vmatprep.subr.bf16.mxu0 0
      %4506 = vmatpush2.bf16.msra.mxu0 0
      %4507 = vmatprep.subr.bf16.mxu0 0
      %4508 = vmatpush2.bf16.msra.mxu0 0
      %4509 = vmatprep.subr.bf16.mxu0 0
      %4510 = vmatpush2.bf16.msra.mxu0 0
      %4511 = vmatprep.subr.bf16.mxu0 0
      %4512 = vmatpush2.bf16.msra.mxu0 0
      %4513 = vmatprep.subr.bf16.mxu0 0
      %4514 = vmatpush2.bf16.msra.mxu0 0
      %4515 = vmatprep.mubr.bf16.mxu0 0
      %4516 = vmatmul.mubr.bf16.gmra.mxu0 %v4399
      %v4517 = vpop.f32.mrf.mxu0
      %v4518 = vadd.f32 0.0, %v4517
      %v4519 = vpop.f32.mrf.mxu0
      %v4520 = vadd.f32 0.0, %v4519
      %v4521 = vpop.f32.mrf.mxu0
      %v4522 = vpop.f32.mrf.mxu0
      %4523 = vdwg.mxu0
      %4524 = vmatprep.subr.bf16.mxu0 0
      %4525 = vmatpush1.bf16.msra.mxu0 0
      %4526 = vmatprep.subr.bf16.mxu0 0
      %4527 = vmatpush1.bf16.msra.mxu0 0
      %4528 = vmatprep.subr.bf16.mxu0 0
      %4529 = vmatpush1.bf16.msra.mxu0 0
      %4530 = vmatprep.subr.bf16.mxu0 %v4345
      %4531 = vmatpush1.bf16.msra.mxu0 %v4344
      %4532 = vmatprep.subr.bf16.mxu0 %v4335
      %4533 = vmatpush1.bf16.msra.mxu0 %v4334
      %4534 = vmatprep.subr.bf16.mxu0 %v4325
      %4535 = vmatpush1.bf16.msra.mxu0 %v4324
      %4536 = vmatprep.subr.bf16.mxu0 %v4315
      %4537 = vmatpush1.bf16.msra.mxu0 %v4314
      %4538 = vmatprep.subr.bf16.mxu0 %v4305
      %4539 = vmatpush1.bf16.msra.mxu0 %v4304
      %4540 = vmatprep.subr.bf16.mxu0 0
      %4541 = vmatpush2.bf16.msra.mxu0 0
      %4542 = vmatprep.subr.bf16.mxu0 0
      %4543 = vmatpush2.bf16.msra.mxu0 0
      %4544 = vmatprep.subr.bf16.mxu0 0
      %4545 = vmatpush2.bf16.msra.mxu0 0
      %4546 = vmatprep.subr.bf16.mxu0 0
      %4547 = vmatpush2.bf16.msra.mxu0 0
      %4548 = vmatprep.subr.bf16.mxu0 0
      %4549 = vmatpush2.bf16.msra.mxu0 0
      %4550 = vmatprep.subr.bf16.mxu0 0
      %4551 = vmatpush2.bf16.msra.mxu0 0
      %4552 = vmatprep.subr.bf16.mxu0 0
      %4553 = vmatpush2.bf16.msra.mxu0 0
      %4554 = vmatprep.subr.bf16.mxu0 0
      %4555 = vmatpush2.bf16.msra.mxu0 0
      %4556 = vmatprep.mubr.bf16.mxu0 0
      %4557 = vmatmul.mubr.bf16.gmra.mxu0 %v4399
      %v4558 = vpop.f32.mrf.mxu0
      %v4559 = vadd.f32 0.0, %v4558
      %v4560 = vpop.f32.mrf.mxu0
      %v4561 = vadd.f32 0.0, %v4560
      %v4562 = vpop.f32.mrf.mxu0
      %v4563 = vpop.f32.mrf.mxu0
      %4564 = vdwg.mxu0
      %4565 = vmatprep.subr.bf16.mxu0 0
      %4566 = vmatpush1.bf16.msra.mxu0 0
      %4567 = vmatprep.subr.bf16.mxu0 0
      %4568 = vmatpush1.bf16.msra.mxu0 0
      %4569 = vmatprep.subr.bf16.mxu0 0
      %4570 = vmatpush1.bf16.msra.mxu0 0
      %4571 = vmatprep.subr.bf16.mxu0 %v4347
      %4572 = vmatpush1.bf16.msra.mxu0 %v4346
      %4573 = vmatprep.subr.bf16.mxu0 %v4337
      %4574 = vmatpush1.bf16.msra.mxu0 %v4336
      %4575 = vmatprep.subr.bf16.mxu0 %v4327
      %4576 = vmatpush1.bf16.msra.mxu0 %v4326
      %4577 = vmatprep.subr.bf16.mxu0 %v4317
      %4578 = vmatpush1.bf16.msra.mxu0 %v4316
      %4579 = vmatprep.subr.bf16.mxu0 %v4307
      %4580 = vmatpush1.bf16.msra.mxu0 %v4306
      %4581 = vmatprep.subr.bf16.mxu0 0
      %4582 = vmatpush2.bf16.msra.mxu0 0
      %4583 = vmatprep.subr.bf16.mxu0 0
      %4584 = vmatpush2.bf16.msra.mxu0 0
      %4585 = vmatprep.subr.bf16.mxu0 0
      %4586 = vmatpush2.bf16.msra.mxu0 0
      %4587 = vmatprep.subr.bf16.mxu0 0
      %4588 = vmatpush2.bf16.msra.mxu0 0
      %4589 = vmatprep.subr.bf16.mxu0 0
      %4590 = vmatpush2.bf16.msra.mxu0 0
      %4591 = vmatprep.subr.bf16.mxu0 0
      %4592 = vmatpush2.bf16.msra.mxu0 0
      %4593 = vmatprep.subr.bf16.mxu0 0
      %4594 = vmatpush2.bf16.msra.mxu0 0
      %4595 = vmatprep.subr.bf16.mxu0 0
      %4596 = vmatpush2.bf16.msra.mxu0 0
      %4597 = vmatprep.mubr.bf16.mxu0 0
      %4598 = vmatmul.mubr.bf16.gmra.mxu0 %v4399
      %v4599 = vpop.f32.mrf.mxu0
      %v4600 = vadd.f32 0.0, %v4599
      %v4601 = vpop.f32.mrf.mxu0
      %v4602 = vadd.f32 0.0, %v4601
      %v4603 = vpop.f32.mrf.mxu0
      %v4604 = vpop.f32.mrf.mxu0
      %4605 = vdwg.mxu0
      %v4606 = vadd.f32 %v3926, %v4436
      %v4607 = vadd.f32 %v3928, %v4438
      %v4608 = vadd.f32 %v3967, %v4477
      %v4609 = vadd.f32 %v3969, %v4479
      %v4610 = vadd.f32 %v4008, %v4518
      %v4611 = vadd.f32 %v4010, %v4520
      %v4612 = vadd.f32 %v4049, %v4559
      %v4613 = vadd.f32 %v4051, %v4561
      %v4614 = vadd.f32 %v4090, %v4600
      %v4615 = vadd.f32 %v4092, %v4602
      %v4616 = vld [vmem:[%s165 + $0x8] sm:$0xff]
      %v4617 = vld [vmem:[%s165 + $0x10] sm:$0xff]
      %v4618 = vld [vmem:[%s165 + $0x18] sm:$0xff]
      %v4619 = vld [vmem:[%s165 + $0x20] sm:$0xff]
      %v4620 = vld [vmem:[%s165 + $0x28] sm:$0xff]
      %v4621 = vunpack.c.l.bf16 %v4616
      %v4622 = vunpack.c.h.bf16 %v4616
      %v4623 = vunpack.c.l.bf16 %v4617
      %v4624 = vunpack.c.h.bf16 %v4617
      %v4625 = vunpack.c.l.bf16 %v4618
      %v4626 = vunpack.c.h.bf16 %v4618
      %v4627 = vunpack.c.l.bf16 %v4619
      %v4628 = vunpack.c.h.bf16 %v4619
      %v4629 = vunpack.c.l.bf16 %v4620
      %v4630 = vunpack.c.h.bf16 %v4620
      %v4631 = vadd.f32 %v4606, %v4621
      %v4632 = vadd.f32 %v4607, %v4622
      %v4633 = vadd.f32 %v4608, %v4623
      %v4634 = vadd.f32 %v4609, %v4624
      %v4635 = vadd.f32 %v4610, %v4625
      %v4636 = vadd.f32 %v4611, %v4626
      %v4637 = vadd.f32 %v4612, %v4627
      %v4638 = vadd.f32 %v4613, %v4628
      %v4639 = vadd.f32 %v4614, %v4629
      %v4640 = vadd.f32 %v4615, %v4630
      %v4641 = vmax.f32 %v4631, 0.0
      %v4642 = vmax.f32 %v4632, 0.0
      %v4643 = vmax.f32 %v4633, 0.0
      %v4644 = vmax.f32 %v4634, 0.0
      %v4645 = vmax.f32 %v4635, 0.0
      %v4646 = vmax.f32 %v4636, 0.0
      %v4647 = vmax.f32 %v4637, 0.0
      %v4648 = vmax.f32 %v4638, 0.0
      %v4649 = vmax.f32 %v4639, 0.0
      %v4650 = vmax.f32 %v4640, 0.0
      %v4651 = vsel %vm2528, %v4641, 0.0
      %v4652 = vsel %vm2529, %v4642, 0.0
      %v4653 = vsel %vm2530, %v4643, 0.0
      %v4654 = vsel %vm2531, %v4644, 0.0
      %v4655 = vsel %vm2532, %v4645, 0.0
      %v4656 = vsel %vm2533, %v4646, 0.0
      %v4657 = vsel %vm2534, %v4647, 0.0
      %v4658 = vsel %vm2535, %v4648, 0.0
      %v4659 = vsel %vm2536, %v4649, 0.0
      %v4660 = vsel %vm2537, %v4650, 0.0
      %v4661 = vpack.c.bf16 %v4651, %v4651
      %v4662 = vpack.c.bf16 %v4652, %v4652
      %v4663 = vpack.c.bf16 %v4653, %v4653
      %v4664 = vpack.c.bf16 %v4654, %v4654
      %v4665 = vpack.c.bf16 %v4655, %v4655
      %v4666 = vpack.c.bf16 %v4656, %v4656
      %v4667 = vpack.c.bf16 %v4657, %v4657
      %v4668 = vpack.c.bf16 %v4658, %v4658
      %v4669 = vpack.c.bf16 %v4659, %v4659
      %v4670 = vpack.c.bf16 %v4660, %v4660
      %v4681 = vunpack.c.l.b16 %v4661
      %v4682 = vunpack.c.l.b16 %v4662
      %v4683 = vunpack.c.l.b16 %v4663
      %v4684 = vunpack.c.l.b16 %v4664
      %v4685 = vunpack.c.l.b16 %v4665
      %v4686 = vunpack.c.l.b16 %v4666
      %v4687 = vunpack.c.l.b16 %v4667
      %v4688 = vunpack.c.l.b16 %v4668
      %v4689 = vunpack.c.l.b16 %v4669
      %v4690 = vunpack.c.l.b16 %v4670
      %v4691 = vpack.c.b16 %v4682, %v4681
      %v4692 = vpack.c.b16 %v4684, %v4683
      %v4693 = vpack.c.b16 %v4686, %v4685
      %v4694 = vpack.c.b16 %v4688, %v4687
      %v4695 = vpack.c.b16 %v4690, %v4689
      %4701 = vst [vmem:[%s170] sm:$0xff] %v4691
      %4702 = vst [vmem:[%s170 + $0x8] sm:$0xff] %v4692
      %4703 = vst [vmem:[%s170 + $0x10] sm:$0xff] %v4693
      %4704 = vst [vmem:[%s170 + $0x18] sm:$0xff] %v4694
      %4705 = vst [vmem:[%s170 + $0x20] sm:$0xff] %v4695
      %p4706 = scmp.lt.s32.totalorder %s14, 1
      %s4707 = scalar_select %p4706, %s14, 1
      %s4708 = smul.addr %s4707, 10
      %s4709 = smul.addr %s4708, 4
      %s4710 = scalar_lea.vmem %s3, %s4709
      // Predicated region
      $region33: #{basic_block_forward.1} parent=31 // pred_check
        %p4711 = pneg %p100
      $region34: #{basic_block_forward.1} parent=31 // pred_check_branch
        %4713 = sbr.rel (%p4711) target = $region36
      $region35: #{basic_block_forward.1} parent=31 // pred_region
        _
      $region36: #{basic_block_forward.1} parent=31 // pred_fallthru
        _
    $region32: #{basic_block_forward.1} parent=5 // pred_fallthru
      _
    %p4714 = scmp.le.s32.totalorder 2, %s9
    // Predicated region
    $region37: #{basic_block_forward.1} parent=5 // pred_check
      %p4715 = pneg %p4714
    $region38: #{basic_block_forward.1} parent=5 // pred_check_branch
      %4717 = sbr.rel (%p4715) target = $region40
    $region39: #{basic_block_forward.1} parent=5 // pred_region
      %s4718 = ssub.s32 %s9, 2
      // Predicated region
      $region41: #{basic_block_forward.1} parent=39 // pred_check
        %p4719 = pneg %p106
      $region42: #{basic_block_forward.1} parent=39 // pred_check_branch
        %4721 = sbr.rel (%p4719) target = $region44
      $region43: #{basic_block_forward.1} parent=39 // pred_region
        %p4722 = scmp.lt.s32.totalorder %s15, 1
        %s4723 = scalar_select %p4722, %s15, 1
        %s4724 = smul.addr %s4723, 10
        %s4725 = smul.addr %s4724, 4
        %s4726 = scalar_lea.vmem %s3, %s4725
      $region44: #{basic_block_forward.1} parent=39 // pred_fallthru
        _
    $region40: #{basic_block_forward.1} parent=5 // pred_fallthru
      _
  $region6: #{basic_block_forward.1} parent=0 // loop_footer
    %s13 = sadd.s32 1, %s9
  $region7: #{basic_block_forward.1} parent=0 // loop_footer_branch
    %8 = sbr.rel target = $region3
  $region8: #{basic_block_forward.1} parent=0 // loop_exit
    _

</llo_original>
